<compile_context>
chip_gen: v5e
topology: v5e:2x2
jax: 0.10.0
libtpu: 0.0.40
codegen_flags: <defaults>
</compile_context>

<pallas_src>
import math

import jax
import jax.numpy as jnp
from jax.experimental import pallas as pl
from jax.experimental.pallas import tpu as pltpu

STUDENT_DIMS = [24, 32, 96, 1280]
TEACHER_DIMS = [256, 512, 1024, 2048]
COMPRESSION_FACTOR = 0.5
COMPRESSED_TEACHER_DIMS = [int(d * COMPRESSION_FACTOR) for d in TEACHER_DIMS]
NUM_LAYERS = len(STUDENT_DIMS)

# Output slab layout: concatenated along the lane dim, all offsets 128-aligned.
OUT_OFFSETS = [0]
for _d in COMPRESSED_TEACHER_DIMS:
    OUT_OFFSETS.append(OUT_OFFSETS[-1] + _d)
TOTAL_OUT = OUT_OFFSETS[-1]  # 1920

MAX_TILE_B = 512  # ~19 MiB pipelined buffers + ~5 MiB resident weights.


def _fused_projector_kernel(
    x0_ref, x1_ref, x2_ref, x3_ref,          # (TILE_B, Cin_i)  f32
    w0_ref, w1_ref, w2_ref, w3_ref,          # (Cin_i, Cout_i)  bf16, resident
    b_ref,                                   # (1, 1920)        f32, resident
    o_ref,                                   # (TILE_B, 1920)   f32
):
    """Four independent linears fused; one lane-dense output slab."""
    x_refs = (x0_ref, x1_ref, x2_ref, x3_ref)
    w_refs = (w0_ref, w1_ref, w2_ref, w3_ref)
    # Layer 3 first (dominant MXU/DMA work); tiny layers last to fill slack.
    for idx in (3, 0, 1, 2):
        lo, hi = OUT_OFFSETS[idx], OUT_OFFSETS[idx + 1]
        x = x_refs[idx][...].astype(jnp.bfloat16)           # bf16 MXU input
        acc = jnp.dot(x, w_refs[idx][...],
                      preferred_element_type=jnp.float32)   # f32 accumulate
        o_ref[:, lo:hi] = (acc + b_ref[:, lo:hi]).astype(o_ref.dtype)


def fused_feature_projector(features, weights, bias_packed):
    """One pallas_call computing all four projections into a (B, 1920) slab.

    features[i]:  (B, Cin_i)        float32
    weights[i]:   (Cin_i, Cout_i)   bfloat16 (pre-transposed)
    bias_packed:  (1, 1920)         float32  (all four biases concatenated)
    """
    B = features[0].shape[0]
    # Single full-extent block for small B; otherwise 8-aligned batch tiles
    # (partial last tile is handled by Pallas masking).
    tile_b = B if B <= MAX_TILE_B else MAX_TILE_B
    grid = (pl.cdiv(B, tile_b),)

    in_specs = []
    # Activations: tiled over batch.
    for i in range(NUM_LAYERS):
        in_specs.append(
            pl.BlockSpec((tile_b, STUDENT_DIMS[i]), lambda b: (b, 0)))
    # Weights: constant block index -> fetched once, VMEM-resident.
    for i in range(NUM_LAYERS):
        in_specs.append(
            pl.BlockSpec((STUDENT_DIMS[i], COMPRESSED_TEACHER_DIMS[i]),
                         lambda b: (0, 0)))
    # Packed bias row: resident.
    in_specs.append(pl.BlockSpec((1, TOTAL_OUT), lambda b: (0, 0)))

    out_spec = pl.BlockSpec((tile_b, TOTAL_OUT), lambda b: (b, 0))

    slab = pl.pallas_call(
        _fused_projector_kernel,
        out_shape=jax.ShapeDtypeStruct((B, TOTAL_OUT), jnp.float32),
        grid=grid,
        in_specs=in_specs,
        out_specs=out_spec,
        compiler_params=pltpu.CompilerParams(
            # Batch tiles are independent -> megacore-shardable on v7x.
            dimension_semantics=("parallel",),
            # Budget @ TILE_B=512: weights 2x2.6 MiB + x-tiles 2x2.9 MiB
            # + out-tiles 2x3.9 MiB ~= 19 MiB; cap well inside v7x's VMEM.
            vmem_limit_bytes=32 * 1024 * 1024,
        ),
    )(*features, *weights, bias_packed)
    return slab


def init_projector_params(key):
    """Params matching nn.Linear(student_dims[i], compressed_teacher_dims[i]).

    PyTorch default init: U(-1/sqrt(in), 1/sqrt(in)) for weight and bias.
    Weights are stored PRE-TRANSPOSED as (Cin, Cout) bf16; biases are packed
    into a single (1, 1920) f32 row — kernel-ready, no per-forward reshapes.
    """
    weights = []
    biases = []
    for cin, cout in zip(STUDENT_DIMS, COMPRESSED_TEACHER_DIMS):
        key, kw, kb = jax.random.split(key, 3)
        bound = 1.0 / math.sqrt(cin)
        w = jax.random.uniform(kw, (cout, cin), jnp.float32, -bound, bound)
        b = jax.random.uniform(kb, (cout,), jnp.float32, -bound, bound)
        weights.append(jnp.asarray(w.T, dtype=jnp.bfloat16))   # (Cin, Cout)
        biases.append(b)
    bias_packed = jnp.concatenate(biases).reshape(1, TOTAL_OUT)
    bias_packed = jnp.asarray(bias_packed, jnp.float32)
    return {"weights": weights, "bias": bias_packed}


def feature_projector_forward(params, features):
    """Forward pass of FeatureProjector (same semantics as the PyTorch module)."""
    for i, feat in enumerate(features):
        if feat.shape[1] != STUDENT_DIMS[i]:
            raise ValueError(
                f"Feature dimension mismatch at layer {i}: expected "
                f"{STUDENT_DIMS[i]}, but got {feat.shape[1]}"
            )
    slab = fused_feature_projector(features, params["weights"], params["bias"])
    return [
        slab[:, OUT_OFFSETS[i]:OUT_OFFSETS[i + 1]] for i in range(NUM_LAYERS)
    ]


def _reference(params, features):
    """Plain-JAX reference with the same bf16-input / f32-accumulate numerics."""
    outs = []
    for i in range(NUM_LAYERS):
        x_q = features[i].astype(jnp.bfloat16).astype(jnp.float32)
        w_q = params["weights"][i].astype(jnp.float32)
        b = params["bias"][:, OUT_OFFSETS[i]:OUT_OFFSETS[i + 1]]
        outs.append(x_q @ w_q + b)
    return outs


if __name__ == "__main__":
    key = jax.random.PRNGKey(0)
    pkey, key = jax.random.split(key)
    params = init_projector_params(pkey)

    # --- small-shape correctness check (batch=2, single full-extent block) ---
    batch = 2
    features = []
    for cin in STUDENT_DIMS:
        key, sub = jax.random.split(key)
        features.append(jax.random.normal(sub, (batch, cin), jnp.float32))

    outs = feature_projector_forward(params, features)
    outs = [jax.block_until_ready(o) for o in outs]
    refs = _reference(params, features)
    for i, (o, r) in enumerate(zip(outs, refs)):
        assert o.shape == (batch, COMPRESSED_TEACHER_DIMS[i]), o.shape
        assert jnp.allclose(o, r, atol=1e-2, rtol=1e-2), f"mismatch at layer {i}"

    # --- larger batch to exercise the batch grid / resident-weight path ---
    big_batch = 2 * MAX_TILE_B  # two batch tiles
    big_features = []
    for cin in STUDENT_DIMS:
        key, sub = jax.random.split(key)
        big_features.append(jax.random.normal(sub, (big_batch, cin), jnp.float32))
    big_outs = feature_projector_forward(params, big_features)
    big_outs = [jax.block_until_ready(o) for o in big_outs]
    big_refs = _reference(params, big_features)
    for i, (o, r) in enumerate(zip(big_outs, big_refs)):
        assert o.shape == (big_batch, COMPRESSED_TEACHER_DIMS[i]), o.shape
        assert jnp.allclose(o, r, atol=1e-2, rtol=1e-2), f"big mismatch at layer {i}"

    print("KERNEL_OK")
</pallas_src>

<mosaic_0001>
module attributes {stable_mosaic.version = 11 : i64} {
  func.func @_fused_projector_kernel(%arg0: i32, %arg1: memref<2x24xf32, #tpu.memory_space<vmem>>, %arg2: memref<2x32xf32, #tpu.memory_space<vmem>>, %arg3: memref<2x96xf32, #tpu.memory_space<vmem>>, %arg4: memref<2x1280xf32, #tpu.memory_space<vmem>>, %arg5: memref<24x128xbf16, #tpu.memory_space<vmem>>, %arg6: memref<32x256xbf16, #tpu.memory_space<vmem>>, %arg7: memref<96x512xbf16, #tpu.memory_space<vmem>>, %arg8: memref<1280x1024xbf16, #tpu.memory_space<vmem>>, %arg9: memref<1x1920xf32, #tpu.memory_space<vmem>>, %arg10: memref<2x1920xf32, #tpu.memory_space<vmem>>) attributes {dimension_semantics = [#tpu.dimension_semantics<parallel>], iteration_bounds = array<i64: 1>, scalar_prefetch = 0 : i64, scratch_operands = 0 : i64, tpu.core_type = #tpu.core_type<tc>, window_params = [{transform_indices = @transform_0, window_bounds = array<i64: 2, 24>}, {transform_indices = @transform_1, window_bounds = array<i64: 2, 32>}, {transform_indices = @transform_2, window_bounds = array<i64: 2, 96>}, {transform_indices = @transform_3, window_bounds = array<i64: 2, 1280>}, {pipeline_mode = #tpu.pipeline_mode<synchronous>, transform_indices = @transform_4, window_bounds = array<i64: 24, 128>}, {pipeline_mode = #tpu.pipeline_mode<synchronous>, transform_indices = @transform_5, window_bounds = array<i64: 32, 256>}, {pipeline_mode = #tpu.pipeline_mode<synchronous>, transform_indices = @transform_6, window_bounds = array<i64: 96, 512>}, {pipeline_mode = #tpu.pipeline_mode<synchronous>, transform_indices = @transform_7, window_bounds = array<i64: 1280, 1024>}, {pipeline_mode = #tpu.pipeline_mode<synchronous>, transform_indices = @transform_8, window_bounds = array<i64: 1, 1920>}, {transform_indices = @transform_9, window_bounds = array<i64: 2, 1920>}]} {
    %c0 = arith.constant 0 : index
    %c0_0 = arith.constant 0 : index
    %0 = vector.load %arg4[%c0, %c0_0] : memref<2x1280xf32, #tpu.memory_space<vmem>>, vector<2x1280xf32>
    %1 = arith.truncf %0 : vector<2x1280xf32> to vector<2x1280xbf16>
    %c0_1 = arith.constant 0 : index
    %c0_2 = arith.constant 0 : index
    %2 = vector.load %arg8[%c0_1, %c0_2] : memref<1280x1024xbf16, #tpu.memory_space<vmem>>, vector<1280x1024xbf16>
    %cst = arith.constant dense<0.000000e+00> : vector<2x1024xf32>
    %3 = tpu.matmul %1, %2, %cst {dimension_numbers = #tpu.dot_dimension_numbers<[1], [0], [0], [1], [0, 0, 1, 1], [], []>} : vector<2x1280xbf16>, vector<1280x1024xbf16>, vector<2x1024xf32> -> vector<2x1024xf32>
    %c0_3 = arith.constant 0 : index
    %c896 = arith.constant 896 : index
    %4 = vector.load %arg9[%c0_3, %c896] : memref<1x1920xf32, #tpu.memory_space<vmem>>, vector<1x1024xf32>
    %5 = vector.broadcast %4 : vector<1x1024xf32> to vector<2x1024xf32>
    %6 = arith.addf %3, %5 : vector<2x1024xf32>
    %c0_4 = arith.constant 0 : index
    %c896_5 = arith.constant 896 : index
    %7 = vector.load %arg10[%c0_4, %c896_5] : memref<2x1920xf32, #tpu.memory_space<vmem>>, vector<2x1024xf32>
    tpu.vector_store %arg10[%c0_4, %c896_5], %6 {strides = array<i32>} : memref<2x1920xf32, #tpu.memory_space<vmem>>, vector<2x1024xf32>,
    %c0_6 = arith.constant 0 : index
    %c0_7 = arith.constant 0 : index
    %8 = vector.load %arg1[%c0_6, %c0_7] : memref<2x24xf32, #tpu.memory_space<vmem>>, vector<2x24xf32>
    %9 = arith.truncf %8 : vector<2x24xf32> to vector<2x24xbf16>
    %c0_8 = arith.constant 0 : index
    %c0_9 = arith.constant 0 : index
    %10 = vector.load %arg5[%c0_8, %c0_9] : memref<24x128xbf16, #tpu.memory_space<vmem>>, vector<24x128xbf16>
    %cst_10 = arith.constant dense<0.000000e+00> : vector<2x128xf32>
    %11 = tpu.matmul %9, %10, %cst_10 {dimension_numbers = #tpu.dot_dimension_numbers<[1], [0], [0], [1], [0, 0, 1, 1], [], []>} : vector<2x24xbf16>, vector<24x128xbf16>, vector<2x128xf32> -> vector<2x128xf32>
    %c0_11 = arith.constant 0 : index
    %c0_12 = arith.constant 0 : index
    %12 = vector.load %arg9[%c0_11, %c0_12] : memref<1x1920xf32, #tpu.memory_space<vmem>>, vector<1x128xf32>
    %13 = vector.broadcast %12 : vector<1x128xf32> to vector<2x128xf32>
    %14 = arith.addf %11, %13 : vector<2x128xf32>
    %c0_13 = arith.constant 0 : index
    %c0_14 = arith.constant 0 : index
    %15 = vector.load %arg10[%c0_13, %c0_14] : memref<2x1920xf32, #tpu.memory_space<vmem>>, vector<2x128xf32>
    tpu.vector_store %arg10[%c0_13, %c0_14], %14 {strides = array<i32>} : memref<2x1920xf32, #tpu.memory_space<vmem>>, vector<2x128xf32>,
    %c0_15 = arith.constant 0 : index
    %c0_16 = arith.constant 0 : index
    %16 = vector.load %arg2[%c0_15, %c0_16] : memref<2x32xf32, #tpu.memory_space<vmem>>, vector<2x32xf32>
    %17 = arith.truncf %16 : vector<2x32xf32> to vector<2x32xbf16>
    %c0_17 = arith.constant 0 : index
    %c0_18 = arith.constant 0 : index
    %18 = vector.load %arg6[%c0_17, %c0_18] : memref<32x256xbf16, #tpu.memory_space<vmem>>, vector<32x256xbf16>
    %cst_19 = arith.constant dense<0.000000e+00> : vector<2x256xf32>
    %19 = tpu.matmul %17, %18, %cst_19 {dimension_numbers = #tpu.dot_dimension_numbers<[1], [0], [0], [1], [0, 0, 1, 1], [], []>} : vector<2x32xbf16>, vector<32x256xbf16>, vector<2x256xf32> -> vector<2x256xf32>
    %c0_20 = arith.constant 0 : index
    %c128 = arith.constant 128 : index
    %20 = vector.load %arg9[%c0_20, %c128] : memref<1x1920xf32, #tpu.memory_space<vmem>>, vector<1x256xf32>
    %21 = vector.broadcast %20 : vector<1x256xf32> to vector<2x256xf32>
    %22 = arith.addf %19, %21 : vector<2x256xf32>
    %c0_21 = arith.constant 0 : index
    %c128_22 = arith.constant 128 : index
    %23 = vector.load %arg10[%c0_21, %c128_22] : memref<2x1920xf32, #tpu.memory_space<vmem>>, vector<2x256xf32>
    tpu.vector_store %arg10[%c0_21, %c128_22], %22 {strides = array<i32>} : memref<2x1920xf32, #tpu.memory_space<vmem>>, vector<2x256xf32>,
    %c0_23 = arith.constant 0 : index
    %c0_24 = arith.constant 0 : index
    %24 = vector.load %arg3[%c0_23, %c0_24] : memref<2x96xf32, #tpu.memory_space<vmem>>, vector<2x96xf32>
    %25 = arith.truncf %24 : vector<2x96xf32> to vector<2x96xbf16>
    %c0_25 = arith.constant 0 : index
    %c0_26 = arith.constant 0 : index
    %26 = vector.load %arg7[%c0_25, %c0_26] : memref<96x512xbf16, #tpu.memory_space<vmem>>, vector<96x512xbf16>
    %cst_27 = arith.constant dense<0.000000e+00> : vector<2x512xf32>
    %27 = tpu.matmul %25, %26, %cst_27 {dimension_numbers = #tpu.dot_dimension_numbers<[1], [0], [0], [1], [0, 0, 1, 1], [], []>} : vector<2x96xbf16>, vector<96x512xbf16>, vector<2x512xf32> -> vector<2x512xf32>
    %c0_28 = arith.constant 0 : index
    %c384 = arith.constant 384 : index
    %28 = vector.load %arg9[%c0_28, %c384] : memref<1x1920xf32, #tpu.memory_space<vmem>>, vector<1x512xf32>
    %29 = vector.broadcast %28 : vector<1x512xf32> to vector<2x512xf32>
    %30 = arith.addf %27, %29 : vector<2x512xf32>
    %c0_29 = arith.constant 0 : index
    %c384_30 = arith.constant 384 : index
    %31 = vector.load %arg10[%c0_29, %c384_30] : memref<2x1920xf32, #tpu.memory_space<vmem>>, vector<2x512xf32>
    tpu.vector_store %arg10[%c0_29, %c384_30], %30 {strides = array<i32>} : memref<2x1920xf32, #tpu.memory_space<vmem>>, vector<2x512xf32>,
    return
  }
  func.func @transform_0(%arg0: i32) -> (i32, i32) {
    %c0_i32 = arith.constant 0 : i32
    %c0_i32_0 = arith.constant 0 : i32
    return %arg0, %c0_i32 : i32, i32
  }
  func.func @transform_1(%arg0: i32) -> (i32, i32) {
    %c0_i32 = arith.constant 0 : i32
    %c0_i32_0 = arith.constant 0 : i32
    return %arg0, %c0_i32 : i32, i32
  }
  func.func @transform_2(%arg0: i32) -> (i32, i32) {
    %c0_i32 = arith.constant 0 : i32
    %c0_i32_0 = arith.constant 0 : i32
    return %arg0, %c0_i32 : i32, i32
  }
  func.func @transform_3(%arg0: i32) -> (i32, i32) {
    %c0_i32 = arith.constant 0 : i32
    %c0_i32_0 = arith.constant 0 : i32
    return %arg0, %c0_i32 : i32, i32
  }
  func.func @transform_4(%arg0: i32) -> (i32, i32) {
    %c0_i32 = arith.constant 0 : i32
    %c0_i32_0 = arith.constant 0 : i32
    %c0_i32_1 = arith.constant 0 : i32
    return %c0_i32, %c0_i32_0 : i32, i32
  }
  func.func @transform_5(%arg0: i32) -> (i32, i32) {
    %c0_i32 = arith.constant 0 : i32
    %c0_i32_0 = arith.constant 0 : i32
    %c0_i32_1 = arith.constant 0 : i32
    return %c0_i32, %c0_i32_0 : i32, i32
  }
  func.func @transform_6(%arg0: i32) -> (i32, i32) {
    %c0_i32 = arith.constant 0 : i32
    %c0_i32_0 = arith.constant 0 : i32
    %c0_i32_1 = arith.constant 0 : i32
    return %c0_i32, %c0_i32_0 : i32, i32
  }
  func.func @transform_7(%arg0: i32) -> (i32, i32) {
    %c0_i32 = arith.constant 0 : i32
    %c0_i32_0 = arith.constant 0 : i32
    %c0_i32_1 = arith.constant 0 : i32
    return %c0_i32, %c0_i32_0 : i32, i32
  }
  func.func @transform_8(%arg0: i32) -> (i32, i32) {
    %c0_i32 = arith.constant 0 : i32
    %c0_i32_0 = arith.constant 0 : i32
    %c0_i32_1 = arith.constant 0 : i32
    return %c0_i32, %c0_i32_0 : i32, i32
  }
  func.func @transform_9(%arg0: i32) -> (i32, i32) {
    %c0_i32 = arith.constant 0 : i32
    %c0_i32_0 = arith.constant 0 : i32
    return %arg0, %c0_i32 : i32, i32
  }
}

</mosaic_0001>

<llo_original>
// kernel: tpu_custom_call.1
$region0: #{tpu_custom_call.1}
  #allocation0 [shape = 'u32[]', space=smem, size = 0x4, offset = 0x4, fixed_abs, tag = 'smem constant byte address 0x4 - core index']
  #allocation1 [shape = 'u32[72,128]{1,0:T(1,128)}', space=vmem, size = 0x9000, scoped, tag = 'internal scratch']
  %s0 = inlined_call_operand.hbm [shape: f32[2,24], index: 0, kind: input, shape index: {}]
  %s1 = inlined_call_operand.hbm [shape: f32[2,32], index: 1, kind: input, shape index: {}]
  %s2 = inlined_call_operand.hbm [shape: f32[2,96], index: 2, kind: input, shape index: {}]
  %s3 = inlined_call_operand.hbm [shape: f32[2,1280], index: 3, kind: input, shape index: {}]
  %s4 = inlined_call_operand.hbm [shape: bf16[24,128], index: 4, kind: input, shape index: {}]
  %s5 = inlined_call_operand.hbm [shape: bf16[32,256], index: 5, kind: input, shape index: {}]
  %s6 = inlined_call_operand.hbm [shape: bf16[96,512], index: 6, kind: input, shape index: {}]
  %s7 = inlined_call_operand.hbm [shape: bf16[1280,1024], index: 7, kind: input, shape index: {}]
  %s8 = inlined_call_operand.hbm [shape: f32[1,1920], index: 8, kind: input, shape index: {}]
  %s9 = inlined_call_operand.hbm [shape: f32[2,1920], index: 9, kind: output, shape index: {}]
  %s10 = sld [smem:[#allocation0]]
  $region82: #{tpu_custom_call.1} parent=0
    _
  %s12 = ssub.s32 1, %s10
  %s13 = scalar_select 0, %s12, %s10
  $region1: #{tpu_custom_call.1} parent=0
    #allocation2 [shape = 'u8[1024]{0}', space=vmem, size = 0x400, scoped, tag = 'input window, operand 0, single buffered']
    #allocation3 [shape = 's32[1]{0}', space=sflag, size = 0x4, scoped, tag = 'scoped memory for tpu_custom_call.1']
    #allocation4 [shape = 's32[1]{0}', space=sflag, size = 0x4, scoped, tag = 'scoped memory for tpu_custom_call.1']
    #allocation5 [shape = 'u8[1024]{0}', space=vmem, size = 0x400, scoped, tag = 'input window, operand 1, single buffered']
    #allocation6 [shape = 's32[1]{0}', space=sflag, size = 0x4, scoped, tag = 'scoped memory for tpu_custom_call.1']
    #allocation7 [shape = 'u8[1024]{0}', space=vmem, size = 0x400, scoped, tag = 'input window, operand 2, single buffered']
    #allocation8 [shape = 'u8[10240]{0}', space=vmem, size = 0x2800, scoped, tag = 'input window, operand 3, single buffered']
    #allocation9 [shape = 's32[1]{0}', space=sflag, size = 0x4, scoped, tag = 'scoped memory for tpu_custom_call.1']
    #allocation10 [shape = 'u8[6144]{0}', space=vmem, size = 0x1800, scoped, tag = 'input window, operand 4, single buffered']
    #allocation11 [shape = 'u8[16384]{0}', space=vmem, size = 0x4000, scoped, tag = 'input window, operand 5, single buffered']
    #allocation12 [shape = 's32[1]{0}', space=sflag, size = 0x4, scoped, tag = 'scoped memory for tpu_custom_call.1']
    #allocation13 [shape = 'u8[98304]{0}', space=vmem, size = 0x18000, scoped, tag = 'input window, operand 6, single buffered']
    #allocation14 [shape = 'u8[2621440]{0}', space=vmem, size = 0x280000, scoped, tag = 'input window, operand 7, single buffered']
    #allocation15 [shape = 's32[1]{0}', space=sflag, size = 0x4, scoped, tag = 'scoped memory for tpu_custom_call.1']
    #allocation16 [shape = 'u8[7680]{0}', space=vmem, size = 0x2000, scoped, tag = 'input window, operand 8, single buffered']
    #allocation17 [shape = 'u8[15360]{0}', space=vmem, size = 0x3c00, scoped, tag = 'output window, operand 0, single buffered']
    %14 = vsyncpa [#allocation3], 0
    %15 = vsyncpa [#allocation6], 0
    %16 = vsyncpa [#allocation9], 0
    %17 = vsyncpa [#allocation12], 0
    %18 = vsyncpa [#allocation15], 0
    %19 = vsyncpa [#allocation4], 0
    // Predicated region
    $region2: #{tpu_custom_call.1} parent=1 // pred_check
      _
    $region3: #{tpu_custom_call.1} parent=1 // pred_check_branch
      %21 = sbr.rel (0) target = $region5
    $region4: #{tpu_custom_call.1} parent=1 // pred_region
      %23 = vsyncadd [#allocation3], 0
      %s25 = sshll.u32 %s0, 4
      %s26 = int_to_ptr.hbm [resolvable:$true] %s25
      %s27 = sshll.u32 [#allocation2], 4
      %s28 = int_to_ptr.vmem [resolvable:$true] %s27
      %30 = dma.hbm_to_vmem [thread:$0]  %s26, 32, %s28, [#allocation3]
    $region5: #{tpu_custom_call.1} parent=1 // pred_fallthru
      _
    // Predicated region
    $region6: #{tpu_custom_call.1} parent=1 // pred_check
      _
    $region7: #{tpu_custom_call.1} parent=1 // pred_check_branch
      %32 = sbr.rel (0) target = $region9
    $region8: #{tpu_custom_call.1} parent=1 // pred_region
      %34 = vsyncadd [#allocation6], 0
      %s36 = sshll.u32 %s1, 4
      %s37 = int_to_ptr.hbm [resolvable:$true] %s36
      %s38 = sshll.u32 [#allocation5], 4
      %s39 = int_to_ptr.vmem [resolvable:$true] %s38
      %41 = dma.hbm_to_vmem [thread:$0]  %s37, 32, %s39, [#allocation6]
    $region9: #{tpu_custom_call.1} parent=1 // pred_fallthru
      _
    // Predicated region
    $region10: #{tpu_custom_call.1} parent=1 // pred_check
      _
    $region11: #{tpu_custom_call.1} parent=1 // pred_check_branch
      %43 = sbr.rel (0) target = $region13
    $region12: #{tpu_custom_call.1} parent=1 // pred_region
      %45 = vsyncadd [#allocation6], 0
      %s47 = sshll.u32 %s2, 4
      %s48 = int_to_ptr.hbm [resolvable:$true] %s47
      %s49 = sshll.u32 [#allocation7], 4
      %s50 = int_to_ptr.vmem [resolvable:$true] %s49
      %52 = dma.hbm_to_vmem [thread:$0]  %s48, 32, %s50, [#allocation6]
    $region13: #{tpu_custom_call.1} parent=1 // pred_fallthru
      _
    // Predicated region
    $region14: #{tpu_custom_call.1} parent=1 // pred_check
      _
    $region15: #{tpu_custom_call.1} parent=1 // pred_check_branch
      %54 = sbr.rel (0) target = $region17
    $region16: #{tpu_custom_call.1} parent=1 // pred_region
      %56 = vsyncadd [#allocation9], 0
      %s58 = sshll.u32 %s3, 4
      %s59 = int_to_ptr.hbm [resolvable:$true] %s58
      %s60 = sshll.u32 [#allocation8], 4
      %s61 = int_to_ptr.vmem [resolvable:$true] %s60
      %63 = dma.hbm_to_vmem [thread:$0]  %s59, 320, %s61, [#allocation9]
    $region17: #{tpu_custom_call.1} parent=1 // pred_fallthru
      _
    // Predicated region
    $region18: #{tpu_custom_call.1} parent=1 // pred_check
      _
    $region19: #{tpu_custom_call.1} parent=1 // pred_check_branch
      %65 = sbr.rel (0) target = $region21
    $region20: #{tpu_custom_call.1} parent=1 // pred_region
      %67 = vsyncadd [#allocation9], 0
      %s68 = sshll.u32 %s4, 4
      %s69 = int_to_ptr.hbm [resolvable:$true] %s68
      %s70 = sshll.u32 [#allocation10], 4
      %s71 = int_to_ptr.vmem [resolvable:$true] %s70
      %76 = dma.hbm_to_vmem [thread:$0]  %s69, 192, %s71, [#allocation9], 64, 64, 4
    $region21: #{tpu_custom_call.1} parent=1 // pred_fallthru
      _
    // Predicated region
    $region22: #{tpu_custom_call.1} parent=1 // pred_check
      _
    $region23: #{tpu_custom_call.1} parent=1 // pred_check_branch
      %78 = sbr.rel (0) target = $region25
    $region24: #{tpu_custom_call.1} parent=1 // pred_region
      %80 = vsyncadd [#allocation12], 0
      %s81 = sshll.u32 %s5, 4
      %s82 = int_to_ptr.hbm [resolvable:$true] %s81
      %s83 = sshll.u32 [#allocation11], 4
      %s84 = int_to_ptr.vmem [resolvable:$true] %s83
      %89 = dma.hbm_to_vmem [thread:$0]  %s82, 512, %s84, [#allocation12], 128, 128, 8
    $region25: #{tpu_custom_call.1} parent=1 // pred_fallthru
      _
    // Predicated region
    $region26: #{tpu_custom_call.1} parent=1 // pred_check
      _
    $region27: #{tpu_custom_call.1} parent=1 // pred_check_branch
      %91 = sbr.rel (0) target = $region29
    $region28: #{tpu_custom_call.1} parent=1 // pred_region
      %93 = vsyncadd [#allocation12], 0
      %s94 = sshll.u32 %s6, 4
      %s95 = int_to_ptr.hbm [resolvable:$true] %s94
      %s96 = sshll.u32 [#allocation13], 4
      %s97 = int_to_ptr.vmem [resolvable:$true] %s96
      %102 = dma.hbm_to_vmem [thread:$0]  %s95, 3072, %s97, [#allocation12], 256, 256, 16
    $region29: #{tpu_custom_call.1} parent=1 // pred_fallthru
      _
    // Predicated region
    $region30: #{tpu_custom_call.1} parent=1 // pred_check
      _
    $region31: #{tpu_custom_call.1} parent=1 // pred_check_branch
      %104 = sbr.rel (0) target = $region33
    $region32: #{tpu_custom_call.1} parent=1 // pred_region
      %106 = vsyncadd [#allocation15], 0
      %s107 = sshll.u32 %s7, 4
      %s108 = int_to_ptr.hbm [resolvable:$true] %s107
      %s109 = sshll.u32 [#allocation14], 4
      %s110 = int_to_ptr.vmem [resolvable:$true] %s109
      %115 = dma.hbm_to_vmem [thread:$0]  %s108, 81920, %s110, [#allocation15], 512, 512, 32
    $region33: #{tpu_custom_call.1} parent=1 // pred_fallthru
      _
    // Predicated region
    $region34: #{tpu_custom_call.1} parent=1 // pred_check
      _
    $region35: #{tpu_custom_call.1} parent=1 // pred_check_branch
      %117 = sbr.rel (0) target = $region37
    $region36: #{tpu_custom_call.1} parent=1 // pred_region
      %119 = vsyncadd [#allocation15], 0
      %s121 = sshll.u32 %s8, 4
      %s122 = int_to_ptr.hbm [resolvable:$true] %s121
      %s123 = sshll.u32 [#allocation16], 4
      %s124 = int_to_ptr.vmem [resolvable:$true] %s123
      %126 = dma.hbm_to_vmem [thread:$0]  %s122, 240, %s124, [#allocation15]
    $region37: #{tpu_custom_call.1} parent=1 // pred_fallthru
      _
    // Predicated region
    $region38: #{tpu_custom_call.1} parent=1 // pred_check
      _
    $region39: #{tpu_custom_call.1} parent=1 // pred_check_branch
      %128 = sbr.rel (0) target = $region41
    $region40: #{tpu_custom_call.1} parent=1 // pred_region
      %130 = dma.done [#allocation3], 32
    $region41: #{tpu_custom_call.1} parent=1 // pred_fallthru
      _
    // Predicated region
    $region42: #{tpu_custom_call.1} parent=1 // pred_check
      _
    $region43: #{tpu_custom_call.1} parent=1 // pred_check_branch
      %132 = sbr.rel (0) target = $region45
    $region44: #{tpu_custom_call.1} parent=1 // pred_region
      %134 = dma.done [#allocation6], 32
    $region45: #{tpu_custom_call.1} parent=1 // pred_fallthru
      _
    // Predicated region
    $region46: #{tpu_custom_call.1} parent=1 // pred_check
      _
    $region47: #{tpu_custom_call.1} parent=1 // pred_check_branch
      %136 = sbr.rel (0) target = $region49
    $region48: #{tpu_custom_call.1} parent=1 // pred_region
      %138 = dma.done [#allocation6], 32
    $region49: #{tpu_custom_call.1} parent=1 // pred_fallthru
      _
    // Predicated region
    $region50: #{tpu_custom_call.1} parent=1 // pred_check
      _
    $region51: #{tpu_custom_call.1} parent=1 // pred_check_branch
      %140 = sbr.rel (0) target = $region53
    $region52: #{tpu_custom_call.1} parent=1 // pred_region
      %142 = dma.done [#allocation9], 320
    $region53: #{tpu_custom_call.1} parent=1 // pred_fallthru
      _
    // Predicated region
    $region54: #{tpu_custom_call.1} parent=1 // pred_check
      _
    $region55: #{tpu_custom_call.1} parent=1 // pred_check_branch
      %144 = sbr.rel (0) target = $region57
    $region56: #{tpu_custom_call.1} parent=1 // pred_region
      %146 = dma.done [#allocation9], 192
    $region57: #{tpu_custom_call.1} parent=1 // pred_fallthru
      _
    // Predicated region
    $region58: #{tpu_custom_call.1} parent=1 // pred_check
      _
    $region59: #{tpu_custom_call.1} parent=1 // pred_check_branch
      %148 = sbr.rel (0) target = $region61
    $region60: #{tpu_custom_call.1} parent=1 // pred_region
      %150 = dma.done [#allocation12], 512
    $region61: #{tpu_custom_call.1} parent=1 // pred_fallthru
      _
    // Predicated region
    $region62: #{tpu_custom_call.1} parent=1 // pred_check
      _
    $region63: #{tpu_custom_call.1} parent=1 // pred_check_branch
      %152 = sbr.rel (0) target = $region65
    $region64: #{tpu_custom_call.1} parent=1 // pred_region
      %154 = dma.done [#allocation12], 3072
    $region65: #{tpu_custom_call.1} parent=1 // pred_fallthru
      _
    // Predicated region
    $region66: #{tpu_custom_call.1} parent=1 // pred_check
      _
    $region67: #{tpu_custom_call.1} parent=1 // pred_check_branch
      %156 = sbr.rel (0) target = $region69
    $region68: #{tpu_custom_call.1} parent=1 // pred_region
      %158 = dma.done [#allocation15], 81920
    $region69: #{tpu_custom_call.1} parent=1 // pred_fallthru
      _
    // Predicated region
    $region70: #{tpu_custom_call.1} parent=1 // pred_check
      _
    $region71: #{tpu_custom_call.1} parent=1 // pred_check_branch
      %160 = sbr.rel (0) target = $region73
    $region72: #{tpu_custom_call.1} parent=1 // pred_region
      %162 = dma.done [#allocation15], 240
    $region73: #{tpu_custom_call.1} parent=1 // pred_fallthru
      _
    %v164 = vld [vmem:[#allocation8] sm:$0xff]
    %v165 = vld [vmem:[#allocation8 + $0x8] sm:$0xff]
    %v166 = vld [vmem:[#allocation8 + $0x10] sm:$0xf]
    %170 = vst [vmem:[#allocation1] ss:$4 sm:$0xff] %v164
    %s171 = scalar_lea.vmem [#allocation1], 32
    %172 = vst [vmem:[%s171] ss:$4 sm:$0xff] %v165
    %v173 = vld.sshfl [vmem:[#allocation1] sm:$0xff pattern:$0x73625140]
    %v174 = vld.sshfl [vmem:[#allocation1 + $0x8] sm:$0xff pattern:$0x73625140]
    %v175 = vld.sshfl [vmem:[#allocation1 + $0x10] sm:$0xff pattern:$0x73625140]
    %v176 = vld.sshfl [vmem:[#allocation1 + $0x18] sm:$0xff pattern:$0x73625140]
    %v177 = vld.sshfl [vmem:[#allocation1 + $0x20] sm:$0xff pattern:$0x73625140]
    %v178 = vld.sshfl [vmem:[#allocation1 + $0x28] sm:$0xff pattern:$0x73625140]
    %v179 = vld.sshfl [vmem:[#allocation1 + $0x30] sm:$0xff pattern:$0x73625140]
    %v180 = vld.sshfl [vmem:[#allocation1 + $0x38] sm:$0xff pattern:$0x73625140]
    %181 = vst [vmem:[#allocation1] ss:$4 sm:$0xff] %v166
    %v182 = vld.sshfl [vmem:[#allocation1] sm:$0xff pattern:$0x73625140]
    %v183 = vld.sshfl [vmem:[#allocation1 + $0x8] sm:$0xff pattern:$0x73625140]
    %v194 = vpack.c.bf16 %v173, %v173
    %v195 = vpack.c.bf16 %v174, %v174
    %v196 = vpack.c.bf16 %v175, %v175
    %v197 = vpack.c.bf16 %v176, %v176
    %v198 = vpack.c.bf16 %v177, %v177
    %v199 = vpack.c.bf16 %v178, %v178
    %v200 = vpack.c.bf16 %v179, %v179
    %v201 = vpack.c.bf16 %v180, %v180
    %v202 = vpack.c.bf16 %v182, %v182
    %v203 = vpack.c.bf16 %v183, %v183
    %v204 = vld [vmem:[#allocation14] sm:$0xff]
    %v205 = vld [vmem:[#allocation14 + $0x8] sm:$0xff]
    %v206 = vld [vmem:[#allocation14 + $0x10] sm:$0xff]
    %v207 = vld [vmem:[#allocation14 + $0x18] sm:$0xff]
    %v208 = vld [vmem:[#allocation14 + $0x20] sm:$0xff]
    %v209 = vld [vmem:[#allocation14 + $0x28] sm:$0xff]
    %v210 = vld [vmem:[#allocation14 + $0x30] sm:$0xff]
    %v211 = vld [vmem:[#allocation14 + $0x38] sm:$0xff]
    %v212 = vld [vmem:[#allocation14 + $0x40] sm:$0xff]
    %v213 = vld [vmem:[#allocation14 + $0x48] sm:$0xff]
    %v214 = vld [vmem:[#allocation14 + $0x50] sm:$0xff]
    %v215 = vld [vmem:[#allocation14 + $0x58] sm:$0xff]
    %v216 = vld [vmem:[#allocation14 + $0x60] sm:$0xff]
    %v217 = vld [vmem:[#allocation14 + $0x68] sm:$0xff]
    %v218 = vld [vmem:[#allocation14 + $0x70] sm:$0xff]
    %v219 = vld [vmem:[#allocation14 + $0x78] sm:$0xff]
    %v220 = vld [vmem:[#allocation14 + $0x80] sm:$0xff]
    %v221 = vld [vmem:[#allocation14 + $0x88] sm:$0xff]
    %v222 = vld [vmem:[#allocation14 + $0x90] sm:$0xff]
    %v223 = vld [vmem:[#allocation14 + $0x98] sm:$0xff]
    %v224 = vld [vmem:[#allocation14 + $0xa0] sm:$0xff]
    %v225 = vld [vmem:[#allocation14 + $0xa8] sm:$0xff]
    %v226 = vld [vmem:[#allocation14 + $0xb0] sm:$0xff]
    %v227 = vld [vmem:[#allocation14 + $0xb8] sm:$0xff]
    %v228 = vld [vmem:[#allocation14 + $0xc0] sm:$0xff]
    %v229 = vld [vmem:[#allocation14 + $0xc8] sm:$0xff]
    %v230 = vld [vmem:[#allocation14 + $0xd0] sm:$0xff]
    %v231 = vld [vmem:[#allocation14 + $0xd8] sm:$0xff]
    %v232 = vld [vmem:[#allocation14 + $0xe0] sm:$0xff]
    %v233 = vld [vmem:[#allocation14 + $0xe8] sm:$0xff]
    %v234 = vld [vmem:[#allocation14 + $0xf0] sm:$0xff]
    %v235 = vld [vmem:[#allocation14 + $0xf8] sm:$0xff]
    %v236 = vld [vmem:[#allocation14 + $0x100] sm:$0xff]
    %v237 = vld [vmem:[#allocation14 + $0x108] sm:$0xff]
    %v238 = vld [vmem:[#allocation14 + $0x110] sm:$0xff]
    %v239 = vld [vmem:[#allocation14 + $0x118] sm:$0xff]
    %v240 = vld [vmem:[#allocation14 + $0x120] sm:$0xff]
    %v241 = vld [vmem:[#allocation14 + $0x128] sm:$0xff]
    %v242 = vld [vmem:[#allocation14 + $0x130] sm:$0xff]
    %v243 = vld [vmem:[#allocation14 + $0x138] sm:$0xff]
    %v244 = vld [vmem:[#allocation14 + $0x140] sm:$0xff]
    %v245 = vld [vmem:[#allocation14 + $0x148] sm:$0xff]
    %v246 = vld [vmem:[#allocation14 + $0x150] sm:$0xff]
    %v247 = vld [vmem:[#allocation14 + $0x158] sm:$0xff]
    %v248 = vld [vmem:[#allocation14 + $0x160] sm:$0xff]
    %v249 = vld [vmem:[#allocation14 + $0x168] sm:$0xff]
    %v250 = vld [vmem:[#allocation14 + $0x170] sm:$0xff]
    %v251 = vld [vmem:[#allocation14 + $0x178] sm:$0xff]
    %v252 = vld [vmem:[#allocation14 + $0x180] sm:$0xff]
    %v253 = vld [vmem:[#allocation14 + $0x188] sm:$0xff]
    %v254 = vld [vmem:[#allocation14 + $0x190] sm:$0xff]
    %v255 = vld [vmem:[#allocation14 + $0x198] sm:$0xff]
    %v256 = vld [vmem:[#allocation14 + $0x1a0] sm:$0xff]
    %v257 = vld [vmem:[#allocation14 + $0x1a8] sm:$0xff]
    %v258 = vld [vmem:[#allocation14 + $0x1b0] sm:$0xff]
    %v259 = vld [vmem:[#allocation14 + $0x1b8] sm:$0xff]
    %v260 = vld [vmem:[#allocation14 + $0x1c0] sm:$0xff]
    %v261 = vld [vmem:[#allocation14 + $0x1c8] sm:$0xff]
    %v262 = vld [vmem:[#allocation14 + $0x1d0] sm:$0xff]
    %v263 = vld [vmem:[#allocation14 + $0x1d8] sm:$0xff]
    %v264 = vld [vmem:[#allocation14 + $0x1e0] sm:$0xff]
    %v265 = vld [vmem:[#allocation14 + $0x1e8] sm:$0xff]
    %v266 = vld [vmem:[#allocation14 + $0x1f0] sm:$0xff]
    %v267 = vld [vmem:[#allocation14 + $0x1f8] sm:$0xff]
    %v268 = vld [vmem:[#allocation14 + $0x200] sm:$0xff]
    %v269 = vld [vmem:[#allocation14 + $0x208] sm:$0xff]
    %v270 = vld [vmem:[#allocation14 + $0x210] sm:$0xff]
    %v271 = vld [vmem:[#allocation14 + $0x218] sm:$0xff]
    %v272 = vld [vmem:[#allocation14 + $0x220] sm:$0xff]
    %v273 = vld [vmem:[#allocation14 + $0x228] sm:$0xff]
    %v274 = vld [vmem:[#allocation14 + $0x230] sm:$0xff]
    %v275 = vld [vmem:[#allocation14 + $0x238] sm:$0xff]
    %v276 = vld [vmem:[#allocation14 + $0x240] sm:$0xff]
    %v277 = vld [vmem:[#allocation14 + $0x248] sm:$0xff]
    %v278 = vld [vmem:[#allocation14 + $0x250] sm:$0xff]
    %v279 = vld [vmem:[#allocation14 + $0x258] sm:$0xff]
    %v280 = vld [vmem:[#allocation14 + $0x260] sm:$0xff]
    %v281 = vld [vmem:[#allocation14 + $0x268] sm:$0xff]
    %v282 = vld [vmem:[#allocation14 + $0x270] sm:$0xff]
    %v283 = vld [vmem:[#allocation14 + $0x278] sm:$0xff]
    %v284 = vld [vmem:[#allocation14 + $0x280] sm:$0xff]
    %v285 = vld [vmem:[#allocation14 + $0x288] sm:$0xff]
    %v286 = vld [vmem:[#allocation14 + $0x290] sm:$0xff]
    %v287 = vld [vmem:[#allocation14 + $0x298] sm:$0xff]
    %v288 = vld [vmem:[#allocation14 + $0x2a0] sm:$0xff]
    %v289 = vld [vmem:[#allocation14 + $0x2a8] sm:$0xff]
    %v290 = vld [vmem:[#allocation14 + $0x2b0] sm:$0xff]
    %v291 = vld [vmem:[#allocation14 + $0x2b8] sm:$0xff]
    %v292 = vld [vmem:[#allocation14 + $0x2c0] sm:$0xff]
    %v293 = vld [vmem:[#allocation14 + $0x2c8] sm:$0xff]
    %v294 = vld [vmem:[#allocation14 + $0x2d0] sm:$0xff]
    %v295 = vld [vmem:[#allocation14 + $0x2d8] sm:$0xff]
    %v296 = vld [vmem:[#allocation14 + $0x2e0] sm:$0xff]
    %v297 = vld [vmem:[#allocation14 + $0x2e8] sm:$0xff]
    %v298 = vld [vmem:[#allocation14 + $0x2f0] sm:$0xff]
    %v299 = vld [vmem:[#allocation14 + $0x2f8] sm:$0xff]
    %v300 = vld [vmem:[#allocation14 + $0x300] sm:$0xff]
    %v301 = vld [vmem:[#allocation14 + $0x308] sm:$0xff]
    %v302 = vld [vmem:[#allocation14 + $0x310] sm:$0xff]
    %v303 = vld [vmem:[#allocation14 + $0x318] sm:$0xff]
    %v304 = vld [vmem:[#allocation14 + $0x320] sm:$0xff]
    %v305 = vld [vmem:[#allocation14 + $0x328] sm:$0xff]
    %v306 = vld [vmem:[#allocation14 + $0x330] sm:$0xff]
    %v307 = vld [vmem:[#allocation14 + $0x338] sm:$0xff]
    %v308 = vld [vmem:[#allocation14 + $0x340] sm:$0xff]
    %v309 = vld [vmem:[#allocation14 + $0x348] sm:$0xff]
    %v310 = vld [vmem:[#allocation14 + $0x350] sm:$0xff]
    %v311 = vld [vmem:[#allocation14 + $0x358] sm:$0xff]
    %v312 = vld [vmem:[#allocation14 + $0x360] sm:$0xff]
    %v313 = vld [vmem:[#allocation14 + $0x368] sm:$0xff]
    %v314 = vld [vmem:[#allocation14 + $0x370] sm:$0xff]
    %v315 = vld [vmem:[#allocation14 + $0x378] sm:$0xff]
    %v316 = vld [vmem:[#allocation14 + $0x380] sm:$0xff]
    %v317 = vld [vmem:[#allocation14 + $0x388] sm:$0xff]
    %v318 = vld [vmem:[#allocation14 + $0x390] sm:$0xff]
    %v319 = vld [vmem:[#allocation14 + $0x398] sm:$0xff]
    %v320 = vld [vmem:[#allocation14 + $0x3a0] sm:$0xff]
    %v321 = vld [vmem:[#allocation14 + $0x3a8] sm:$0xff]
    %v322 = vld [vmem:[#allocation14 + $0x3b0] sm:$0xff]
    %v323 = vld [vmem:[#allocation14 + $0x3b8] sm:$0xff]
    %v324 = vld [vmem:[#allocation14 + $0x3c0] sm:$0xff]
    %v325 = vld [vmem:[#allocation14 + $0x3c8] sm:$0xff]
    %v326 = vld [vmem:[#allocation14 + $0x3d0] sm:$0xff]
    %v327 = vld [vmem:[#allocation14 + $0x3d8] sm:$0xff]
    %v328 = vld [vmem:[#allocation14 + $0x3e0] sm:$0xff]
    %v329 = vld [vmem:[#allocation14 + $0x3e8] sm:$0xff]
    %v330 = vld [vmem:[#allocation14 + $0x3f0] sm:$0xff]
    %v331 = vld [vmem:[#allocation14 + $0x3f8] sm:$0xff]
    %v332 = vld [vmem:[#allocation14 + $0x400] sm:$0xff]
    %v333 = vld [vmem:[#allocation14 + $0x408] sm:$0xff]
    %v334 = vld [vmem:[#allocation14 + $0x410] sm:$0xff]
    %v335 = vld [vmem:[#allocation14 + $0x418] sm:$0xff]
    %v336 = vld [vmem:[#allocation14 + $0x420] sm:$0xff]
    %v337 = vld [vmem:[#allocation14 + $0x428] sm:$0xff]
    %v338 = vld [vmem:[#allocation14 + $0x430] sm:$0xff]
    %v339 = vld [vmem:[#allocation14 + $0x438] sm:$0xff]
    %v340 = vld [vmem:[#allocation14 + $0x440] sm:$0xff]
    %v341 = vld [vmem:[#allocation14 + $0x448] sm:$0xff]
    %v342 = vld [vmem:[#allocation14 + $0x450] sm:$0xff]
    %v343 = vld [vmem:[#allocation14 + $0x458] sm:$0xff]
    %v344 = vld [vmem:[#allocation14 + $0x460] sm:$0xff]
    %v345 = vld [vmem:[#allocation14 + $0x468] sm:$0xff]
    %v346 = vld [vmem:[#allocation14 + $0x470] sm:$0xff]
    %v347 = vld [vmem:[#allocation14 + $0x478] sm:$0xff]
    %v348 = vld [vmem:[#allocation14 + $0x480] sm:$0xff]
    %v349 = vld [vmem:[#allocation14 + $0x488] sm:$0xff]
    %v350 = vld [vmem:[#allocation14 + $0x490] sm:$0xff]
    %v351 = vld [vmem:[#allocation14 + $0x498] sm:$0xff]
    %v352 = vld [vmem:[#allocation14 + $0x4a0] sm:$0xff]
    %v353 = vld [vmem:[#allocation14 + $0x4a8] sm:$0xff]
    %v354 = vld [vmem:[#allocation14 + $0x4b0] sm:$0xff]
    %v355 = vld [vmem:[#allocation14 + $0x4b8] sm:$0xff]
    %v356 = vld [vmem:[#allocation14 + $0x4c0] sm:$0xff]
    %v357 = vld [vmem:[#allocation14 + $0x4c8] sm:$0xff]
    %v358 = vld [vmem:[#allocation14 + $0x4d0] sm:$0xff]
    %v359 = vld [vmem:[#allocation14 + $0x4d8] sm:$0xff]
    %v360 = vld [vmem:[#allocation14 + $0x4e0] sm:$0xff]
    %v361 = vld [vmem:[#allocation14 + $0x4e8] sm:$0xff]
    %v362 = vld [vmem:[#allocation14 + $0x4f0] sm:$0xff]
    %v363 = vld [vmem:[#allocation14 + $0x4f8] sm:$0xff]
    %v364 = vld [vmem:[#allocation14 + $0x500] sm:$0xff]
    %v365 = vld [vmem:[#allocation14 + $0x508] sm:$0xff]
    %v366 = vld [vmem:[#allocation14 + $0x510] sm:$0xff]
    %v367 = vld [vmem:[#allocation14 + $0x518] sm:$0xff]
    %v368 = vld [vmem:[#allocation14 + $0x520] sm:$0xff]
    %v369 = vld [vmem:[#allocation14 + $0x528] sm:$0xff]
    %v370 = vld [vmem:[#allocation14 + $0x530] sm:$0xff]
    %v371 = vld [vmem:[#allocation14 + $0x538] sm:$0xff]
    %v372 = vld [vmem:[#allocation14 + $0x540] sm:$0xff]
    %v373 = vld [vmem:[#allocation14 + $0x548] sm:$0xff]
    %v374 = vld [vmem:[#allocation14 + $0x550] sm:$0xff]
    %v375 = vld [vmem:[#allocation14 + $0x558] sm:$0xff]
    %v376 = vld [vmem:[#allocation14 + $0x560] sm:$0xff]
    %v377 = vld [vmem:[#allocation14 + $0x568] sm:$0xff]
    %v378 = vld [vmem:[#allocation14 + $0x570] sm:$0xff]
    %v379 = vld [vmem:[#allocation14 + $0x578] sm:$0xff]
    %v380 = vld [vmem:[#allocation14 + $0x580] sm:$0xff]
    %v381 = vld [vmem:[#allocation14 + $0x588] sm:$0xff]
    %v382 = vld [vmem:[#allocation14 + $0x590] sm:$0xff]
    %v383 = vld [vmem:[#allocation14 + $0x598] sm:$0xff]
    %v384 = vld [vmem:[#allocation14 + $0x5a0] sm:$0xff]
    %v385 = vld [vmem:[#allocation14 + $0x5a8] sm:$0xff]
    %v386 = vld [vmem:[#allocation14 + $0x5b0] sm:$0xff]
    %v387 = vld [vmem:[#allocation14 + $0x5b8] sm:$0xff]
    %v388 = vld [vmem:[#allocation14 + $0x5c0] sm:$0xff]
    %v389 = vld [vmem:[#allocation14 + $0x5c8] sm:$0xff]
    %v390 = vld [vmem:[#allocation14 + $0x5d0] sm:$0xff]
    %v391 = vld [vmem:[#allocation14 + $0x5d8] sm:$0xff]
    %v392 = vld [vmem:[#allocation14 + $0x5e0] sm:$0xff]
    %v393 = vld [vmem:[#allocation14 + $0x5e8] sm:$0xff]
    %v394 = vld [vmem:[#allocation14 + $0x5f0] sm:$0xff]
    %v395 = vld [vmem:[#allocation14 + $0x5f8] sm:$0xff]
    %v396 = vld [vmem:[#allocation14 + $0x600] sm:$0xff]
    %v397 = vld [vmem:[#allocation14 + $0x608] sm:$0xff]
    %v398 = vld [vmem:[#allocation14 + $0x610] sm:$0xff]
    %v399 = vld [vmem:[#allocation14 + $0x618] sm:$0xff]
    %v400 = vld [vmem:[#allocation14 + $0x620] sm:$0xff]
    %v401 = vld [vmem:[#allocation14 + $0x628] sm:$0xff]
    %v402 = vld [vmem:[#allocation14 + $0x630] sm:$0xff]
    %v403 = vld [vmem:[#allocation14 + $0x638] sm:$0xff]
    %v404 = vld [vmem:[#allocation14 + $0x640] sm:$0xff]
    %v405 = vld [vmem:[#allocation14 + $0x648] sm:$0xff]
    %v406 = vld [vmem:[#allocation14 + $0x650] sm:$0xff]
    %v407 = vld [vmem:[#allocation14 + $0x658] sm:$0xff]
    %v408 = vld [vmem:[#allocation14 + $0x660] sm:$0xff]
    %v409 = vld [vmem:[#allocation14 + $0x668] sm:$0xff]
    %v410 = vld [vmem:[#allocation14 + $0x670] sm:$0xff]
    %v411 = vld [vmem:[#allocation14 + $0x678] sm:$0xff]
    %v412 = vld [vmem:[#allocation14 + $0x680] sm:$0xff]
    %v413 = vld [vmem:[#allocation14 + $0x688] sm:$0xff]
    %v414 = vld [vmem:[#allocation14 + $0x690] sm:$0xff]
    %v415 = vld [vmem:[#allocation14 + $0x698] sm:$0xff]
    %v416 = vld [vmem:[#allocation14 + $0x6a0] sm:$0xff]
    %v417 = vld [vmem:[#allocation14 + $0x6a8] sm:$0xff]
    %v418 = vld [vmem:[#allocation14 + $0x6b0] sm:$0xff]
    %v419 = vld [vmem:[#allocation14 + $0x6b8] sm:$0xff]
    %v420 = vld [vmem:[#allocation14 + $0x6c0] sm:$0xff]
    %v421 = vld [vmem:[#allocation14 + $0x6c8] sm:$0xff]
    %v422 = vld [vmem:[#allocation14 + $0x6d0] sm:$0xff]
    %v423 = vld [vmem:[#allocation14 + $0x6d8] sm:$0xff]
    %v424 = vld [vmem:[#allocation14 + $0x6e0] sm:$0xff]
    %v425 = vld [vmem:[#allocation14 + $0x6e8] sm:$0xff]
    %v426 = vld [vmem:[#allocation14 + $0x6f0] sm:$0xff]
    %v427 = vld [vmem:[#allocation14 + $0x6f8] sm:$0xff]
    %v428 = vld [vmem:[#allocation14 + $0x700] sm:$0xff]
    %v429 = vld [vmem:[#allocation14 + $0x708] sm:$0xff]
    %v430 = vld [vmem:[#allocation14 + $0x710] sm:$0xff]
    %v431 = vld [vmem:[#allocation14 + $0x718] sm:$0xff]
    %v432 = vld [vmem:[#allocation14 + $0x720] sm:$0xff]
    %v433 = vld [vmem:[#allocation14 + $0x728] sm:$0xff]
    %v434 = vld [vmem:[#allocation14 + $0x730] sm:$0xff]
    %v435 = vld [vmem:[#allocation14 + $0x738] sm:$0xff]
    %v436 = vld [vmem:[#allocation14 + $0x740] sm:$0xff]
    %v437 = vld [vmem:[#allocation14 + $0x748] sm:$0xff]
    %v438 = vld [vmem:[#allocation14 + $0x750] sm:$0xff]
    %v439 = vld [vmem:[#allocation14 + $0x758] sm:$0xff]
    %v440 = vld [vmem:[#allocation14 + $0x760] sm:$0xff]
    %v441 = vld [vmem:[#allocation14 + $0x768] sm:$0xff]
    %v442 = vld [vmem:[#allocation14 + $0x770] sm:$0xff]
    %v443 = vld [vmem:[#allocation14 + $0x778] sm:$0xff]
    %v444 = vld [vmem:[#allocation14 + $0x780] sm:$0xff]
    %v445 = vld [vmem:[#allocation14 + $0x788] sm:$0xff]
    %v446 = vld [vmem:[#allocation14 + $0x790] sm:$0xff]
    %v447 = vld [vmem:[#allocation14 + $0x798] sm:$0xff]
    %v448 = vld [vmem:[#allocation14 + $0x7a0] sm:$0xff]
    %v449 = vld [vmem:[#allocation14 + $0x7a8] sm:$0xff]
    %v450 = vld [vmem:[#allocation14 + $0x7b0] sm:$0xff]
    %v451 = vld [vmem:[#allocation14 + $0x7b8] sm:$0xff]
    %v452 = vld [vmem:[#allocation14 + $0x7c0] sm:$0xff]
    %v453 = vld [vmem:[#allocation14 + $0x7c8] sm:$0xff]
    %v454 = vld [vmem:[#allocation14 + $0x7d0] sm:$0xff]
    %v455 = vld [vmem:[#allocation14 + $0x7d8] sm:$0xff]
    %v456 = vld [vmem:[#allocation14 + $0x7e0] sm:$0xff]
    %v457 = vld [vmem:[#allocation14 + $0x7e8] sm:$0xff]
    %v458 = vld [vmem:[#allocation14 + $0x7f0] sm:$0xff]
    %v459 = vld [vmem:[#allocation14 + $0x7f8] sm:$0xff]
    %v460 = vld [vmem:[#allocation14 + $0x800] sm:$0xff]
    %v461 = vld [vmem:[#allocation14 + $0x808] sm:$0xff]
    %v462 = vld [vmem:[#allocation14 + $0x810] sm:$0xff]
    %v463 = vld [vmem:[#allocation14 + $0x818] sm:$0xff]
    %v464 = vld [vmem:[#allocation14 + $0x820] sm:$0xff]
    %v465 = vld [vmem:[#allocation14 + $0x828] sm:$0xff]
    %v466 = vld [vmem:[#allocation14 + $0x830] sm:$0xff]
    %v467 = vld [vmem:[#allocation14 + $0x838] sm:$0xff]
    %v468 = vld [vmem:[#allocation14 + $0x840] sm:$0xff]
    %v469 = vld [vmem:[#allocation14 + $0x848] sm:$0xff]
    %v470 = vld [vmem:[#allocation14 + $0x850] sm:$0xff]
    %v471 = vld [vmem:[#allocation14 + $0x858] sm:$0xff]
    %v472 = vld [vmem:[#allocation14 + $0x860] sm:$0xff]
    %v473 = vld [vmem:[#allocation14 + $0x868] sm:$0xff]
    %v474 = vld [vmem:[#allocation14 + $0x870] sm:$0xff]
    %v475 = vld [vmem:[#allocation14 + $0x878] sm:$0xff]
    %v476 = vld [vmem:[#allocation14 + $0x880] sm:$0xff]
    %v477 = vld [vmem:[#allocation14 + $0x888] sm:$0xff]
    %v478 = vld [vmem:[#allocation14 + $0x890] sm:$0xff]
    %v479 = vld [vmem:[#allocation14 + $0x898] sm:$0xff]
    %v480 = vld [vmem:[#allocation14 + $0x8a0] sm:$0xff]
    %v481 = vld [vmem:[#allocation14 + $0x8a8] sm:$0xff]
    %v482 = vld [vmem:[#allocation14 + $0x8b0] sm:$0xff]
    %v483 = vld [vmem:[#allocation14 + $0x8b8] sm:$0xff]
    %v484 = vld [vmem:[#allocation14 + $0x8c0] sm:$0xff]
    %v485 = vld [vmem:[#allocation14 + $0x8c8] sm:$0xff]
    %v486 = vld [vmem:[#allocation14 + $0x8d0] sm:$0xff]
    %v487 = vld [vmem:[#allocation14 + $0x8d8] sm:$0xff]
    %v488 = vld [vmem:[#allocation14 + $0x8e0] sm:$0xff]
    %v489 = vld [vmem:[#allocation14 + $0x8e8] sm:$0xff]
    %v490 = vld [vmem:[#allocation14 + $0x8f0] sm:$0xff]
    %v491 = vld [vmem:[#allocation14 + $0x8f8] sm:$0xff]
    %v492 = vld [vmem:[#allocation14 + $0x900] sm:$0xff]
    %v493 = vld [vmem:[#allocation14 + $0x908] sm:$0xff]
    %v494 = vld [vmem:[#allocation14 + $0x910] sm:$0xff]
    %v495 = vld [vmem:[#allocation14 + $0x918] sm:$0xff]
    %v496 = vld [vmem:[#allocation14 + $0x920] sm:$0xff]
    %v497 = vld [vmem:[#allocation14 + $0x928] sm:$0xff]
    %v498 = vld [vmem:[#allocation14 + $0x930] sm:$0xff]
    %v499 = vld [vmem:[#allocation14 + $0x938] sm:$0xff]
    %v500 = vld [vmem:[#allocation14 + $0x940] sm:$0xff]
    %v501 = vld [vmem:[#allocation14 + $0x948] sm:$0xff]
    %v502 = vld [vmem:[#allocation14 + $0x950] sm:$0xff]
    %v503 = vld [vmem:[#allocation14 + $0x958] sm:$0xff]
    %v504 = vld [vmem:[#allocation14 + $0x960] sm:$0xff]
    %v505 = vld [vmem:[#allocation14 + $0x968] sm:$0xff]
    %v506 = vld [vmem:[#allocation14 + $0x970] sm:$0xff]
    %v507 = vld [vmem:[#allocation14 + $0x978] sm:$0xff]
    %v508 = vld [vmem:[#allocation14 + $0x980] sm:$0xff]
    %v509 = vld [vmem:[#allocation14 + $0x988] sm:$0xff]
    %v510 = vld [vmem:[#allocation14 + $0x990] sm:$0xff]
    %v511 = vld [vmem:[#allocation14 + $0x998] sm:$0xff]
    %v512 = vld [vmem:[#allocation14 + $0x9a0] sm:$0xff]
    %v513 = vld [vmem:[#allocation14 + $0x9a8] sm:$0xff]
    %v514 = vld [vmem:[#allocation14 + $0x9b0] sm:$0xff]
    %v515 = vld [vmem:[#allocation14 + $0x9b8] sm:$0xff]
    %v516 = vld [vmem:[#allocation14 + $0x9c0] sm:$0xff]
    %v517 = vld [vmem:[#allocation14 + $0x9c8] sm:$0xff]
    %v518 = vld [vmem:[#allocation14 + $0x9d0] sm:$0xff]
    %v519 = vld [vmem:[#allocation14 + $0x9d8] sm:$0xff]
    %v520 = vld [vmem:[#allocation14 + $0x9e0] sm:$0xff]
    %v521 = vld [vmem:[#allocation14 + $0x9e8] sm:$0xff]
    %v522 = vld [vmem:[#allocation14 + $0x9f0] sm:$0xff]
    %v523 = vld [vmem:[#allocation14 + $0x9f8] sm:$0xff]
    %v524 = vld [vmem:[#allocation14 + $0xa00] sm:$0xff]
    %v525 = vld [vmem:[#allocation14 + $0xa08] sm:$0xff]
    %v526 = vld [vmem:[#allocation14 + $0xa10] sm:$0xff]
    %v527 = vld [vmem:[#allocation14 + $0xa18] sm:$0xff]
    %v528 = vld [vmem:[#allocation14 + $0xa20] sm:$0xff]
    %v529 = vld [vmem:[#allocation14 + $0xa28] sm:$0xff]
    %v530 = vld [vmem:[#allocation14 + $0xa30] sm:$0xff]
    %v531 = vld [vmem:[#allocation14 + $0xa38] sm:$0xff]
    %v532 = vld [vmem:[#allocation14 + $0xa40] sm:$0xff]
    %v533 = vld [vmem:[#allocation14 + $0xa48] sm:$0xff]
    %v534 = vld [vmem:[#allocation14 + $0xa50] sm:$0xff]
    %v535 = vld [vmem:[#allocation14 + $0xa58] sm:$0xff]
    %v536 = vld [vmem:[#allocation14 + $0xa60] sm:$0xff]
    %v537 = vld [vmem:[#allocation14 + $0xa68] sm:$0xff]
    %v538 = vld [vmem:[#allocation14 + $0xa70] sm:$0xff]
    %v539 = vld [vmem:[#allocation14 + $0xa78] sm:$0xff]
    %v540 = vld [vmem:[#allocation14 + $0xa80] sm:$0xff]
    %v541 = vld [vmem:[#allocation14 + $0xa88] sm:$0xff]
    %v542 = vld [vmem:[#allocation14 + $0xa90] sm:$0xff]
    %v543 = vld [vmem:[#allocation14 + $0xa98] sm:$0xff]
    %v544 = vld [vmem:[#allocation14 + $0xaa0] sm:$0xff]
    %v545 = vld [vmem:[#allocation14 + $0xaa8] sm:$0xff]
    %v546 = vld [vmem:[#allocation14 + $0xab0] sm:$0xff]
    %v547 = vld [vmem:[#allocation14 + $0xab8] sm:$0xff]
    %v548 = vld [vmem:[#allocation14 + $0xac0] sm:$0xff]
    %v549 = vld [vmem:[#allocation14 + $0xac8] sm:$0xff]
    %v550 = vld [vmem:[#allocation14 + $0xad0] sm:$0xff]
    %v551 = vld [vmem:[#allocation14 + $0xad8] sm:$0xff]
    %v552 = vld [vmem:[#allocation14 + $0xae0] sm:$0xff]
    %v553 = vld [vmem:[#allocation14 + $0xae8] sm:$0xff]
    %v554 = vld [vmem:[#allocation14 + $0xaf0] sm:$0xff]
    %v555 = vld [vmem:[#allocation14 + $0xaf8] sm:$0xff]
    %v556 = vld [vmem:[#allocation14 + $0xb00] sm:$0xff]
    %v557 = vld [vmem:[#allocation14 + $0xb08] sm:$0xff]
    %v558 = vld [vmem:[#allocation14 + $0xb10] sm:$0xff]
    %v559 = vld [vmem:[#allocation14 + $0xb18] sm:$0xff]
    %v560 = vld [vmem:[#allocation14 + $0xb20] sm:$0xff]
    %v561 = vld [vmem:[#allocation14 + $0xb28] sm:$0xff]
    %v562 = vld [vmem:[#allocation14 + $0xb30] sm:$0xff]
    %v563 = vld [vmem:[#allocation14 + $0xb38] sm:$0xff]
    %v564 = vld [vmem:[#allocation14 + $0xb40] sm:$0xff]
    %v565 = vld [vmem:[#allocation14 + $0xb48] sm:$0xff]
    %v566 = vld [vmem:[#allocation14 + $0xb50] sm:$0xff]
    %v567 = vld [vmem:[#allocation14 + $0xb58] sm:$0xff]
    %v568 = vld [vmem:[#allocation14 + $0xb60] sm:$0xff]
    %v569 = vld [vmem:[#allocation14 + $0xb68] sm:$0xff]
    %v570 = vld [vmem:[#allocation14 + $0xb70] sm:$0xff]
    %v571 = vld [vmem:[#allocation14 + $0xb78] sm:$0xff]
    %v572 = vld [vmem:[#allocation14 + $0xb80] sm:$0xff]
    %v573 = vld [vmem:[#allocation14 + $0xb88] sm:$0xff]
    %v574 = vld [vmem:[#allocation14 + $0xb90] sm:$0xff]
    %v575 = vld [vmem:[#allocation14 + $0xb98] sm:$0xff]
    %v576 = vld [vmem:[#allocation14 + $0xba0] sm:$0xff]
    %v577 = vld [vmem:[#allocation14 + $0xba8] sm:$0xff]
    %v578 = vld [vmem:[#allocation14 + $0xbb0] sm:$0xff]
    %v579 = vld [vmem:[#allocation14 + $0xbb8] sm:$0xff]
    %v580 = vld [vmem:[#allocation14 + $0xbc0] sm:$0xff]
    %v581 = vld [vmem:[#allocation14 + $0xbc8] sm:$0xff]
    %v582 = vld [vmem:[#allocation14 + $0xbd0] sm:$0xff]
    %v583 = vld [vmem:[#allocation14 + $0xbd8] sm:$0xff]
    %v584 = vld [vmem:[#allocation14 + $0xbe0] sm:$0xff]
    %v585 = vld [vmem:[#allocation14 + $0xbe8] sm:$0xff]
    %v586 = vld [vmem:[#allocation14 + $0xbf0] sm:$0xff]
    %v587 = vld [vmem:[#allocation14 + $0xbf8] sm:$0xff]
    %v588 = vld [vmem:[#allocation14 + $0xc00] sm:$0xff]
    %v589 = vld [vmem:[#allocation14 + $0xc08] sm:$0xff]
    %v590 = vld [vmem:[#allocation14 + $0xc10] sm:$0xff]
    %v591 = vld [vmem:[#allocation14 + $0xc18] sm:$0xff]
    %v592 = vld [vmem:[#allocation14 + $0xc20] sm:$0xff]
    %v593 = vld [vmem:[#allocation14 + $0xc28] sm:$0xff]
    %v594 = vld [vmem:[#allocation14 + $0xc30] sm:$0xff]
    %v595 = vld [vmem:[#allocation14 + $0xc38] sm:$0xff]
    %v596 = vld [vmem:[#allocation14 + $0xc40] sm:$0xff]
    %v597 = vld [vmem:[#allocation14 + $0xc48] sm:$0xff]
    %v598 = vld [vmem:[#allocation14 + $0xc50] sm:$0xff]
    %v599 = vld [vmem:[#allocation14 + $0xc58] sm:$0xff]
    %v600 = vld [vmem:[#allocation14 + $0xc60] sm:$0xff]
    %v601 = vld [vmem:[#allocation14 + $0xc68] sm:$0xff]
    %v602 = vld [vmem:[#allocation14 + $0xc70] sm:$0xff]
    %v603 = vld [vmem:[#allocation14 + $0xc78] sm:$0xff]
    %v604 = vld [vmem:[#allocation14 + $0xc80] sm:$0xff]
    %v605 = vld [vmem:[#allocation14 + $0xc88] sm:$0xff]
    %v606 = vld [vmem:[#allocation14 + $0xc90] sm:$0xff]
    %v607 = vld [vmem:[#allocation14 + $0xc98] sm:$0xff]
    %v608 = vld [vmem:[#allocation14 + $0xca0] sm:$0xff]
    %v609 = vld [vmem:[#allocation14 + $0xca8] sm:$0xff]
    %v610 = vld [vmem:[#allocation14 + $0xcb0] sm:$0xff]
    %v611 = vld [vmem:[#allocation14 + $0xcb8] sm:$0xff]
    %v612 = vld [vmem:[#allocation14 + $0xcc0] sm:$0xff]
    %v613 = vld [vmem:[#allocation14 + $0xcc8] sm:$0xff]
    %v614 = vld [vmem:[#allocation14 + $0xcd0] sm:$0xff]
    %v615 = vld [vmem:[#allocation14 + $0xcd8] sm:$0xff]
    %v616 = vld [vmem:[#allocation14 + $0xce0] sm:$0xff]
    %v617 = vld [vmem:[#allocation14 + $0xce8] sm:$0xff]
    %v618 = vld [vmem:[#allocation14 + $0xcf0] sm:$0xff]
    %v619 = vld [vmem:[#allocation14 + $0xcf8] sm:$0xff]
    %v620 = vld [vmem:[#allocation14 + $0xd00] sm:$0xff]
    %v621 = vld [vmem:[#allocation14 + $0xd08] sm:$0xff]
    %v622 = vld [vmem:[#allocation14 + $0xd10] sm:$0xff]
    %v623 = vld [vmem:[#allocation14 + $0xd18] sm:$0xff]
    %v624 = vld [vmem:[#allocation14 + $0xd20] sm:$0xff]
    %v625 = vld [vmem:[#allocation14 + $0xd28] sm:$0xff]
    %v626 = vld [vmem:[#allocation14 + $0xd30] sm:$0xff]
    %v627 = vld [vmem:[#allocation14 + $0xd38] sm:$0xff]
    %v628 = vld [vmem:[#allocation14 + $0xd40] sm:$0xff]
    %v629 = vld [vmem:[#allocation14 + $0xd48] sm:$0xff]
    %v630 = vld [vmem:[#allocation14 + $0xd50] sm:$0xff]
    %v631 = vld [vmem:[#allocation14 + $0xd58] sm:$0xff]
    %v632 = vld [vmem:[#allocation14 + $0xd60] sm:$0xff]
    %v633 = vld [vmem:[#allocation14 + $0xd68] sm:$0xff]
    %v634 = vld [vmem:[#allocation14 + $0xd70] sm:$0xff]
    %v635 = vld [vmem:[#allocation14 + $0xd78] sm:$0xff]
    %v636 = vld [vmem:[#allocation14 + $0xd80] sm:$0xff]
    %v637 = vld [vmem:[#allocation14 + $0xd88] sm:$0xff]
    %v638 = vld [vmem:[#allocation14 + $0xd90] sm:$0xff]
    %v639 = vld [vmem:[#allocation14 + $0xd98] sm:$0xff]
    %v640 = vld [vmem:[#allocation14 + $0xda0] sm:$0xff]
    %v641 = vld [vmem:[#allocation14 + $0xda8] sm:$0xff]
    %v642 = vld [vmem:[#allocation14 + $0xdb0] sm:$0xff]
    %v643 = vld [vmem:[#allocation14 + $0xdb8] sm:$0xff]
    %v644 = vld [vmem:[#allocation14 + $0xdc0] sm:$0xff]
    %v645 = vld [vmem:[#allocation14 + $0xdc8] sm:$0xff]
    %v646 = vld [vmem:[#allocation14 + $0xdd0] sm:$0xff]
    %v647 = vld [vmem:[#allocation14 + $0xdd8] sm:$0xff]
    %v648 = vld [vmem:[#allocation14 + $0xde0] sm:$0xff]
    %v649 = vld [vmem:[#allocation14 + $0xde8] sm:$0xff]
    %v650 = vld [vmem:[#allocation14 + $0xdf0] sm:$0xff]
    %v651 = vld [vmem:[#allocation14 + $0xdf8] sm:$0xff]
    %v652 = vld [vmem:[#allocation14 + $0xe00] sm:$0xff]
    %v653 = vld [vmem:[#allocation14 + $0xe08] sm:$0xff]
    %v654 = vld [vmem:[#allocation14 + $0xe10] sm:$0xff]
    %v655 = vld [vmem:[#allocation14 + $0xe18] sm:$0xff]
    %v656 = vld [vmem:[#allocation14 + $0xe20] sm:$0xff]
    %v657 = vld [vmem:[#allocation14 + $0xe28] sm:$0xff]
    %v658 = vld [vmem:[#allocation14 + $0xe30] sm:$0xff]
    %v659 = vld [vmem:[#allocation14 + $0xe38] sm:$0xff]
    %v660 = vld [vmem:[#allocation14 + $0xe40] sm:$0xff]
    %v661 = vld [vmem:[#allocation14 + $0xe48] sm:$0xff]
    %v662 = vld [vmem:[#allocation14 + $0xe50] sm:$0xff]
    %v663 = vld [vmem:[#allocation14 + $0xe58] sm:$0xff]
    %v664 = vld [vmem:[#allocation14 + $0xe60] sm:$0xff]
    %v665 = vld [vmem:[#allocation14 + $0xe68] sm:$0xff]
    %v666 = vld [vmem:[#allocation14 + $0xe70] sm:$0xff]
    %v667 = vld [vmem:[#allocation14 + $0xe78] sm:$0xff]
    %v668 = vld [vmem:[#allocation14 + $0xe80] sm:$0xff]
    %v669 = vld [vmem:[#allocation14 + $0xe88] sm:$0xff]
    %v670 = vld [vmem:[#allocation14 + $0xe90] sm:$0xff]
    %v671 = vld [vmem:[#allocation14 + $0xe98] sm:$0xff]
    %v672 = vld [vmem:[#allocation14 + $0xea0] sm:$0xff]
    %v673 = vld [vmem:[#allocation14 + $0xea8] sm:$0xff]
    %v674 = vld [vmem:[#allocation14 + $0xeb0] sm:$0xff]
    %v675 = vld [vmem:[#allocation14 + $0xeb8] sm:$0xff]
    %v676 = vld [vmem:[#allocation14 + $0xec0] sm:$0xff]
    %v677 = vld [vmem:[#allocation14 + $0xec8] sm:$0xff]
    %v678 = vld [vmem:[#allocation14 + $0xed0] sm:$0xff]
    %v679 = vld [vmem:[#allocation14 + $0xed8] sm:$0xff]
    %v680 = vld [vmem:[#allocation14 + $0xee0] sm:$0xff]
    %v681 = vld [vmem:[#allocation14 + $0xee8] sm:$0xff]
    %v682 = vld [vmem:[#allocation14 + $0xef0] sm:$0xff]
    %v683 = vld [vmem:[#allocation14 + $0xef8] sm:$0xff]
    %v684 = vld [vmem:[#allocation14 + $0xf00] sm:$0xff]
    %v685 = vld [vmem:[#allocation14 + $0xf08] sm:$0xff]
    %v686 = vld [vmem:[#allocation14 + $0xf10] sm:$0xff]
    %v687 = vld [vmem:[#allocation14 + $0xf18] sm:$0xff]
    %v688 = vld [vmem:[#allocation14 + $0xf20] sm:$0xff]
    %v689 = vld [vmem:[#allocation14 + $0xf28] sm:$0xff]
    %v690 = vld [vmem:[#allocation14 + $0xf30] sm:$0xff]
    %v691 = vld [vmem:[#allocation14 + $0xf38] sm:$0xff]
    %v692 = vld [vmem:[#allocation14 + $0xf40] sm:$0xff]
    %v693 = vld [vmem:[#allocation14 + $0xf48] sm:$0xff]
    %v694 = vld [vmem:[#allocation14 + $0xf50] sm:$0xff]
    %v695 = vld [vmem:[#allocation14 + $0xf58] sm:$0xff]
    %v696 = vld [vmem:[#allocation14 + $0xf60] sm:$0xff]
    %v697 = vld [vmem:[#allocation14 + $0xf68] sm:$0xff]
    %v698 = vld [vmem:[#allocation14 + $0xf70] sm:$0xff]
    %v699 = vld [vmem:[#allocation14 + $0xf78] sm:$0xff]
    %v700 = vld [vmem:[#allocation14 + $0xf80] sm:$0xff]
    %v701 = vld [vmem:[#allocation14 + $0xf88] sm:$0xff]
    %v702 = vld [vmem:[#allocation14 + $0xf90] sm:$0xff]
    %v703 = vld [vmem:[#allocation14 + $0xf98] sm:$0xff]
    %v704 = vld [vmem:[#allocation14 + $0xfa0] sm:$0xff]
    %v705 = vld [vmem:[#allocation14 + $0xfa8] sm:$0xff]
    %v706 = vld [vmem:[#allocation14 + $0xfb0] sm:$0xff]
    %v707 = vld [vmem:[#allocation14 + $0xfb8] sm:$0xff]
    %v708 = vld [vmem:[#allocation14 + $0xfc0] sm:$0xff]
    %v709 = vld [vmem:[#allocation14 + $0xfc8] sm:$0xff]
    %v710 = vld [vmem:[#allocation14 + $0xfd0] sm:$0xff]
    %v711 = vld [vmem:[#allocation14 + $0xfd8] sm:$0xff]
    %v712 = vld [vmem:[#allocation14 + $0xfe0] sm:$0xff]
    %v713 = vld [vmem:[#allocation14 + $0xfe8] sm:$0xff]
    %v714 = vld [vmem:[#allocation14 + $0xff0] sm:$0xff]
    %v715 = vld [vmem:[#allocation14 + $0xff8] sm:$0xff]
    %v716 = vld [vmem:[#allocation14 + $0x1000] sm:$0xff]
    %v717 = vld [vmem:[#allocation14 + $0x1008] sm:$0xff]
    %v718 = vld [vmem:[#allocation14 + $0x1010] sm:$0xff]
    %v719 = vld [vmem:[#allocation14 + $0x1018] sm:$0xff]
    %v720 = vld [vmem:[#allocation14 + $0x1020] sm:$0xff]
    %v721 = vld [vmem:[#allocation14 + $0x1028] sm:$0xff]
    %v722 = vld [vmem:[#allocation14 + $0x1030] sm:$0xff]
    %v723 = vld [vmem:[#allocation14 + $0x1038] sm:$0xff]
    %v724 = vld [vmem:[#allocation14 + $0x1040] sm:$0xff]
    %v725 = vld [vmem:[#allocation14 + $0x1048] sm:$0xff]
    %v726 = vld [vmem:[#allocation14 + $0x1050] sm:$0xff]
    %v727 = vld [vmem:[#allocation14 + $0x1058] sm:$0xff]
    %v728 = vld [vmem:[#allocation14 + $0x1060] sm:$0xff]
    %v729 = vld [vmem:[#allocation14 + $0x1068] sm:$0xff]
    %v730 = vld [vmem:[#allocation14 + $0x1070] sm:$0xff]
    %v731 = vld [vmem:[#allocation14 + $0x1078] sm:$0xff]
    %v732 = vld [vmem:[#allocation14 + $0x1080] sm:$0xff]
    %v733 = vld [vmem:[#allocation14 + $0x1088] sm:$0xff]
    %v734 = vld [vmem:[#allocation14 + $0x1090] sm:$0xff]
    %v735 = vld [vmem:[#allocation14 + $0x1098] sm:$0xff]
    %v736 = vld [vmem:[#allocation14 + $0x10a0] sm:$0xff]
    %v737 = vld [vmem:[#allocation14 + $0x10a8] sm:$0xff]
    %v738 = vld [vmem:[#allocation14 + $0x10b0] sm:$0xff]
    %v739 = vld [vmem:[#allocation14 + $0x10b8] sm:$0xff]
    %v740 = vld [vmem:[#allocation14 + $0x10c0] sm:$0xff]
    %v741 = vld [vmem:[#allocation14 + $0x10c8] sm:$0xff]
    %v742 = vld [vmem:[#allocation14 + $0x10d0] sm:$0xff]
    %v743 = vld [vmem:[#allocation14 + $0x10d8] sm:$0xff]
    %v744 = vld [vmem:[#allocation14 + $0x10e0] sm:$0xff]
    %v745 = vld [vmem:[#allocation14 + $0x10e8] sm:$0xff]
    %v746 = vld [vmem:[#allocation14 + $0x10f0] sm:$0xff]
    %v747 = vld [vmem:[#allocation14 + $0x10f8] sm:$0xff]
    %v748 = vld [vmem:[#allocation14 + $0x1100] sm:$0xff]
    %v749 = vld [vmem:[#allocation14 + $0x1108] sm:$0xff]
    %v750 = vld [vmem:[#allocation14 + $0x1110] sm:$0xff]
    %v751 = vld [vmem:[#allocation14 + $0x1118] sm:$0xff]
    %v752 = vld [vmem:[#allocation14 + $0x1120] sm:$0xff]
    %v753 = vld [vmem:[#allocation14 + $0x1128] sm:$0xff]
    %v754 = vld [vmem:[#allocation14 + $0x1130] sm:$0xff]
    %v755 = vld [vmem:[#allocation14 + $0x1138] sm:$0xff]
    %v756 = vld [vmem:[#allocation14 + $0x1140] sm:$0xff]
    %v757 = vld [vmem:[#allocation14 + $0x1148] sm:$0xff]
    %v758 = vld [vmem:[#allocation14 + $0x1150] sm:$0xff]
    %v759 = vld [vmem:[#allocation14 + $0x1158] sm:$0xff]
    %v760 = vld [vmem:[#allocation14 + $0x1160] sm:$0xff]
    %v761 = vld [vmem:[#allocation14 + $0x1168] sm:$0xff]
    %v762 = vld [vmem:[#allocation14 + $0x1170] sm:$0xff]
    %v763 = vld [vmem:[#allocation14 + $0x1178] sm:$0xff]
    %v764 = vld [vmem:[#allocation14 + $0x1180] sm:$0xff]
    %v765 = vld [vmem:[#allocation14 + $0x1188] sm:$0xff]
    %v766 = vld [vmem:[#allocation14 + $0x1190] sm:$0xff]
    %v767 = vld [vmem:[#allocation14 + $0x1198] sm:$0xff]
    %v768 = vld [vmem:[#allocation14 + $0x11a0] sm:$0xff]
    %v769 = vld [vmem:[#allocation14 + $0x11a8] sm:$0xff]
    %v770 = vld [vmem:[#allocation14 + $0x11b0] sm:$0xff]
    %v771 = vld [vmem:[#allocation14 + $0x11b8] sm:$0xff]
    %v772 = vld [vmem:[#allocation14 + $0x11c0] sm:$0xff]
    %v773 = vld [vmem:[#allocation14 + $0x11c8] sm:$0xff]
    %v774 = vld [vmem:[#allocation14 + $0x11d0] sm:$0xff]
    %v775 = vld [vmem:[#allocation14 + $0x11d8] sm:$0xff]
    %v776 = vld [vmem:[#allocation14 + $0x11e0] sm:$0xff]
    %v777 = vld [vmem:[#allocation14 + $0x11e8] sm:$0xff]
    %v778 = vld [vmem:[#allocation14 + $0x11f0] sm:$0xff]
    %v779 = vld [vmem:[#allocation14 + $0x11f8] sm:$0xff]
    %v780 = vld [vmem:[#allocation14 + $0x1200] sm:$0xff]
    %v781 = vld [vmem:[#allocation14 + $0x1208] sm:$0xff]
    %v782 = vld [vmem:[#allocation14 + $0x1210] sm:$0xff]
    %v783 = vld [vmem:[#allocation14 + $0x1218] sm:$0xff]
    %v784 = vld [vmem:[#allocation14 + $0x1220] sm:$0xff]
    %v785 = vld [vmem:[#allocation14 + $0x1228] sm:$0xff]
    %v786 = vld [vmem:[#allocation14 + $0x1230] sm:$0xff]
    %v787 = vld [vmem:[#allocation14 + $0x1238] sm:$0xff]
    %v788 = vld [vmem:[#allocation14 + $0x1240] sm:$0xff]
    %v789 = vld [vmem:[#allocation14 + $0x1248] sm:$0xff]
    %v790 = vld [vmem:[#allocation14 + $0x1250] sm:$0xff]
    %v791 = vld [vmem:[#allocation14 + $0x1258] sm:$0xff]
    %v792 = vld [vmem:[#allocation14 + $0x1260] sm:$0xff]
    %v793 = vld [vmem:[#allocation14 + $0x1268] sm:$0xff]
    %v794 = vld [vmem:[#allocation14 + $0x1270] sm:$0xff]
    %v795 = vld [vmem:[#allocation14 + $0x1278] sm:$0xff]
    %v796 = vld [vmem:[#allocation14 + $0x1280] sm:$0xff]
    %v797 = vld [vmem:[#allocation14 + $0x1288] sm:$0xff]
    %v798 = vld [vmem:[#allocation14 + $0x1290] sm:$0xff]
    %v799 = vld [vmem:[#allocation14 + $0x1298] sm:$0xff]
    %v800 = vld [vmem:[#allocation14 + $0x12a0] sm:$0xff]
    %v801 = vld [vmem:[#allocation14 + $0x12a8] sm:$0xff]
    %v802 = vld [vmem:[#allocation14 + $0x12b0] sm:$0xff]
    %v803 = vld [vmem:[#allocation14 + $0x12b8] sm:$0xff]
    %v804 = vld [vmem:[#allocation14 + $0x12c0] sm:$0xff]
    %v805 = vld [vmem:[#allocation14 + $0x12c8] sm:$0xff]
    %v806 = vld [vmem:[#allocation14 + $0x12d0] sm:$0xff]
    %v807 = vld [vmem:[#allocation14 + $0x12d8] sm:$0xff]
    %v808 = vld [vmem:[#allocation14 + $0x12e0] sm:$0xff]
    %v809 = vld [vmem:[#allocation14 + $0x12e8] sm:$0xff]
    %v810 = vld [vmem:[#allocation14 + $0x12f0] sm:$0xff]
    %v811 = vld [vmem:[#allocation14 + $0x12f8] sm:$0xff]
    %v812 = vld [vmem:[#allocation14 + $0x1300] sm:$0xff]
    %v813 = vld [vmem:[#allocation14 + $0x1308] sm:$0xff]
    %v814 = vld [vmem:[#allocation14 + $0x1310] sm:$0xff]
    %v815 = vld [vmem:[#allocation14 + $0x1318] sm:$0xff]
    %v816 = vld [vmem:[#allocation14 + $0x1320] sm:$0xff]
    %v817 = vld [vmem:[#allocation14 + $0x1328] sm:$0xff]
    %v818 = vld [vmem:[#allocation14 + $0x1330] sm:$0xff]
    %v819 = vld [vmem:[#allocation14 + $0x1338] sm:$0xff]
    %v820 = vld [vmem:[#allocation14 + $0x1340] sm:$0xff]
    %v821 = vld [vmem:[#allocation14 + $0x1348] sm:$0xff]
    %v822 = vld [vmem:[#allocation14 + $0x1350] sm:$0xff]
    %v823 = vld [vmem:[#allocation14 + $0x1358] sm:$0xff]
    %v824 = vld [vmem:[#allocation14 + $0x1360] sm:$0xff]
    %v825 = vld [vmem:[#allocation14 + $0x1368] sm:$0xff]
    %v826 = vld [vmem:[#allocation14 + $0x1370] sm:$0xff]
    %v827 = vld [vmem:[#allocation14 + $0x1378] sm:$0xff]
    %v828 = vld [vmem:[#allocation14 + $0x1380] sm:$0xff]
    %v829 = vld [vmem:[#allocation14 + $0x1388] sm:$0xff]
    %v830 = vld [vmem:[#allocation14 + $0x1390] sm:$0xff]
    %v831 = vld [vmem:[#allocation14 + $0x1398] sm:$0xff]
    %v832 = vld [vmem:[#allocation14 + $0x13a0] sm:$0xff]
    %v833 = vld [vmem:[#allocation14 + $0x13a8] sm:$0xff]
    %v834 = vld [vmem:[#allocation14 + $0x13b0] sm:$0xff]
    %v835 = vld [vmem:[#allocation14 + $0x13b8] sm:$0xff]
    %v836 = vld [vmem:[#allocation14 + $0x13c0] sm:$0xff]
    %v837 = vld [vmem:[#allocation14 + $0x13c8] sm:$0xff]
    %v838 = vld [vmem:[#allocation14 + $0x13d0] sm:$0xff]
    %v839 = vld [vmem:[#allocation14 + $0x13d8] sm:$0xff]
    %v840 = vld [vmem:[#allocation14 + $0x13e0] sm:$0xff]
    %v841 = vld [vmem:[#allocation14 + $0x13e8] sm:$0xff]
    %v842 = vld [vmem:[#allocation14 + $0x13f0] sm:$0xff]
    %v843 = vld [vmem:[#allocation14 + $0x13f8] sm:$0xff]
    %v844 = vld [vmem:[#allocation16 + $0x7] sm:$0xff]
    %v846 = vperm.slane %v844, 0
    %v847 = vperm.slane %v844, 1
    %v848 = vperm.slane %v844, 2
    %v849 = vperm.slane %v844, 3
    %v850 = vperm.slane %v844, 4
    %v851 = vperm.slane %v844, 5
    %v852 = vperm.slane %v844, 6
    %v853 = vperm.slane %v844, 7
    %v1502 = vunpack.c.l.b16 %v204
    %v1503 = vunpack.c.h.b16 %v204
    %v1504 = vunpack.c.l.b16 %v205
    %v1505 = vunpack.c.h.b16 %v205
    %v1506 = vunpack.c.l.b16 %v206
    %v1507 = vunpack.c.h.b16 %v206
    %v1508 = vunpack.c.l.b16 %v207
    %v1509 = vunpack.c.h.b16 %v207
    %v1510 = vunpack.c.l.b16 %v208
    %v1511 = vunpack.c.h.b16 %v208
    %v1512 = vunpack.c.l.b16 %v209
    %v1513 = vunpack.c.h.b16 %v209
    %v1514 = vunpack.c.l.b16 %v210
    %v1515 = vunpack.c.h.b16 %v210
    %v1516 = vunpack.c.l.b16 %v211
    %v1517 = vunpack.c.h.b16 %v211
    %v1518 = vunpack.c.l.b16 %v212
    %v1519 = vunpack.c.h.b16 %v212
    %v1520 = vunpack.c.l.b16 %v213
    %v1521 = vunpack.c.h.b16 %v213
    %v1522 = vunpack.c.l.b16 %v214
    %v1523 = vunpack.c.h.b16 %v214
    %v1524 = vunpack.c.l.b16 %v215
    %v1525 = vunpack.c.h.b16 %v215
    %v1526 = vunpack.c.l.b16 %v216
    %v1527 = vunpack.c.h.b16 %v216
    %v1528 = vunpack.c.l.b16 %v217
    %v1529 = vunpack.c.h.b16 %v217
    %v1530 = vunpack.c.l.b16 %v218
    %v1531 = vunpack.c.h.b16 %v218
    %v1532 = vunpack.c.l.b16 %v219
    %v1533 = vunpack.c.h.b16 %v219
    %v1534 = vunpack.c.l.b16 %v220
    %v1535 = vunpack.c.h.b16 %v220
    %v1536 = vunpack.c.l.b16 %v221
    %v1537 = vunpack.c.h.b16 %v221
    %v1538 = vunpack.c.l.b16 %v222
    %v1539 = vunpack.c.h.b16 %v222
    %v1540 = vunpack.c.l.b16 %v223
    %v1541 = vunpack.c.h.b16 %v223
    %v1542 = vunpack.c.l.b16 %v224
    %v1543 = vunpack.c.h.b16 %v224
    %v1544 = vunpack.c.l.b16 %v225
    %v1545 = vunpack.c.h.b16 %v225
    %v1546 = vunpack.c.l.b16 %v226
    %v1547 = vunpack.c.h.b16 %v226
    %v1548 = vunpack.c.l.b16 %v227
    %v1549 = vunpack.c.h.b16 %v227
    %v1550 = vunpack.c.l.b16 %v228
    %v1551 = vunpack.c.h.b16 %v228
    %v1552 = vunpack.c.l.b16 %v229
    %v1553 = vunpack.c.h.b16 %v229
    %v1554 = vunpack.c.l.b16 %v230
    %v1555 = vunpack.c.h.b16 %v230
    %v1556 = vunpack.c.l.b16 %v231
    %v1557 = vunpack.c.h.b16 %v231
    %v1558 = vunpack.c.l.b16 %v232
    %v1559 = vunpack.c.h.b16 %v232
    %v1560 = vunpack.c.l.b16 %v233
    %v1561 = vunpack.c.h.b16 %v233
    %v1562 = vunpack.c.l.b16 %v234
    %v1563 = vunpack.c.h.b16 %v234
    %v1564 = vunpack.c.l.b16 %v235
    %v1565 = vunpack.c.h.b16 %v235
    %v1566 = vunpack.c.l.b16 %v236
    %v1567 = vunpack.c.h.b16 %v236
    %v1568 = vunpack.c.l.b16 %v237
    %v1569 = vunpack.c.h.b16 %v237
    %v1570 = vunpack.c.l.b16 %v238
    %v1571 = vunpack.c.h.b16 %v238
    %v1572 = vunpack.c.l.b16 %v239
    %v1573 = vunpack.c.h.b16 %v239
    %v1574 = vunpack.c.l.b16 %v240
    %v1575 = vunpack.c.h.b16 %v240
    %v1576 = vunpack.c.l.b16 %v241
    %v1577 = vunpack.c.h.b16 %v241
    %v1578 = vunpack.c.l.b16 %v242
    %v1579 = vunpack.c.h.b16 %v242
    %v1580 = vunpack.c.l.b16 %v243
    %v1581 = vunpack.c.h.b16 %v243
    %v1582 = vunpack.c.l.b16 %v244
    %v1583 = vunpack.c.h.b16 %v244
    %v1584 = vunpack.c.l.b16 %v245
    %v1585 = vunpack.c.h.b16 %v245
    %v1586 = vunpack.c.l.b16 %v246
    %v1587 = vunpack.c.h.b16 %v246
    %v1588 = vunpack.c.l.b16 %v247
    %v1589 = vunpack.c.h.b16 %v247
    %v1590 = vunpack.c.l.b16 %v248
    %v1591 = vunpack.c.h.b16 %v248
    %v1592 = vunpack.c.l.b16 %v249
    %v1593 = vunpack.c.h.b16 %v249
    %v1594 = vunpack.c.l.b16 %v250
    %v1595 = vunpack.c.h.b16 %v250
    %v1596 = vunpack.c.l.b16 %v251
    %v1597 = vunpack.c.h.b16 %v251
    %v1598 = vunpack.c.l.b16 %v252
    %v1599 = vunpack.c.h.b16 %v252
    %v1600 = vunpack.c.l.b16 %v253
    %v1601 = vunpack.c.h.b16 %v253
    %v1602 = vunpack.c.l.b16 %v254
    %v1603 = vunpack.c.h.b16 %v254
    %v1604 = vunpack.c.l.b16 %v255
    %v1605 = vunpack.c.h.b16 %v255
    %v1606 = vunpack.c.l.b16 %v256
    %v1607 = vunpack.c.h.b16 %v256
    %v1608 = vunpack.c.l.b16 %v257
    %v1609 = vunpack.c.h.b16 %v257
    %v1610 = vunpack.c.l.b16 %v258
    %v1611 = vunpack.c.h.b16 %v258
    %v1612 = vunpack.c.l.b16 %v259
    %v1613 = vunpack.c.h.b16 %v259
    %v1614 = vunpack.c.l.b16 %v260
    %v1615 = vunpack.c.h.b16 %v260
    %v1616 = vunpack.c.l.b16 %v261
    %v1617 = vunpack.c.h.b16 %v261
    %v1618 = vunpack.c.l.b16 %v262
    %v1619 = vunpack.c.h.b16 %v262
    %v1620 = vunpack.c.l.b16 %v263
    %v1621 = vunpack.c.h.b16 %v263
    %v1622 = vunpack.c.l.b16 %v264
    %v1623 = vunpack.c.h.b16 %v264
    %v1624 = vunpack.c.l.b16 %v265
    %v1625 = vunpack.c.h.b16 %v265
    %v1626 = vunpack.c.l.b16 %v266
    %v1627 = vunpack.c.h.b16 %v266
    %v1628 = vunpack.c.l.b16 %v267
    %v1629 = vunpack.c.h.b16 %v267
    %v1630 = vunpack.c.l.b16 %v268
    %v1631 = vunpack.c.h.b16 %v268
    %v1632 = vunpack.c.l.b16 %v269
    %v1633 = vunpack.c.h.b16 %v269
    %v1634 = vunpack.c.l.b16 %v270
    %v1635 = vunpack.c.h.b16 %v270
    %v1636 = vunpack.c.l.b16 %v271
    %v1637 = vunpack.c.h.b16 %v271
    %v1638 = vunpack.c.l.b16 %v272
    %v1639 = vunpack.c.h.b16 %v272
    %v1640 = vunpack.c.l.b16 %v273
    %v1641 = vunpack.c.h.b16 %v273
    %v1642 = vunpack.c.l.b16 %v274
    %v1643 = vunpack.c.h.b16 %v274
    %v1644 = vunpack.c.l.b16 %v275
    %v1645 = vunpack.c.h.b16 %v275
    %v1646 = vunpack.c.l.b16 %v276
    %v1647 = vunpack.c.h.b16 %v276
    %v1648 = vunpack.c.l.b16 %v277
    %v1649 = vunpack.c.h.b16 %v277
    %v1650 = vunpack.c.l.b16 %v278
    %v1651 = vunpack.c.h.b16 %v278
    %v1652 = vunpack.c.l.b16 %v279
    %v1653 = vunpack.c.h.b16 %v279
    %v1654 = vunpack.c.l.b16 %v280
    %v1655 = vunpack.c.h.b16 %v280
    %v1656 = vunpack.c.l.b16 %v281
    %v1657 = vunpack.c.h.b16 %v281
    %v1658 = vunpack.c.l.b16 %v282
    %v1659 = vunpack.c.h.b16 %v282
    %v1660 = vunpack.c.l.b16 %v283
    %v1661 = vunpack.c.h.b16 %v283
    %v1662 = vunpack.c.l.b16 %v284
    %v1663 = vunpack.c.h.b16 %v284
    %v1664 = vunpack.c.l.b16 %v285
    %v1665 = vunpack.c.h.b16 %v285
    %v1666 = vunpack.c.l.b16 %v286
    %v1667 = vunpack.c.h.b16 %v286
    %v1668 = vunpack.c.l.b16 %v287
    %v1669 = vunpack.c.h.b16 %v287
    %v1670 = vunpack.c.l.b16 %v288
    %v1671 = vunpack.c.h.b16 %v288
    %v1672 = vunpack.c.l.b16 %v289
    %v1673 = vunpack.c.h.b16 %v289
    %v1674 = vunpack.c.l.b16 %v290
    %v1675 = vunpack.c.h.b16 %v290
    %v1676 = vunpack.c.l.b16 %v291
    %v1677 = vunpack.c.h.b16 %v291
    %v1678 = vunpack.c.l.b16 %v292
    %v1679 = vunpack.c.h.b16 %v292
    %v1680 = vunpack.c.l.b16 %v293
    %v1681 = vunpack.c.h.b16 %v293
    %v1682 = vunpack.c.l.b16 %v294
    %v1683 = vunpack.c.h.b16 %v294
    %v1684 = vunpack.c.l.b16 %v295
    %v1685 = vunpack.c.h.b16 %v295
    %v1686 = vunpack.c.l.b16 %v296
    %v1687 = vunpack.c.h.b16 %v296
    %v1688 = vunpack.c.l.b16 %v297
    %v1689 = vunpack.c.h.b16 %v297
    %v1690 = vunpack.c.l.b16 %v298
    %v1691 = vunpack.c.h.b16 %v298
    %v1692 = vunpack.c.l.b16 %v299
    %v1693 = vunpack.c.h.b16 %v299
    %v1694 = vunpack.c.l.b16 %v300
    %v1695 = vunpack.c.h.b16 %v300
    %v1696 = vunpack.c.l.b16 %v301
    %v1697 = vunpack.c.h.b16 %v301
    %v1698 = vunpack.c.l.b16 %v302
    %v1699 = vunpack.c.h.b16 %v302
    %v1700 = vunpack.c.l.b16 %v303
    %v1701 = vunpack.c.h.b16 %v303
    %v1702 = vunpack.c.l.b16 %v304
    %v1703 = vunpack.c.h.b16 %v304
    %v1704 = vunpack.c.l.b16 %v305
    %v1705 = vunpack.c.h.b16 %v305
    %v1706 = vunpack.c.l.b16 %v306
    %v1707 = vunpack.c.h.b16 %v306
    %v1708 = vunpack.c.l.b16 %v307
    %v1709 = vunpack.c.h.b16 %v307
    %v1710 = vunpack.c.l.b16 %v308
    %v1711 = vunpack.c.h.b16 %v308
    %v1712 = vunpack.c.l.b16 %v309
    %v1713 = vunpack.c.h.b16 %v309
    %v1714 = vunpack.c.l.b16 %v310
    %v1715 = vunpack.c.h.b16 %v310
    %v1716 = vunpack.c.l.b16 %v311
    %v1717 = vunpack.c.h.b16 %v311
    %v1718 = vunpack.c.l.b16 %v312
    %v1719 = vunpack.c.h.b16 %v312
    %v1720 = vunpack.c.l.b16 %v313
    %v1721 = vunpack.c.h.b16 %v313
    %v1722 = vunpack.c.l.b16 %v314
    %v1723 = vunpack.c.h.b16 %v314
    %v1724 = vunpack.c.l.b16 %v315
    %v1725 = vunpack.c.h.b16 %v315
    %v1726 = vunpack.c.l.b16 %v316
    %v1727 = vunpack.c.h.b16 %v316
    %v1728 = vunpack.c.l.b16 %v317
    %v1729 = vunpack.c.h.b16 %v317
    %v1730 = vunpack.c.l.b16 %v318
    %v1731 = vunpack.c.h.b16 %v318
    %v1732 = vunpack.c.l.b16 %v319
    %v1733 = vunpack.c.h.b16 %v319
    %v1734 = vunpack.c.l.b16 %v320
    %v1735 = vunpack.c.h.b16 %v320
    %v1736 = vunpack.c.l.b16 %v321
    %v1737 = vunpack.c.h.b16 %v321
    %v1738 = vunpack.c.l.b16 %v322
    %v1739 = vunpack.c.h.b16 %v322
    %v1740 = vunpack.c.l.b16 %v323
    %v1741 = vunpack.c.h.b16 %v323
    %v1742 = vunpack.c.l.b16 %v324
    %v1743 = vunpack.c.h.b16 %v324
    %v1744 = vunpack.c.l.b16 %v325
    %v1745 = vunpack.c.h.b16 %v325
    %v1746 = vunpack.c.l.b16 %v326
    %v1747 = vunpack.c.h.b16 %v326
    %v1748 = vunpack.c.l.b16 %v327
    %v1749 = vunpack.c.h.b16 %v327
    %v1750 = vunpack.c.l.b16 %v328
    %v1751 = vunpack.c.h.b16 %v328
    %v1752 = vunpack.c.l.b16 %v329
    %v1753 = vunpack.c.h.b16 %v329
    %v1754 = vunpack.c.l.b16 %v330
    %v1755 = vunpack.c.h.b16 %v330
    %v1756 = vunpack.c.l.b16 %v331
    %v1757 = vunpack.c.h.b16 %v331
    %v1758 = vunpack.c.l.b16 %v332
    %v1759 = vunpack.c.h.b16 %v332
    %v1760 = vunpack.c.l.b16 %v333
    %v1761 = vunpack.c.h.b16 %v333
    %v1762 = vunpack.c.l.b16 %v334
    %v1763 = vunpack.c.h.b16 %v334
    %v1764 = vunpack.c.l.b16 %v335
    %v1765 = vunpack.c.h.b16 %v335
    %v1766 = vunpack.c.l.b16 %v336
    %v1767 = vunpack.c.h.b16 %v336
    %v1768 = vunpack.c.l.b16 %v337
    %v1769 = vunpack.c.h.b16 %v337
    %v1770 = vunpack.c.l.b16 %v338
    %v1771 = vunpack.c.h.b16 %v338
    %v1772 = vunpack.c.l.b16 %v339
    %v1773 = vunpack.c.h.b16 %v339
    %v1774 = vunpack.c.l.b16 %v340
    %v1775 = vunpack.c.h.b16 %v340
    %v1776 = vunpack.c.l.b16 %v341
    %v1777 = vunpack.c.h.b16 %v341
    %v1778 = vunpack.c.l.b16 %v342
    %v1779 = vunpack.c.h.b16 %v342
    %v1780 = vunpack.c.l.b16 %v343
    %v1781 = vunpack.c.h.b16 %v343
    %v1782 = vunpack.c.l.b16 %v344
    %v1783 = vunpack.c.h.b16 %v344
    %v1784 = vunpack.c.l.b16 %v345
    %v1785 = vunpack.c.h.b16 %v345
    %v1786 = vunpack.c.l.b16 %v346
    %v1787 = vunpack.c.h.b16 %v346
    %v1788 = vunpack.c.l.b16 %v347
    %v1789 = vunpack.c.h.b16 %v347
    %v1790 = vunpack.c.l.b16 %v348
    %v1791 = vunpack.c.h.b16 %v348
    %v1792 = vunpack.c.l.b16 %v349
    %v1793 = vunpack.c.h.b16 %v349
    %v1794 = vunpack.c.l.b16 %v350
    %v1795 = vunpack.c.h.b16 %v350
    %v1796 = vunpack.c.l.b16 %v351
    %v1797 = vunpack.c.h.b16 %v351
    %v1798 = vunpack.c.l.b16 %v352
    %v1799 = vunpack.c.h.b16 %v352
    %v1800 = vunpack.c.l.b16 %v353
    %v1801 = vunpack.c.h.b16 %v353
    %v1802 = vunpack.c.l.b16 %v354
    %v1803 = vunpack.c.h.b16 %v354
    %v1804 = vunpack.c.l.b16 %v355
    %v1805 = vunpack.c.h.b16 %v355
    %v1806 = vunpack.c.l.b16 %v356
    %v1807 = vunpack.c.h.b16 %v356
    %v1808 = vunpack.c.l.b16 %v357
    %v1809 = vunpack.c.h.b16 %v357
    %v1810 = vunpack.c.l.b16 %v358
    %v1811 = vunpack.c.h.b16 %v358
    %v1812 = vunpack.c.l.b16 %v359
    %v1813 = vunpack.c.h.b16 %v359
    %v1814 = vunpack.c.l.b16 %v360
    %v1815 = vunpack.c.h.b16 %v360
    %v1816 = vunpack.c.l.b16 %v361
    %v1817 = vunpack.c.h.b16 %v361
    %v1818 = vunpack.c.l.b16 %v362
    %v1819 = vunpack.c.h.b16 %v362
    %v1820 = vunpack.c.l.b16 %v363
    %v1821 = vunpack.c.h.b16 %v363
    %v1822 = vunpack.c.l.b16 %v364
    %v1823 = vunpack.c.h.b16 %v364
    %v1824 = vunpack.c.l.b16 %v365
    %v1825 = vunpack.c.h.b16 %v365
    %v1826 = vunpack.c.l.b16 %v366
    %v1827 = vunpack.c.h.b16 %v366
    %v1828 = vunpack.c.l.b16 %v367
    %v1829 = vunpack.c.h.b16 %v367
    %v1830 = vunpack.c.l.b16 %v368
    %v1831 = vunpack.c.h.b16 %v368
    %v1832 = vunpack.c.l.b16 %v369
    %v1833 = vunpack.c.h.b16 %v369
    %v1834 = vunpack.c.l.b16 %v370
    %v1835 = vunpack.c.h.b16 %v370
    %v1836 = vunpack.c.l.b16 %v371
    %v1837 = vunpack.c.h.b16 %v371
    %v1838 = vunpack.c.l.b16 %v372
    %v1839 = vunpack.c.h.b16 %v372
    %v1840 = vunpack.c.l.b16 %v373
    %v1841 = vunpack.c.h.b16 %v373
    %v1842 = vunpack.c.l.b16 %v374
    %v1843 = vunpack.c.h.b16 %v374
    %v1844 = vunpack.c.l.b16 %v375
    %v1845 = vunpack.c.h.b16 %v375
    %v1846 = vunpack.c.l.b16 %v376
    %v1847 = vunpack.c.h.b16 %v376
    %v1848 = vunpack.c.l.b16 %v377
    %v1849 = vunpack.c.h.b16 %v377
    %v1850 = vunpack.c.l.b16 %v378
    %v1851 = vunpack.c.h.b16 %v378
    %v1852 = vunpack.c.l.b16 %v379
    %v1853 = vunpack.c.h.b16 %v379
    %v1854 = vunpack.c.l.b16 %v380
    %v1855 = vunpack.c.h.b16 %v380
    %v1856 = vunpack.c.l.b16 %v381
    %v1857 = vunpack.c.h.b16 %v381
    %v1858 = vunpack.c.l.b16 %v382
    %v1859 = vunpack.c.h.b16 %v382
    %v1860 = vunpack.c.l.b16 %v383
    %v1861 = vunpack.c.h.b16 %v383
    %v1862 = vunpack.c.l.b16 %v384
    %v1863 = vunpack.c.h.b16 %v384
    %v1864 = vunpack.c.l.b16 %v385
    %v1865 = vunpack.c.h.b16 %v385
    %v1866 = vunpack.c.l.b16 %v386
    %v1867 = vunpack.c.h.b16 %v386
    %v1868 = vunpack.c.l.b16 %v387
    %v1869 = vunpack.c.h.b16 %v387
    %v1870 = vunpack.c.l.b16 %v388
    %v1871 = vunpack.c.h.b16 %v388
    %v1872 = vunpack.c.l.b16 %v389
    %v1873 = vunpack.c.h.b16 %v389
    %v1874 = vunpack.c.l.b16 %v390
    %v1875 = vunpack.c.h.b16 %v390
    %v1876 = vunpack.c.l.b16 %v391
    %v1877 = vunpack.c.h.b16 %v391
    %v1878 = vunpack.c.l.b16 %v392
    %v1879 = vunpack.c.h.b16 %v392
    %v1880 = vunpack.c.l.b16 %v393
    %v1881 = vunpack.c.h.b16 %v393
    %v1882 = vunpack.c.l.b16 %v394
    %v1883 = vunpack.c.h.b16 %v394
    %v1884 = vunpack.c.l.b16 %v395
    %v1885 = vunpack.c.h.b16 %v395
    %v1886 = vunpack.c.l.b16 %v396
    %v1887 = vunpack.c.h.b16 %v396
    %v1888 = vunpack.c.l.b16 %v397
    %v1889 = vunpack.c.h.b16 %v397
    %v1890 = vunpack.c.l.b16 %v398
    %v1891 = vunpack.c.h.b16 %v398
    %v1892 = vunpack.c.l.b16 %v399
    %v1893 = vunpack.c.h.b16 %v399
    %v1894 = vunpack.c.l.b16 %v400
    %v1895 = vunpack.c.h.b16 %v400
    %v1896 = vunpack.c.l.b16 %v401
    %v1897 = vunpack.c.h.b16 %v401
    %v1898 = vunpack.c.l.b16 %v402
    %v1899 = vunpack.c.h.b16 %v402
    %v1900 = vunpack.c.l.b16 %v403
    %v1901 = vunpack.c.h.b16 %v403
    %v1902 = vunpack.c.l.b16 %v404
    %v1903 = vunpack.c.h.b16 %v404
    %v1904 = vunpack.c.l.b16 %v405
    %v1905 = vunpack.c.h.b16 %v405
    %v1906 = vunpack.c.l.b16 %v406
    %v1907 = vunpack.c.h.b16 %v406
    %v1908 = vunpack.c.l.b16 %v407
    %v1909 = vunpack.c.h.b16 %v407
    %v1910 = vunpack.c.l.b16 %v408
    %v1911 = vunpack.c.h.b16 %v408
    %v1912 = vunpack.c.l.b16 %v409
    %v1913 = vunpack.c.h.b16 %v409
    %v1914 = vunpack.c.l.b16 %v410
    %v1915 = vunpack.c.h.b16 %v410
    %v1916 = vunpack.c.l.b16 %v411
    %v1917 = vunpack.c.h.b16 %v411
    %v1918 = vunpack.c.l.b16 %v412
    %v1919 = vunpack.c.h.b16 %v412
    %v1920 = vunpack.c.l.b16 %v413
    %v1921 = vunpack.c.h.b16 %v413
    %v1922 = vunpack.c.l.b16 %v414
    %v1923 = vunpack.c.h.b16 %v414
    %v1924 = vunpack.c.l.b16 %v415
    %v1925 = vunpack.c.h.b16 %v415
    %v1926 = vunpack.c.l.b16 %v416
    %v1927 = vunpack.c.h.b16 %v416
    %v1928 = vunpack.c.l.b16 %v417
    %v1929 = vunpack.c.h.b16 %v417
    %v1930 = vunpack.c.l.b16 %v418
    %v1931 = vunpack.c.h.b16 %v418
    %v1932 = vunpack.c.l.b16 %v419
    %v1933 = vunpack.c.h.b16 %v419
    %v1934 = vunpack.c.l.b16 %v420
    %v1935 = vunpack.c.h.b16 %v420
    %v1936 = vunpack.c.l.b16 %v421
    %v1937 = vunpack.c.h.b16 %v421
    %v1938 = vunpack.c.l.b16 %v422
    %v1939 = vunpack.c.h.b16 %v422
    %v1940 = vunpack.c.l.b16 %v423
    %v1941 = vunpack.c.h.b16 %v423
    %v1942 = vunpack.c.l.b16 %v424
    %v1943 = vunpack.c.h.b16 %v424
    %v1944 = vunpack.c.l.b16 %v425
    %v1945 = vunpack.c.h.b16 %v425
    %v1946 = vunpack.c.l.b16 %v426
    %v1947 = vunpack.c.h.b16 %v426
    %v1948 = vunpack.c.l.b16 %v427
    %v1949 = vunpack.c.h.b16 %v427
    %v1950 = vunpack.c.l.b16 %v428
    %v1951 = vunpack.c.h.b16 %v428
    %v1952 = vunpack.c.l.b16 %v429
    %v1953 = vunpack.c.h.b16 %v429
    %v1954 = vunpack.c.l.b16 %v430
    %v1955 = vunpack.c.h.b16 %v430
    %v1956 = vunpack.c.l.b16 %v431
    %v1957 = vunpack.c.h.b16 %v431
    %v1958 = vunpack.c.l.b16 %v432
    %v1959 = vunpack.c.h.b16 %v432
    %v1960 = vunpack.c.l.b16 %v433
    %v1961 = vunpack.c.h.b16 %v433
    %v1962 = vunpack.c.l.b16 %v434
    %v1963 = vunpack.c.h.b16 %v434
    %v1964 = vunpack.c.l.b16 %v435
    %v1965 = vunpack.c.h.b16 %v435
    %v1966 = vunpack.c.l.b16 %v436
    %v1967 = vunpack.c.h.b16 %v436
    %v1968 = vunpack.c.l.b16 %v437
    %v1969 = vunpack.c.h.b16 %v437
    %v1970 = vunpack.c.l.b16 %v438
    %v1971 = vunpack.c.h.b16 %v438
    %v1972 = vunpack.c.l.b16 %v439
    %v1973 = vunpack.c.h.b16 %v439
    %v1974 = vunpack.c.l.b16 %v440
    %v1975 = vunpack.c.h.b16 %v440
    %v1976 = vunpack.c.l.b16 %v441
    %v1977 = vunpack.c.h.b16 %v441
    %v1978 = vunpack.c.l.b16 %v442
    %v1979 = vunpack.c.h.b16 %v442
    %v1980 = vunpack.c.l.b16 %v443
    %v1981 = vunpack.c.h.b16 %v443
    %v1982 = vunpack.c.l.b16 %v444
    %v1983 = vunpack.c.h.b16 %v444
    %v1984 = vunpack.c.l.b16 %v445
    %v1985 = vunpack.c.h.b16 %v445
    %v1986 = vunpack.c.l.b16 %v446
    %v1987 = vunpack.c.h.b16 %v446
    %v1988 = vunpack.c.l.b16 %v447
    %v1989 = vunpack.c.h.b16 %v447
    %v1990 = vunpack.c.l.b16 %v448
    %v1991 = vunpack.c.h.b16 %v448
    %v1992 = vunpack.c.l.b16 %v449
    %v1993 = vunpack.c.h.b16 %v449
    %v1994 = vunpack.c.l.b16 %v450
    %v1995 = vunpack.c.h.b16 %v450
    %v1996 = vunpack.c.l.b16 %v451
    %v1997 = vunpack.c.h.b16 %v451
    %v1998 = vunpack.c.l.b16 %v452
    %v1999 = vunpack.c.h.b16 %v452
    %v2000 = vunpack.c.l.b16 %v453
    %v2001 = vunpack.c.h.b16 %v453
    %v2002 = vunpack.c.l.b16 %v454
    %v2003 = vunpack.c.h.b16 %v454
    %v2004 = vunpack.c.l.b16 %v455
    %v2005 = vunpack.c.h.b16 %v455
    %v2006 = vunpack.c.l.b16 %v456
    %v2007 = vunpack.c.h.b16 %v456
    %v2008 = vunpack.c.l.b16 %v457
    %v2009 = vunpack.c.h.b16 %v457
    %v2010 = vunpack.c.l.b16 %v458
    %v2011 = vunpack.c.h.b16 %v458
    %v2012 = vunpack.c.l.b16 %v459
    %v2013 = vunpack.c.h.b16 %v459
    %v2014 = vunpack.c.l.b16 %v460
    %v2015 = vunpack.c.h.b16 %v460
    %v2016 = vunpack.c.l.b16 %v461
    %v2017 = vunpack.c.h.b16 %v461
    %v2018 = vunpack.c.l.b16 %v462
    %v2019 = vunpack.c.h.b16 %v462
    %v2020 = vunpack.c.l.b16 %v463
    %v2021 = vunpack.c.h.b16 %v463
    %v2022 = vunpack.c.l.b16 %v464
    %v2023 = vunpack.c.h.b16 %v464
    %v2024 = vunpack.c.l.b16 %v465
    %v2025 = vunpack.c.h.b16 %v465
    %v2026 = vunpack.c.l.b16 %v466
    %v2027 = vunpack.c.h.b16 %v466
    %v2028 = vunpack.c.l.b16 %v467
    %v2029 = vunpack.c.h.b16 %v467
    %v2030 = vunpack.c.l.b16 %v468
    %v2031 = vunpack.c.h.b16 %v468
    %v2032 = vunpack.c.l.b16 %v469
    %v2033 = vunpack.c.h.b16 %v469
    %v2034 = vunpack.c.l.b16 %v470
    %v2035 = vunpack.c.h.b16 %v470
    %v2036 = vunpack.c.l.b16 %v471
    %v2037 = vunpack.c.h.b16 %v471
    %v2038 = vunpack.c.l.b16 %v472
    %v2039 = vunpack.c.h.b16 %v472
    %v2040 = vunpack.c.l.b16 %v473
    %v2041 = vunpack.c.h.b16 %v473
    %v2042 = vunpack.c.l.b16 %v474
    %v2043 = vunpack.c.h.b16 %v474
    %v2044 = vunpack.c.l.b16 %v475
    %v2045 = vunpack.c.h.b16 %v475
    %v2046 = vunpack.c.l.b16 %v476
    %v2047 = vunpack.c.h.b16 %v476
    %v2048 = vunpack.c.l.b16 %v477
    %v2049 = vunpack.c.h.b16 %v477
    %v2050 = vunpack.c.l.b16 %v478
    %v2051 = vunpack.c.h.b16 %v478
    %v2052 = vunpack.c.l.b16 %v479
    %v2053 = vunpack.c.h.b16 %v479
    %v2054 = vunpack.c.l.b16 %v480
    %v2055 = vunpack.c.h.b16 %v480
    %v2056 = vunpack.c.l.b16 %v481
    %v2057 = vunpack.c.h.b16 %v481
    %v2058 = vunpack.c.l.b16 %v482
    %v2059 = vunpack.c.h.b16 %v482
    %v2060 = vunpack.c.l.b16 %v483
    %v2061 = vunpack.c.h.b16 %v483
    %v2062 = vunpack.c.l.b16 %v484
    %v2063 = vunpack.c.h.b16 %v484
    %v2064 = vunpack.c.l.b16 %v485
    %v2065 = vunpack.c.h.b16 %v485
    %v2066 = vunpack.c.l.b16 %v486
    %v2067 = vunpack.c.h.b16 %v486
    %v2068 = vunpack.c.l.b16 %v487
    %v2069 = vunpack.c.h.b16 %v487
    %v2070 = vunpack.c.l.b16 %v488
    %v2071 = vunpack.c.h.b16 %v488
    %v2072 = vunpack.c.l.b16 %v489
    %v2073 = vunpack.c.h.b16 %v489
    %v2074 = vunpack.c.l.b16 %v490
    %v2075 = vunpack.c.h.b16 %v490
    %v2076 = vunpack.c.l.b16 %v491
    %v2077 = vunpack.c.h.b16 %v491
    %v2078 = vunpack.c.l.b16 %v492
    %v2079 = vunpack.c.h.b16 %v492
    %v2080 = vunpack.c.l.b16 %v493
    %v2081 = vunpack.c.h.b16 %v493
    %v2082 = vunpack.c.l.b16 %v494
    %v2083 = vunpack.c.h.b16 %v494
    %v2084 = vunpack.c.l.b16 %v495
    %v2085 = vunpack.c.h.b16 %v495
    %v2086 = vunpack.c.l.b16 %v496
    %v2087 = vunpack.c.h.b16 %v496
    %v2088 = vunpack.c.l.b16 %v497
    %v2089 = vunpack.c.h.b16 %v497
    %v2090 = vunpack.c.l.b16 %v498
    %v2091 = vunpack.c.h.b16 %v498
    %v2092 = vunpack.c.l.b16 %v499
    %v2093 = vunpack.c.h.b16 %v499
    %v2094 = vunpack.c.l.b16 %v500
    %v2095 = vunpack.c.h.b16 %v500
    %v2096 = vunpack.c.l.b16 %v501
    %v2097 = vunpack.c.h.b16 %v501
    %v2098 = vunpack.c.l.b16 %v502
    %v2099 = vunpack.c.h.b16 %v502
    %v2100 = vunpack.c.l.b16 %v503
    %v2101 = vunpack.c.h.b16 %v503
    %v2102 = vunpack.c.l.b16 %v504
    %v2103 = vunpack.c.h.b16 %v504
    %v2104 = vunpack.c.l.b16 %v505
    %v2105 = vunpack.c.h.b16 %v505
    %v2106 = vunpack.c.l.b16 %v506
    %v2107 = vunpack.c.h.b16 %v506
    %v2108 = vunpack.c.l.b16 %v507
    %v2109 = vunpack.c.h.b16 %v507
    %v2110 = vunpack.c.l.b16 %v508
    %v2111 = vunpack.c.h.b16 %v508
    %v2112 = vunpack.c.l.b16 %v509
    %v2113 = vunpack.c.h.b16 %v509
    %v2114 = vunpack.c.l.b16 %v510
    %v2115 = vunpack.c.h.b16 %v510
    %v2116 = vunpack.c.l.b16 %v511
    %v2117 = vunpack.c.h.b16 %v511
    %v2118 = vunpack.c.l.b16 %v512
    %v2119 = vunpack.c.h.b16 %v512
    %v2120 = vunpack.c.l.b16 %v513
    %v2121 = vunpack.c.h.b16 %v513
    %v2122 = vunpack.c.l.b16 %v514
    %v2123 = vunpack.c.h.b16 %v514
    %v2124 = vunpack.c.l.b16 %v515
    %v2125 = vunpack.c.h.b16 %v515
    %v2126 = vunpack.c.l.b16 %v516
    %v2127 = vunpack.c.h.b16 %v516
    %v2128 = vunpack.c.l.b16 %v517
    %v2129 = vunpack.c.h.b16 %v517
    %v2130 = vunpack.c.l.b16 %v518
    %v2131 = vunpack.c.h.b16 %v518
    %v2132 = vunpack.c.l.b16 %v519
    %v2133 = vunpack.c.h.b16 %v519
    %v2134 = vunpack.c.l.b16 %v520
    %v2135 = vunpack.c.h.b16 %v520
    %v2136 = vunpack.c.l.b16 %v521
    %v2137 = vunpack.c.h.b16 %v521
    %v2138 = vunpack.c.l.b16 %v522
    %v2139 = vunpack.c.h.b16 %v522
    %v2140 = vunpack.c.l.b16 %v523
    %v2141 = vunpack.c.h.b16 %v523
    %v2142 = vunpack.c.l.b16 %v524
    %v2143 = vunpack.c.h.b16 %v524
    %v2144 = vunpack.c.l.b16 %v525
    %v2145 = vunpack.c.h.b16 %v525
    %v2146 = vunpack.c.l.b16 %v526
    %v2147 = vunpack.c.h.b16 %v526
    %v2148 = vunpack.c.l.b16 %v527
    %v2149 = vunpack.c.h.b16 %v527
    %v2150 = vunpack.c.l.b16 %v528
    %v2151 = vunpack.c.h.b16 %v528
    %v2152 = vunpack.c.l.b16 %v529
    %v2153 = vunpack.c.h.b16 %v529
    %v2154 = vunpack.c.l.b16 %v530
    %v2155 = vunpack.c.h.b16 %v530
    %v2156 = vunpack.c.l.b16 %v531
    %v2157 = vunpack.c.h.b16 %v531
    %v2158 = vunpack.c.l.b16 %v532
    %v2159 = vunpack.c.h.b16 %v532
    %v2160 = vunpack.c.l.b16 %v533
    %v2161 = vunpack.c.h.b16 %v533
    %v2162 = vunpack.c.l.b16 %v534
    %v2163 = vunpack.c.h.b16 %v534
    %v2164 = vunpack.c.l.b16 %v535
    %v2165 = vunpack.c.h.b16 %v535
    %v2166 = vunpack.c.l.b16 %v536
    %v2167 = vunpack.c.h.b16 %v536
    %v2168 = vunpack.c.l.b16 %v537
    %v2169 = vunpack.c.h.b16 %v537
    %v2170 = vunpack.c.l.b16 %v538
    %v2171 = vunpack.c.h.b16 %v538
    %v2172 = vunpack.c.l.b16 %v539
    %v2173 = vunpack.c.h.b16 %v539
    %v2174 = vunpack.c.l.b16 %v540
    %v2175 = vunpack.c.h.b16 %v540
    %v2176 = vunpack.c.l.b16 %v541
    %v2177 = vunpack.c.h.b16 %v541
    %v2178 = vunpack.c.l.b16 %v542
    %v2179 = vunpack.c.h.b16 %v542
    %v2180 = vunpack.c.l.b16 %v543
    %v2181 = vunpack.c.h.b16 %v543
    %v2182 = vunpack.c.l.b16 %v544
    %v2183 = vunpack.c.h.b16 %v544
    %v2184 = vunpack.c.l.b16 %v545
    %v2185 = vunpack.c.h.b16 %v545
    %v2186 = vunpack.c.l.b16 %v546
    %v2187 = vunpack.c.h.b16 %v546
    %v2188 = vunpack.c.l.b16 %v547
    %v2189 = vunpack.c.h.b16 %v547
    %v2190 = vunpack.c.l.b16 %v548
    %v2191 = vunpack.c.h.b16 %v548
    %v2192 = vunpack.c.l.b16 %v549
    %v2193 = vunpack.c.h.b16 %v549
    %v2194 = vunpack.c.l.b16 %v550
    %v2195 = vunpack.c.h.b16 %v550
    %v2196 = vunpack.c.l.b16 %v551
    %v2197 = vunpack.c.h.b16 %v551
    %v2198 = vunpack.c.l.b16 %v552
    %v2199 = vunpack.c.h.b16 %v552
    %v2200 = vunpack.c.l.b16 %v553
    %v2201 = vunpack.c.h.b16 %v553
    %v2202 = vunpack.c.l.b16 %v554
    %v2203 = vunpack.c.h.b16 %v554
    %v2204 = vunpack.c.l.b16 %v555
    %v2205 = vunpack.c.h.b16 %v555
    %v2206 = vunpack.c.l.b16 %v556
    %v2207 = vunpack.c.h.b16 %v556
    %v2208 = vunpack.c.l.b16 %v557
    %v2209 = vunpack.c.h.b16 %v557
    %v2210 = vunpack.c.l.b16 %v558
    %v2211 = vunpack.c.h.b16 %v558
    %v2212 = vunpack.c.l.b16 %v559
    %v2213 = vunpack.c.h.b16 %v559
    %v2214 = vunpack.c.l.b16 %v560
    %v2215 = vunpack.c.h.b16 %v560
    %v2216 = vunpack.c.l.b16 %v561
    %v2217 = vunpack.c.h.b16 %v561
    %v2218 = vunpack.c.l.b16 %v562
    %v2219 = vunpack.c.h.b16 %v562
    %v2220 = vunpack.c.l.b16 %v563
    %v2221 = vunpack.c.h.b16 %v563
    %v2222 = vunpack.c.l.b16 %v564
    %v2223 = vunpack.c.h.b16 %v564
    %v2224 = vunpack.c.l.b16 %v565
    %v2225 = vunpack.c.h.b16 %v565
    %v2226 = vunpack.c.l.b16 %v566
    %v2227 = vunpack.c.h.b16 %v566
    %v2228 = vunpack.c.l.b16 %v567
    %v2229 = vunpack.c.h.b16 %v567
    %v2230 = vunpack.c.l.b16 %v568
    %v2231 = vunpack.c.h.b16 %v568
    %v2232 = vunpack.c.l.b16 %v569
    %v2233 = vunpack.c.h.b16 %v569
    %v2234 = vunpack.c.l.b16 %v570
    %v2235 = vunpack.c.h.b16 %v570
    %v2236 = vunpack.c.l.b16 %v571
    %v2237 = vunpack.c.h.b16 %v571
    %v2238 = vunpack.c.l.b16 %v572
    %v2239 = vunpack.c.h.b16 %v572
    %v2240 = vunpack.c.l.b16 %v573
    %v2241 = vunpack.c.h.b16 %v573
    %v2242 = vunpack.c.l.b16 %v574
    %v2243 = vunpack.c.h.b16 %v574
    %v2244 = vunpack.c.l.b16 %v575
    %v2245 = vunpack.c.h.b16 %v575
    %v2246 = vunpack.c.l.b16 %v576
    %v2247 = vunpack.c.h.b16 %v576
    %v2248 = vunpack.c.l.b16 %v577
    %v2249 = vunpack.c.h.b16 %v577
    %v2250 = vunpack.c.l.b16 %v578
    %v2251 = vunpack.c.h.b16 %v578
    %v2252 = vunpack.c.l.b16 %v579
    %v2253 = vunpack.c.h.b16 %v579
    %v2254 = vunpack.c.l.b16 %v580
    %v2255 = vunpack.c.h.b16 %v580
    %v2256 = vunpack.c.l.b16 %v581
    %v2257 = vunpack.c.h.b16 %v581
    %v2258 = vunpack.c.l.b16 %v582
    %v2259 = vunpack.c.h.b16 %v582
    %v2260 = vunpack.c.l.b16 %v583
    %v2261 = vunpack.c.h.b16 %v583
    %v2262 = vunpack.c.l.b16 %v584
    %v2263 = vunpack.c.h.b16 %v584
    %v2264 = vunpack.c.l.b16 %v585
    %v2265 = vunpack.c.h.b16 %v585
    %v2266 = vunpack.c.l.b16 %v586
    %v2267 = vunpack.c.h.b16 %v586
    %v2268 = vunpack.c.l.b16 %v587
    %v2269 = vunpack.c.h.b16 %v587
    %v2270 = vunpack.c.l.b16 %v588
    %v2271 = vunpack.c.h.b16 %v588
    %v2272 = vunpack.c.l.b16 %v589
    %v2273 = vunpack.c.h.b16 %v589
    %v2274 = vunpack.c.l.b16 %v590
    %v2275 = vunpack.c.h.b16 %v590
    %v2276 = vunpack.c.l.b16 %v591
    %v2277 = vunpack.c.h.b16 %v591
    %v2278 = vunpack.c.l.b16 %v592
    %v2279 = vunpack.c.h.b16 %v592
    %v2280 = vunpack.c.l.b16 %v593
    %v2281 = vunpack.c.h.b16 %v593
    %v2282 = vunpack.c.l.b16 %v594
    %v2283 = vunpack.c.h.b16 %v594
    %v2284 = vunpack.c.l.b16 %v595
    %v2285 = vunpack.c.h.b16 %v595
    %v2286 = vunpack.c.l.b16 %v596
    %v2287 = vunpack.c.h.b16 %v596
    %v2288 = vunpack.c.l.b16 %v597
    %v2289 = vunpack.c.h.b16 %v597
    %v2290 = vunpack.c.l.b16 %v598
    %v2291 = vunpack.c.h.b16 %v598
    %v2292 = vunpack.c.l.b16 %v599
    %v2293 = vunpack.c.h.b16 %v599
    %v2294 = vunpack.c.l.b16 %v600
    %v2295 = vunpack.c.h.b16 %v600
    %v2296 = vunpack.c.l.b16 %v601
    %v2297 = vunpack.c.h.b16 %v601
    %v2298 = vunpack.c.l.b16 %v602
    %v2299 = vunpack.c.h.b16 %v602
    %v2300 = vunpack.c.l.b16 %v603
    %v2301 = vunpack.c.h.b16 %v603
    %v2302 = vunpack.c.l.b16 %v604
    %v2303 = vunpack.c.h.b16 %v604
    %v2304 = vunpack.c.l.b16 %v605
    %v2305 = vunpack.c.h.b16 %v605
    %v2306 = vunpack.c.l.b16 %v606
    %v2307 = vunpack.c.h.b16 %v606
    %v2308 = vunpack.c.l.b16 %v607
    %v2309 = vunpack.c.h.b16 %v607
    %v2310 = vunpack.c.l.b16 %v608
    %v2311 = vunpack.c.h.b16 %v608
    %v2312 = vunpack.c.l.b16 %v609
    %v2313 = vunpack.c.h.b16 %v609
    %v2314 = vunpack.c.l.b16 %v610
    %v2315 = vunpack.c.h.b16 %v610
    %v2316 = vunpack.c.l.b16 %v611
    %v2317 = vunpack.c.h.b16 %v611
    %v2318 = vunpack.c.l.b16 %v612
    %v2319 = vunpack.c.h.b16 %v612
    %v2320 = vunpack.c.l.b16 %v613
    %v2321 = vunpack.c.h.b16 %v613
    %v2322 = vunpack.c.l.b16 %v614
    %v2323 = vunpack.c.h.b16 %v614
    %v2324 = vunpack.c.l.b16 %v615
    %v2325 = vunpack.c.h.b16 %v615
    %v2326 = vunpack.c.l.b16 %v616
    %v2327 = vunpack.c.h.b16 %v616
    %v2328 = vunpack.c.l.b16 %v617
    %v2329 = vunpack.c.h.b16 %v617
    %v2330 = vunpack.c.l.b16 %v618
    %v2331 = vunpack.c.h.b16 %v618
    %v2332 = vunpack.c.l.b16 %v619
    %v2333 = vunpack.c.h.b16 %v619
    %v2334 = vunpack.c.l.b16 %v620
    %v2335 = vunpack.c.h.b16 %v620
    %v2336 = vunpack.c.l.b16 %v621
    %v2337 = vunpack.c.h.b16 %v621
    %v2338 = vunpack.c.l.b16 %v622
    %v2339 = vunpack.c.h.b16 %v622
    %v2340 = vunpack.c.l.b16 %v623
    %v2341 = vunpack.c.h.b16 %v623
    %v2342 = vunpack.c.l.b16 %v624
    %v2343 = vunpack.c.h.b16 %v624
    %v2344 = vunpack.c.l.b16 %v625
    %v2345 = vunpack.c.h.b16 %v625
    %v2346 = vunpack.c.l.b16 %v626
    %v2347 = vunpack.c.h.b16 %v626
    %v2348 = vunpack.c.l.b16 %v627
    %v2349 = vunpack.c.h.b16 %v627
    %v2350 = vunpack.c.l.b16 %v628
    %v2351 = vunpack.c.h.b16 %v628
    %v2352 = vunpack.c.l.b16 %v629
    %v2353 = vunpack.c.h.b16 %v629
    %v2354 = vunpack.c.l.b16 %v630
    %v2355 = vunpack.c.h.b16 %v630
    %v2356 = vunpack.c.l.b16 %v631
    %v2357 = vunpack.c.h.b16 %v631
    %v2358 = vunpack.c.l.b16 %v632
    %v2359 = vunpack.c.h.b16 %v632
    %v2360 = vunpack.c.l.b16 %v633
    %v2361 = vunpack.c.h.b16 %v633
    %v2362 = vunpack.c.l.b16 %v634
    %v2363 = vunpack.c.h.b16 %v634
    %v2364 = vunpack.c.l.b16 %v635
    %v2365 = vunpack.c.h.b16 %v635
    %v2366 = vunpack.c.l.b16 %v636
    %v2367 = vunpack.c.h.b16 %v636
    %v2368 = vunpack.c.l.b16 %v637
    %v2369 = vunpack.c.h.b16 %v637
    %v2370 = vunpack.c.l.b16 %v638
    %v2371 = vunpack.c.h.b16 %v638
    %v2372 = vunpack.c.l.b16 %v639
    %v2373 = vunpack.c.h.b16 %v639
    %v2374 = vunpack.c.l.b16 %v640
    %v2375 = vunpack.c.h.b16 %v640
    %v2376 = vunpack.c.l.b16 %v641
    %v2377 = vunpack.c.h.b16 %v641
    %v2378 = vunpack.c.l.b16 %v642
    %v2379 = vunpack.c.h.b16 %v642
    %v2380 = vunpack.c.l.b16 %v643
    %v2381 = vunpack.c.h.b16 %v643
    %v2382 = vunpack.c.l.b16 %v644
    %v2383 = vunpack.c.h.b16 %v644
    %v2384 = vunpack.c.l.b16 %v645
    %v2385 = vunpack.c.h.b16 %v645
    %v2386 = vunpack.c.l.b16 %v646
    %v2387 = vunpack.c.h.b16 %v646
    %v2388 = vunpack.c.l.b16 %v647
    %v2389 = vunpack.c.h.b16 %v647
    %v2390 = vunpack.c.l.b16 %v648
    %v2391 = vunpack.c.h.b16 %v648
    %v2392 = vunpack.c.l.b16 %v649
    %v2393 = vunpack.c.h.b16 %v649
    %v2394 = vunpack.c.l.b16 %v650
    %v2395 = vunpack.c.h.b16 %v650
    %v2396 = vunpack.c.l.b16 %v651
    %v2397 = vunpack.c.h.b16 %v651
    %v2398 = vunpack.c.l.b16 %v652
    %v2399 = vunpack.c.h.b16 %v652
    %v2400 = vunpack.c.l.b16 %v653
    %v2401 = vunpack.c.h.b16 %v653
    %v2402 = vunpack.c.l.b16 %v654
    %v2403 = vunpack.c.h.b16 %v654
    %v2404 = vunpack.c.l.b16 %v655
    %v2405 = vunpack.c.h.b16 %v655
    %v2406 = vunpack.c.l.b16 %v656
    %v2407 = vunpack.c.h.b16 %v656
    %v2408 = vunpack.c.l.b16 %v657
    %v2409 = vunpack.c.h.b16 %v657
    %v2410 = vunpack.c.l.b16 %v658
    %v2411 = vunpack.c.h.b16 %v658
    %v2412 = vunpack.c.l.b16 %v659
    %v2413 = vunpack.c.h.b16 %v659
    %v2414 = vunpack.c.l.b16 %v660
    %v2415 = vunpack.c.h.b16 %v660
    %v2416 = vunpack.c.l.b16 %v661
    %v2417 = vunpack.c.h.b16 %v661
    %v2418 = vunpack.c.l.b16 %v662
    %v2419 = vunpack.c.h.b16 %v662
    %v2420 = vunpack.c.l.b16 %v663
    %v2421 = vunpack.c.h.b16 %v663
    %v2422 = vunpack.c.l.b16 %v664
    %v2423 = vunpack.c.h.b16 %v664
    %v2424 = vunpack.c.l.b16 %v665
    %v2425 = vunpack.c.h.b16 %v665
    %v2426 = vunpack.c.l.b16 %v666
    %v2427 = vunpack.c.h.b16 %v666
    %v2428 = vunpack.c.l.b16 %v667
    %v2429 = vunpack.c.h.b16 %v667
    %v2430 = vunpack.c.l.b16 %v668
    %v2431 = vunpack.c.h.b16 %v668
    %v2432 = vunpack.c.l.b16 %v669
    %v2433 = vunpack.c.h.b16 %v669
    %v2434 = vunpack.c.l.b16 %v670
    %v2435 = vunpack.c.h.b16 %v670
    %v2436 = vunpack.c.l.b16 %v671
    %v2437 = vunpack.c.h.b16 %v671
    %v2438 = vunpack.c.l.b16 %v672
    %v2439 = vunpack.c.h.b16 %v672
    %v2440 = vunpack.c.l.b16 %v673
    %v2441 = vunpack.c.h.b16 %v673
    %v2442 = vunpack.c.l.b16 %v674
    %v2443 = vunpack.c.h.b16 %v674
    %v2444 = vunpack.c.l.b16 %v675
    %v2445 = vunpack.c.h.b16 %v675
    %v2446 = vunpack.c.l.b16 %v676
    %v2447 = vunpack.c.h.b16 %v676
    %v2448 = vunpack.c.l.b16 %v677
    %v2449 = vunpack.c.h.b16 %v677
    %v2450 = vunpack.c.l.b16 %v678
    %v2451 = vunpack.c.h.b16 %v678
    %v2452 = vunpack.c.l.b16 %v679
    %v2453 = vunpack.c.h.b16 %v679
    %v2454 = vunpack.c.l.b16 %v680
    %v2455 = vunpack.c.h.b16 %v680
    %v2456 = vunpack.c.l.b16 %v681
    %v2457 = vunpack.c.h.b16 %v681
    %v2458 = vunpack.c.l.b16 %v682
    %v2459 = vunpack.c.h.b16 %v682
    %v2460 = vunpack.c.l.b16 %v683
    %v2461 = vunpack.c.h.b16 %v683
    %v2462 = vunpack.c.l.b16 %v684
    %v2463 = vunpack.c.h.b16 %v684
    %v2464 = vunpack.c.l.b16 %v685
    %v2465 = vunpack.c.h.b16 %v685
    %v2466 = vunpack.c.l.b16 %v686
    %v2467 = vunpack.c.h.b16 %v686
    %v2468 = vunpack.c.l.b16 %v687
    %v2469 = vunpack.c.h.b16 %v687
    %v2470 = vunpack.c.l.b16 %v688
    %v2471 = vunpack.c.h.b16 %v688
    %v2472 = vunpack.c.l.b16 %v689
    %v2473 = vunpack.c.h.b16 %v689
    %v2474 = vunpack.c.l.b16 %v690
    %v2475 = vunpack.c.h.b16 %v690
    %v2476 = vunpack.c.l.b16 %v691
    %v2477 = vunpack.c.h.b16 %v691
    %v2478 = vunpack.c.l.b16 %v692
    %v2479 = vunpack.c.h.b16 %v692
    %v2480 = vunpack.c.l.b16 %v693
    %v2481 = vunpack.c.h.b16 %v693
    %v2482 = vunpack.c.l.b16 %v694
    %v2483 = vunpack.c.h.b16 %v694
    %v2484 = vunpack.c.l.b16 %v695
    %v2485 = vunpack.c.h.b16 %v695
    %v2486 = vunpack.c.l.b16 %v696
    %v2487 = vunpack.c.h.b16 %v696
    %v2488 = vunpack.c.l.b16 %v697
    %v2489 = vunpack.c.h.b16 %v697
    %v2490 = vunpack.c.l.b16 %v698
    %v2491 = vunpack.c.h.b16 %v698
    %v2492 = vunpack.c.l.b16 %v699
    %v2493 = vunpack.c.h.b16 %v699
    %v2494 = vunpack.c.l.b16 %v700
    %v2495 = vunpack.c.h.b16 %v700
    %v2496 = vunpack.c.l.b16 %v701
    %v2497 = vunpack.c.h.b16 %v701
    %v2498 = vunpack.c.l.b16 %v702
    %v2499 = vunpack.c.h.b16 %v702
    %v2500 = vunpack.c.l.b16 %v703
    %v2501 = vunpack.c.h.b16 %v703
    %v2502 = vunpack.c.l.b16 %v704
    %v2503 = vunpack.c.h.b16 %v704
    %v2504 = vunpack.c.l.b16 %v705
    %v2505 = vunpack.c.h.b16 %v705
    %v2506 = vunpack.c.l.b16 %v706
    %v2507 = vunpack.c.h.b16 %v706
    %v2508 = vunpack.c.l.b16 %v707
    %v2509 = vunpack.c.h.b16 %v707
    %v2510 = vunpack.c.l.b16 %v708
    %v2511 = vunpack.c.h.b16 %v708
    %v2512 = vunpack.c.l.b16 %v709
    %v2513 = vunpack.c.h.b16 %v709
    %v2514 = vunpack.c.l.b16 %v710
    %v2515 = vunpack.c.h.b16 %v710
    %v2516 = vunpack.c.l.b16 %v711
    %v2517 = vunpack.c.h.b16 %v711
    %v2518 = vunpack.c.l.b16 %v712
    %v2519 = vunpack.c.h.b16 %v712
    %v2520 = vunpack.c.l.b16 %v713
    %v2521 = vunpack.c.h.b16 %v713
    %v2522 = vunpack.c.l.b16 %v714
    %v2523 = vunpack.c.h.b16 %v714
    %v2524 = vunpack.c.l.b16 %v715
    %v2525 = vunpack.c.h.b16 %v715
    %v2526 = vunpack.c.l.b16 %v716
    %v2527 = vunpack.c.h.b16 %v716
    %v2528 = vunpack.c.l.b16 %v717
    %v2529 = vunpack.c.h.b16 %v717
    %v2530 = vunpack.c.l.b16 %v718
    %v2531 = vunpack.c.h.b16 %v718
    %v2532 = vunpack.c.l.b16 %v719
    %v2533 = vunpack.c.h.b16 %v719
    %v2534 = vunpack.c.l.b16 %v720
    %v2535 = vunpack.c.h.b16 %v720
    %v2536 = vunpack.c.l.b16 %v721
    %v2537 = vunpack.c.h.b16 %v721
    %v2538 = vunpack.c.l.b16 %v722
    %v2539 = vunpack.c.h.b16 %v722
    %v2540 = vunpack.c.l.b16 %v723
    %v2541 = vunpack.c.h.b16 %v723
    %v2542 = vunpack.c.l.b16 %v724
    %v2543 = vunpack.c.h.b16 %v724
    %v2544 = vunpack.c.l.b16 %v725
    %v2545 = vunpack.c.h.b16 %v725
    %v2546 = vunpack.c.l.b16 %v726
    %v2547 = vunpack.c.h.b16 %v726
    %v2548 = vunpack.c.l.b16 %v727
    %v2549 = vunpack.c.h.b16 %v727
    %v2550 = vunpack.c.l.b16 %v728
    %v2551 = vunpack.c.h.b16 %v728
    %v2552 = vunpack.c.l.b16 %v729
    %v2553 = vunpack.c.h.b16 %v729
    %v2554 = vunpack.c.l.b16 %v730
    %v2555 = vunpack.c.h.b16 %v730
    %v2556 = vunpack.c.l.b16 %v731
    %v2557 = vunpack.c.h.b16 %v731
    %v2558 = vunpack.c.l.b16 %v732
    %v2559 = vunpack.c.h.b16 %v732
    %v2560 = vunpack.c.l.b16 %v733
    %v2561 = vunpack.c.h.b16 %v733
    %v2562 = vunpack.c.l.b16 %v734
    %v2563 = vunpack.c.h.b16 %v734
    %v2564 = vunpack.c.l.b16 %v735
    %v2565 = vunpack.c.h.b16 %v735
    %v2566 = vunpack.c.l.b16 %v736
    %v2567 = vunpack.c.h.b16 %v736
    %v2568 = vunpack.c.l.b16 %v737
    %v2569 = vunpack.c.h.b16 %v737
    %v2570 = vunpack.c.l.b16 %v738
    %v2571 = vunpack.c.h.b16 %v738
    %v2572 = vunpack.c.l.b16 %v739
    %v2573 = vunpack.c.h.b16 %v739
    %v2574 = vunpack.c.l.b16 %v740
    %v2575 = vunpack.c.h.b16 %v740
    %v2576 = vunpack.c.l.b16 %v741
    %v2577 = vunpack.c.h.b16 %v741
    %v2578 = vunpack.c.l.b16 %v742
    %v2579 = vunpack.c.h.b16 %v742
    %v2580 = vunpack.c.l.b16 %v743
    %v2581 = vunpack.c.h.b16 %v743
    %v2582 = vunpack.c.l.b16 %v744
    %v2583 = vunpack.c.h.b16 %v744
    %v2584 = vunpack.c.l.b16 %v745
    %v2585 = vunpack.c.h.b16 %v745
    %v2586 = vunpack.c.l.b16 %v746
    %v2587 = vunpack.c.h.b16 %v746
    %v2588 = vunpack.c.l.b16 %v747
    %v2589 = vunpack.c.h.b16 %v747
    %v2590 = vunpack.c.l.b16 %v748
    %v2591 = vunpack.c.h.b16 %v748
    %v2592 = vunpack.c.l.b16 %v749
    %v2593 = vunpack.c.h.b16 %v749
    %v2594 = vunpack.c.l.b16 %v750
    %v2595 = vunpack.c.h.b16 %v750
    %v2596 = vunpack.c.l.b16 %v751
    %v2597 = vunpack.c.h.b16 %v751
    %v2598 = vunpack.c.l.b16 %v752
    %v2599 = vunpack.c.h.b16 %v752
    %v2600 = vunpack.c.l.b16 %v753
    %v2601 = vunpack.c.h.b16 %v753
    %v2602 = vunpack.c.l.b16 %v754
    %v2603 = vunpack.c.h.b16 %v754
    %v2604 = vunpack.c.l.b16 %v755
    %v2605 = vunpack.c.h.b16 %v755
    %v2606 = vunpack.c.l.b16 %v756
    %v2607 = vunpack.c.h.b16 %v756
    %v2608 = vunpack.c.l.b16 %v757
    %v2609 = vunpack.c.h.b16 %v757
    %v2610 = vunpack.c.l.b16 %v758
    %v2611 = vunpack.c.h.b16 %v758
    %v2612 = vunpack.c.l.b16 %v759
    %v2613 = vunpack.c.h.b16 %v759
    %v2614 = vunpack.c.l.b16 %v760
    %v2615 = vunpack.c.h.b16 %v760
    %v2616 = vunpack.c.l.b16 %v761
    %v2617 = vunpack.c.h.b16 %v761
    %v2618 = vunpack.c.l.b16 %v762
    %v2619 = vunpack.c.h.b16 %v762
    %v2620 = vunpack.c.l.b16 %v763
    %v2621 = vunpack.c.h.b16 %v763
    %v2622 = vunpack.c.l.b16 %v764
    %v2623 = vunpack.c.h.b16 %v764
    %v2624 = vunpack.c.l.b16 %v765
    %v2625 = vunpack.c.h.b16 %v765
    %v2626 = vunpack.c.l.b16 %v766
    %v2627 = vunpack.c.h.b16 %v766
    %v2628 = vunpack.c.l.b16 %v767
    %v2629 = vunpack.c.h.b16 %v767
    %v2630 = vunpack.c.l.b16 %v768
    %v2631 = vunpack.c.h.b16 %v768
    %v2632 = vunpack.c.l.b16 %v769
    %v2633 = vunpack.c.h.b16 %v769
    %v2634 = vunpack.c.l.b16 %v770
    %v2635 = vunpack.c.h.b16 %v770
    %v2636 = vunpack.c.l.b16 %v771
    %v2637 = vunpack.c.h.b16 %v771
    %v2638 = vunpack.c.l.b16 %v772
    %v2639 = vunpack.c.h.b16 %v772
    %v2640 = vunpack.c.l.b16 %v773
    %v2641 = vunpack.c.h.b16 %v773
    %v2642 = vunpack.c.l.b16 %v774
    %v2643 = vunpack.c.h.b16 %v774
    %v2644 = vunpack.c.l.b16 %v775
    %v2645 = vunpack.c.h.b16 %v775
    %v2646 = vunpack.c.l.b16 %v776
    %v2647 = vunpack.c.h.b16 %v776
    %v2648 = vunpack.c.l.b16 %v777
    %v2649 = vunpack.c.h.b16 %v777
    %v2650 = vunpack.c.l.b16 %v778
    %v2651 = vunpack.c.h.b16 %v778
    %v2652 = vunpack.c.l.b16 %v779
    %v2653 = vunpack.c.h.b16 %v779
    %v2654 = vunpack.c.l.b16 %v780
    %v2655 = vunpack.c.h.b16 %v780
    %v2656 = vunpack.c.l.b16 %v781
    %v2657 = vunpack.c.h.b16 %v781
    %v2658 = vunpack.c.l.b16 %v782
    %v2659 = vunpack.c.h.b16 %v782
    %v2660 = vunpack.c.l.b16 %v783
    %v2661 = vunpack.c.h.b16 %v783
    %v2662 = vunpack.c.l.b16 %v784
    %v2663 = vunpack.c.h.b16 %v784
    %v2664 = vunpack.c.l.b16 %v785
    %v2665 = vunpack.c.h.b16 %v785
    %v2666 = vunpack.c.l.b16 %v786
    %v2667 = vunpack.c.h.b16 %v786
    %v2668 = vunpack.c.l.b16 %v787
    %v2669 = vunpack.c.h.b16 %v787
    %v2670 = vunpack.c.l.b16 %v788
    %v2671 = vunpack.c.h.b16 %v788
    %v2672 = vunpack.c.l.b16 %v789
    %v2673 = vunpack.c.h.b16 %v789
    %v2674 = vunpack.c.l.b16 %v790
    %v2675 = vunpack.c.h.b16 %v790
    %v2676 = vunpack.c.l.b16 %v791
    %v2677 = vunpack.c.h.b16 %v791
    %v2678 = vunpack.c.l.b16 %v792
    %v2679 = vunpack.c.h.b16 %v792
    %v2680 = vunpack.c.l.b16 %v793
    %v2681 = vunpack.c.h.b16 %v793
    %v2682 = vunpack.c.l.b16 %v794
    %v2683 = vunpack.c.h.b16 %v794
    %v2684 = vunpack.c.l.b16 %v795
    %v2685 = vunpack.c.h.b16 %v795
    %v2686 = vunpack.c.l.b16 %v796
    %v2687 = vunpack.c.h.b16 %v796
    %v2688 = vunpack.c.l.b16 %v797
    %v2689 = vunpack.c.h.b16 %v797
    %v2690 = vunpack.c.l.b16 %v798
    %v2691 = vunpack.c.h.b16 %v798
    %v2692 = vunpack.c.l.b16 %v799
    %v2693 = vunpack.c.h.b16 %v799
    %v2694 = vunpack.c.l.b16 %v800
    %v2695 = vunpack.c.h.b16 %v800
    %v2696 = vunpack.c.l.b16 %v801
    %v2697 = vunpack.c.h.b16 %v801
    %v2698 = vunpack.c.l.b16 %v802
    %v2699 = vunpack.c.h.b16 %v802
    %v2700 = vunpack.c.l.b16 %v803
    %v2701 = vunpack.c.h.b16 %v803
    %v2702 = vunpack.c.l.b16 %v804
    %v2703 = vunpack.c.h.b16 %v804
    %v2704 = vunpack.c.l.b16 %v805
    %v2705 = vunpack.c.h.b16 %v805
    %v2706 = vunpack.c.l.b16 %v806
    %v2707 = vunpack.c.h.b16 %v806
    %v2708 = vunpack.c.l.b16 %v807
    %v2709 = vunpack.c.h.b16 %v807
    %v2710 = vunpack.c.l.b16 %v808
    %v2711 = vunpack.c.h.b16 %v808
    %v2712 = vunpack.c.l.b16 %v809
    %v2713 = vunpack.c.h.b16 %v809
    %v2714 = vunpack.c.l.b16 %v810
    %v2715 = vunpack.c.h.b16 %v810
    %v2716 = vunpack.c.l.b16 %v811
    %v2717 = vunpack.c.h.b16 %v811
    %v2718 = vunpack.c.l.b16 %v812
    %v2719 = vunpack.c.h.b16 %v812
    %v2720 = vunpack.c.l.b16 %v813
    %v2721 = vunpack.c.h.b16 %v813
    %v2722 = vunpack.c.l.b16 %v814
    %v2723 = vunpack.c.h.b16 %v814
    %v2724 = vunpack.c.l.b16 %v815
    %v2725 = vunpack.c.h.b16 %v815
    %v2726 = vunpack.c.l.b16 %v816
    %v2727 = vunpack.c.h.b16 %v816
    %v2728 = vunpack.c.l.b16 %v817
    %v2729 = vunpack.c.h.b16 %v817
    %v2730 = vunpack.c.l.b16 %v818
    %v2731 = vunpack.c.h.b16 %v818
    %v2732 = vunpack.c.l.b16 %v819
    %v2733 = vunpack.c.h.b16 %v819
    %v2734 = vunpack.c.l.b16 %v820
    %v2735 = vunpack.c.h.b16 %v820
    %v2736 = vunpack.c.l.b16 %v821
    %v2737 = vunpack.c.h.b16 %v821
    %v2738 = vunpack.c.l.b16 %v822
    %v2739 = vunpack.c.h.b16 %v822
    %v2740 = vunpack.c.l.b16 %v823
    %v2741 = vunpack.c.h.b16 %v823
    %v2742 = vunpack.c.l.b16 %v824
    %v2743 = vunpack.c.h.b16 %v824
    %v2744 = vunpack.c.l.b16 %v825
    %v2745 = vunpack.c.h.b16 %v825
    %v2746 = vunpack.c.l.b16 %v826
    %v2747 = vunpack.c.h.b16 %v826
    %v2748 = vunpack.c.l.b16 %v827
    %v2749 = vunpack.c.h.b16 %v827
    %v2750 = vunpack.c.l.b16 %v828
    %v2751 = vunpack.c.h.b16 %v828
    %v2752 = vunpack.c.l.b16 %v829
    %v2753 = vunpack.c.h.b16 %v829
    %v2754 = vunpack.c.l.b16 %v830
    %v2755 = vunpack.c.h.b16 %v830
    %v2756 = vunpack.c.l.b16 %v831
    %v2757 = vunpack.c.h.b16 %v831
    %v2758 = vunpack.c.l.b16 %v832
    %v2759 = vunpack.c.h.b16 %v832
    %v2760 = vunpack.c.l.b16 %v833
    %v2761 = vunpack.c.h.b16 %v833
    %v2762 = vunpack.c.l.b16 %v834
    %v2763 = vunpack.c.h.b16 %v834
    %v2764 = vunpack.c.l.b16 %v835
    %v2765 = vunpack.c.h.b16 %v835
    %v2766 = vunpack.c.l.b16 %v836
    %v2767 = vunpack.c.h.b16 %v836
    %v2768 = vunpack.c.l.b16 %v837
    %v2769 = vunpack.c.h.b16 %v837
    %v2770 = vunpack.c.l.b16 %v838
    %v2771 = vunpack.c.h.b16 %v838
    %v2772 = vunpack.c.l.b16 %v839
    %v2773 = vunpack.c.h.b16 %v839
    %v2774 = vunpack.c.l.b16 %v840
    %v2775 = vunpack.c.h.b16 %v840
    %v2776 = vunpack.c.l.b16 %v841
    %v2777 = vunpack.c.h.b16 %v841
    %v2778 = vunpack.c.l.b16 %v842
    %v2779 = vunpack.c.h.b16 %v842
    %v2780 = vunpack.c.l.b16 %v843
    %v2781 = vunpack.c.h.b16 %v843
    %v2782 = vpack.c.b16 %v1510, %v1502
    %v2783 = vpack.c.b16 %v1511, %v1503
    %v2784 = vpack.c.b16 %v1512, %v1504
    %v2785 = vpack.c.b16 %v1513, %v1505
    %v2786 = vpack.c.b16 %v1514, %v1506
    %v2787 = vpack.c.b16 %v1515, %v1507
    %v2788 = vpack.c.b16 %v1516, %v1508
    %v2789 = vpack.c.b16 %v1517, %v1509
    %v2790 = vpack.c.b16 %v1526, %v1518
    %v2791 = vpack.c.b16 %v1527, %v1519
    %v2792 = vpack.c.b16 %v1528, %v1520
    %v2793 = vpack.c.b16 %v1529, %v1521
    %v2794 = vpack.c.b16 %v1530, %v1522
    %v2795 = vpack.c.b16 %v1531, %v1523
    %v2796 = vpack.c.b16 %v1532, %v1524
    %v2797 = vpack.c.b16 %v1533, %v1525
    %v2798 = vpack.c.b16 %v1542, %v1534
    %v2799 = vpack.c.b16 %v1543, %v1535
    %v2800 = vpack.c.b16 %v1544, %v1536
    %v2801 = vpack.c.b16 %v1545, %v1537
    %v2802 = vpack.c.b16 %v1546, %v1538
    %v2803 = vpack.c.b16 %v1547, %v1539
    %v2804 = vpack.c.b16 %v1548, %v1540
    %v2805 = vpack.c.b16 %v1549, %v1541
    %v2806 = vpack.c.b16 %v1558, %v1550
    %v2807 = vpack.c.b16 %v1559, %v1551
    %v2808 = vpack.c.b16 %v1560, %v1552
    %v2809 = vpack.c.b16 %v1561, %v1553
    %v2810 = vpack.c.b16 %v1562, %v1554
    %v2811 = vpack.c.b16 %v1563, %v1555
    %v2812 = vpack.c.b16 %v1564, %v1556
    %v2813 = vpack.c.b16 %v1565, %v1557
    %v2814 = vpack.c.b16 %v1574, %v1566
    %v2815 = vpack.c.b16 %v1575, %v1567
    %v2816 = vpack.c.b16 %v1576, %v1568
    %v2817 = vpack.c.b16 %v1577, %v1569
    %v2818 = vpack.c.b16 %v1578, %v1570
    %v2819 = vpack.c.b16 %v1579, %v1571
    %v2820 = vpack.c.b16 %v1580, %v1572
    %v2821 = vpack.c.b16 %v1581, %v1573
    %v2822 = vpack.c.b16 %v1590, %v1582
    %v2823 = vpack.c.b16 %v1591, %v1583
    %v2824 = vpack.c.b16 %v1592, %v1584
    %v2825 = vpack.c.b16 %v1593, %v1585
    %v2826 = vpack.c.b16 %v1594, %v1586
    %v2827 = vpack.c.b16 %v1595, %v1587
    %v2828 = vpack.c.b16 %v1596, %v1588
    %v2829 = vpack.c.b16 %v1597, %v1589
    %v2830 = vpack.c.b16 %v1606, %v1598
    %v2831 = vpack.c.b16 %v1607, %v1599
    %v2832 = vpack.c.b16 %v1608, %v1600
    %v2833 = vpack.c.b16 %v1609, %v1601
    %v2834 = vpack.c.b16 %v1610, %v1602
    %v2835 = vpack.c.b16 %v1611, %v1603
    %v2836 = vpack.c.b16 %v1612, %v1604
    %v2837 = vpack.c.b16 %v1613, %v1605
    %v2838 = vpack.c.b16 %v1622, %v1614
    %v2839 = vpack.c.b16 %v1623, %v1615
    %v2840 = vpack.c.b16 %v1624, %v1616
    %v2841 = vpack.c.b16 %v1625, %v1617
    %v2842 = vpack.c.b16 %v1626, %v1618
    %v2843 = vpack.c.b16 %v1627, %v1619
    %v2844 = vpack.c.b16 %v1628, %v1620
    %v2845 = vpack.c.b16 %v1629, %v1621
    %v2846 = vpack.c.b16 %v1638, %v1630
    %v2847 = vpack.c.b16 %v1639, %v1631
    %v2848 = vpack.c.b16 %v1640, %v1632
    %v2849 = vpack.c.b16 %v1641, %v1633
    %v2850 = vpack.c.b16 %v1642, %v1634
    %v2851 = vpack.c.b16 %v1643, %v1635
    %v2852 = vpack.c.b16 %v1644, %v1636
    %v2853 = vpack.c.b16 %v1645, %v1637
    %v2854 = vpack.c.b16 %v1654, %v1646
    %v2855 = vpack.c.b16 %v1655, %v1647
    %v2856 = vpack.c.b16 %v1656, %v1648
    %v2857 = vpack.c.b16 %v1657, %v1649
    %v2858 = vpack.c.b16 %v1658, %v1650
    %v2859 = vpack.c.b16 %v1659, %v1651
    %v2860 = vpack.c.b16 %v1660, %v1652
    %v2861 = vpack.c.b16 %v1661, %v1653
    %v2862 = vpack.c.b16 %v1670, %v1662
    %v2863 = vpack.c.b16 %v1671, %v1663
    %v2864 = vpack.c.b16 %v1672, %v1664
    %v2865 = vpack.c.b16 %v1673, %v1665
    %v2866 = vpack.c.b16 %v1674, %v1666
    %v2867 = vpack.c.b16 %v1675, %v1667
    %v2868 = vpack.c.b16 %v1676, %v1668
    %v2869 = vpack.c.b16 %v1677, %v1669
    %v2870 = vpack.c.b16 %v1686, %v1678
    %v2871 = vpack.c.b16 %v1687, %v1679
    %v2872 = vpack.c.b16 %v1688, %v1680
    %v2873 = vpack.c.b16 %v1689, %v1681
    %v2874 = vpack.c.b16 %v1690, %v1682
    %v2875 = vpack.c.b16 %v1691, %v1683
    %v2876 = vpack.c.b16 %v1692, %v1684
    %v2877 = vpack.c.b16 %v1693, %v1685
    %v2878 = vpack.c.b16 %v1702, %v1694
    %v2879 = vpack.c.b16 %v1703, %v1695
    %v2880 = vpack.c.b16 %v1704, %v1696
    %v2881 = vpack.c.b16 %v1705, %v1697
    %v2882 = vpack.c.b16 %v1706, %v1698
    %v2883 = vpack.c.b16 %v1707, %v1699
    %v2884 = vpack.c.b16 %v1708, %v1700
    %v2885 = vpack.c.b16 %v1709, %v1701
    %v2886 = vpack.c.b16 %v1718, %v1710
    %v2887 = vpack.c.b16 %v1719, %v1711
    %v2888 = vpack.c.b16 %v1720, %v1712
    %v2889 = vpack.c.b16 %v1721, %v1713
    %v2890 = vpack.c.b16 %v1722, %v1714
    %v2891 = vpack.c.b16 %v1723, %v1715
    %v2892 = vpack.c.b16 %v1724, %v1716
    %v2893 = vpack.c.b16 %v1725, %v1717
    %v2894 = vpack.c.b16 %v1734, %v1726
    %v2895 = vpack.c.b16 %v1735, %v1727
    %v2896 = vpack.c.b16 %v1736, %v1728
    %v2897 = vpack.c.b16 %v1737, %v1729
    %v2898 = vpack.c.b16 %v1738, %v1730
    %v2899 = vpack.c.b16 %v1739, %v1731
    %v2900 = vpack.c.b16 %v1740, %v1732
    %v2901 = vpack.c.b16 %v1741, %v1733
    %v2902 = vpack.c.b16 %v1750, %v1742
    %v2903 = vpack.c.b16 %v1751, %v1743
    %v2904 = vpack.c.b16 %v1752, %v1744
    %v2905 = vpack.c.b16 %v1753, %v1745
    %v2906 = vpack.c.b16 %v1754, %v1746
    %v2907 = vpack.c.b16 %v1755, %v1747
    %v2908 = vpack.c.b16 %v1756, %v1748
    %v2909 = vpack.c.b16 %v1757, %v1749
    %v2910 = vpack.c.b16 %v1766, %v1758
    %v2911 = vpack.c.b16 %v1767, %v1759
    %v2912 = vpack.c.b16 %v1768, %v1760
    %v2913 = vpack.c.b16 %v1769, %v1761
    %v2914 = vpack.c.b16 %v1770, %v1762
    %v2915 = vpack.c.b16 %v1771, %v1763
    %v2916 = vpack.c.b16 %v1772, %v1764
    %v2917 = vpack.c.b16 %v1773, %v1765
    %v2918 = vpack.c.b16 %v1782, %v1774
    %v2919 = vpack.c.b16 %v1783, %v1775
    %v2920 = vpack.c.b16 %v1784, %v1776
    %v2921 = vpack.c.b16 %v1785, %v1777
    %v2922 = vpack.c.b16 %v1786, %v1778
    %v2923 = vpack.c.b16 %v1787, %v1779
    %v2924 = vpack.c.b16 %v1788, %v1780
    %v2925 = vpack.c.b16 %v1789, %v1781
    %v2926 = vpack.c.b16 %v1798, %v1790
    %v2927 = vpack.c.b16 %v1799, %v1791
    %v2928 = vpack.c.b16 %v1800, %v1792
    %v2929 = vpack.c.b16 %v1801, %v1793
    %v2930 = vpack.c.b16 %v1802, %v1794
    %v2931 = vpack.c.b16 %v1803, %v1795
    %v2932 = vpack.c.b16 %v1804, %v1796
    %v2933 = vpack.c.b16 %v1805, %v1797
    %v2934 = vpack.c.b16 %v1814, %v1806
    %v2935 = vpack.c.b16 %v1815, %v1807
    %v2936 = vpack.c.b16 %v1816, %v1808
    %v2937 = vpack.c.b16 %v1817, %v1809
    %v2938 = vpack.c.b16 %v1818, %v1810
    %v2939 = vpack.c.b16 %v1819, %v1811
    %v2940 = vpack.c.b16 %v1820, %v1812
    %v2941 = vpack.c.b16 %v1821, %v1813
    %v2942 = vpack.c.b16 %v1830, %v1822
    %v2943 = vpack.c.b16 %v1831, %v1823
    %v2944 = vpack.c.b16 %v1832, %v1824
    %v2945 = vpack.c.b16 %v1833, %v1825
    %v2946 = vpack.c.b16 %v1834, %v1826
    %v2947 = vpack.c.b16 %v1835, %v1827
    %v2948 = vpack.c.b16 %v1836, %v1828
    %v2949 = vpack.c.b16 %v1837, %v1829
    %v2950 = vpack.c.b16 %v1846, %v1838
    %v2951 = vpack.c.b16 %v1847, %v1839
    %v2952 = vpack.c.b16 %v1848, %v1840
    %v2953 = vpack.c.b16 %v1849, %v1841
    %v2954 = vpack.c.b16 %v1850, %v1842
    %v2955 = vpack.c.b16 %v1851, %v1843
    %v2956 = vpack.c.b16 %v1852, %v1844
    %v2957 = vpack.c.b16 %v1853, %v1845
    %v2958 = vpack.c.b16 %v1862, %v1854
    %v2959 = vpack.c.b16 %v1863, %v1855
    %v2960 = vpack.c.b16 %v1864, %v1856
    %v2961 = vpack.c.b16 %v1865, %v1857
    %v2962 = vpack.c.b16 %v1866, %v1858
    %v2963 = vpack.c.b16 %v1867, %v1859
    %v2964 = vpack.c.b16 %v1868, %v1860
    %v2965 = vpack.c.b16 %v1869, %v1861
    %v2966 = vpack.c.b16 %v1878, %v1870
    %v2967 = vpack.c.b16 %v1879, %v1871
    %v2968 = vpack.c.b16 %v1880, %v1872
    %v2969 = vpack.c.b16 %v1881, %v1873
    %v2970 = vpack.c.b16 %v1882, %v1874
    %v2971 = vpack.c.b16 %v1883, %v1875
    %v2972 = vpack.c.b16 %v1884, %v1876
    %v2973 = vpack.c.b16 %v1885, %v1877
    %v2974 = vpack.c.b16 %v1894, %v1886
    %v2975 = vpack.c.b16 %v1895, %v1887
    %v2976 = vpack.c.b16 %v1896, %v1888
    %v2977 = vpack.c.b16 %v1897, %v1889
    %v2978 = vpack.c.b16 %v1898, %v1890
    %v2979 = vpack.c.b16 %v1899, %v1891
    %v2980 = vpack.c.b16 %v1900, %v1892
    %v2981 = vpack.c.b16 %v1901, %v1893
    %v2982 = vpack.c.b16 %v1910, %v1902
    %v2983 = vpack.c.b16 %v1911, %v1903
    %v2984 = vpack.c.b16 %v1912, %v1904
    %v2985 = vpack.c.b16 %v1913, %v1905
    %v2986 = vpack.c.b16 %v1914, %v1906
    %v2987 = vpack.c.b16 %v1915, %v1907
    %v2988 = vpack.c.b16 %v1916, %v1908
    %v2989 = vpack.c.b16 %v1917, %v1909
    %v2990 = vpack.c.b16 %v1926, %v1918
    %v2991 = vpack.c.b16 %v1927, %v1919
    %v2992 = vpack.c.b16 %v1928, %v1920
    %v2993 = vpack.c.b16 %v1929, %v1921
    %v2994 = vpack.c.b16 %v1930, %v1922
    %v2995 = vpack.c.b16 %v1931, %v1923
    %v2996 = vpack.c.b16 %v1932, %v1924
    %v2997 = vpack.c.b16 %v1933, %v1925
    %v2998 = vpack.c.b16 %v1942, %v1934
    %v2999 = vpack.c.b16 %v1943, %v1935
    %v3000 = vpack.c.b16 %v1944, %v1936
    %v3001 = vpack.c.b16 %v1945, %v1937
    %v3002 = vpack.c.b16 %v1946, %v1938
    %v3003 = vpack.c.b16 %v1947, %v1939
    %v3004 = vpack.c.b16 %v1948, %v1940
    %v3005 = vpack.c.b16 %v1949, %v1941
    %v3006 = vpack.c.b16 %v1958, %v1950
    %v3007 = vpack.c.b16 %v1959, %v1951
    %v3008 = vpack.c.b16 %v1960, %v1952
    %v3009 = vpack.c.b16 %v1961, %v1953
    %v3010 = vpack.c.b16 %v1962, %v1954
    %v3011 = vpack.c.b16 %v1963, %v1955
    %v3012 = vpack.c.b16 %v1964, %v1956
    %v3013 = vpack.c.b16 %v1965, %v1957
    %v3014 = vpack.c.b16 %v1974, %v1966
    %v3015 = vpack.c.b16 %v1975, %v1967
    %v3016 = vpack.c.b16 %v1976, %v1968
    %v3017 = vpack.c.b16 %v1977, %v1969
    %v3018 = vpack.c.b16 %v1978, %v1970
    %v3019 = vpack.c.b16 %v1979, %v1971
    %v3020 = vpack.c.b16 %v1980, %v1972
    %v3021 = vpack.c.b16 %v1981, %v1973
    %v3022 = vpack.c.b16 %v1990, %v1982
    %v3023 = vpack.c.b16 %v1991, %v1983
    %v3024 = vpack.c.b16 %v1992, %v1984
    %v3025 = vpack.c.b16 %v1993, %v1985
    %v3026 = vpack.c.b16 %v1994, %v1986
    %v3027 = vpack.c.b16 %v1995, %v1987
    %v3028 = vpack.c.b16 %v1996, %v1988
    %v3029 = vpack.c.b16 %v1997, %v1989
    %v3030 = vpack.c.b16 %v2006, %v1998
    %v3031 = vpack.c.b16 %v2007, %v1999
    %v3032 = vpack.c.b16 %v2008, %v2000
    %v3033 = vpack.c.b16 %v2009, %v2001
    %v3034 = vpack.c.b16 %v2010, %v2002
    %v3035 = vpack.c.b16 %v2011, %v2003
    %v3036 = vpack.c.b16 %v2012, %v2004
    %v3037 = vpack.c.b16 %v2013, %v2005
    %v3038 = vpack.c.b16 %v2022, %v2014
    %v3039 = vpack.c.b16 %v2023, %v2015
    %v3040 = vpack.c.b16 %v2024, %v2016
    %v3041 = vpack.c.b16 %v2025, %v2017
    %v3042 = vpack.c.b16 %v2026, %v2018
    %v3043 = vpack.c.b16 %v2027, %v2019
    %v3044 = vpack.c.b16 %v2028, %v2020
    %v3045 = vpack.c.b16 %v2029, %v2021
    %v3046 = vpack.c.b16 %v2038, %v2030
    %v3047 = vpack.c.b16 %v2039, %v2031
    %v3048 = vpack.c.b16 %v2040, %v2032
    %v3049 = vpack.c.b16 %v2041, %v2033
    %v3050 = vpack.c.b16 %v2042, %v2034
    %v3051 = vpack.c.b16 %v2043, %v2035
    %v3052 = vpack.c.b16 %v2044, %v2036
    %v3053 = vpack.c.b16 %v2045, %v2037
    %v3054 = vpack.c.b16 %v2054, %v2046
    %v3055 = vpack.c.b16 %v2055, %v2047
    %v3056 = vpack.c.b16 %v2056, %v2048
    %v3057 = vpack.c.b16 %v2057, %v2049
    %v3058 = vpack.c.b16 %v2058, %v2050
    %v3059 = vpack.c.b16 %v2059, %v2051
    %v3060 = vpack.c.b16 %v2060, %v2052
    %v3061 = vpack.c.b16 %v2061, %v2053
    %v3062 = vpack.c.b16 %v2070, %v2062
    %v3063 = vpack.c.b16 %v2071, %v2063
    %v3064 = vpack.c.b16 %v2072, %v2064
    %v3065 = vpack.c.b16 %v2073, %v2065
    %v3066 = vpack.c.b16 %v2074, %v2066
    %v3067 = vpack.c.b16 %v2075, %v2067
    %v3068 = vpack.c.b16 %v2076, %v2068
    %v3069 = vpack.c.b16 %v2077, %v2069
    %v3070 = vpack.c.b16 %v2086, %v2078
    %v3071 = vpack.c.b16 %v2087, %v2079
    %v3072 = vpack.c.b16 %v2088, %v2080
    %v3073 = vpack.c.b16 %v2089, %v2081
    %v3074 = vpack.c.b16 %v2090, %v2082
    %v3075 = vpack.c.b16 %v2091, %v2083
    %v3076 = vpack.c.b16 %v2092, %v2084
    %v3077 = vpack.c.b16 %v2093, %v2085
    %v3078 = vpack.c.b16 %v2102, %v2094
    %v3079 = vpack.c.b16 %v2103, %v2095
    %v3080 = vpack.c.b16 %v2104, %v2096
    %v3081 = vpack.c.b16 %v2105, %v2097
    %v3082 = vpack.c.b16 %v2106, %v2098
    %v3083 = vpack.c.b16 %v2107, %v2099
    %v3084 = vpack.c.b16 %v2108, %v2100
    %v3085 = vpack.c.b16 %v2109, %v2101
    %v3086 = vpack.c.b16 %v2118, %v2110
    %v3087 = vpack.c.b16 %v2119, %v2111
    %v3088 = vpack.c.b16 %v2120, %v2112
    %v3089 = vpack.c.b16 %v2121, %v2113
    %v3090 = vpack.c.b16 %v2122, %v2114
    %v3091 = vpack.c.b16 %v2123, %v2115
    %v3092 = vpack.c.b16 %v2124, %v2116
    %v3093 = vpack.c.b16 %v2125, %v2117
    %v3094 = vpack.c.b16 %v2134, %v2126
    %v3095 = vpack.c.b16 %v2135, %v2127
    %v3096 = vpack.c.b16 %v2136, %v2128
    %v3097 = vpack.c.b16 %v2137, %v2129
    %v3098 = vpack.c.b16 %v2138, %v2130
    %v3099 = vpack.c.b16 %v2139, %v2131
    %v3100 = vpack.c.b16 %v2140, %v2132
    %v3101 = vpack.c.b16 %v2141, %v2133
    %v3102 = vpack.c.b16 %v2150, %v2142
    %v3103 = vpack.c.b16 %v2151, %v2143
    %v3104 = vpack.c.b16 %v2152, %v2144
    %v3105 = vpack.c.b16 %v2153, %v2145
    %v3106 = vpack.c.b16 %v2154, %v2146
    %v3107 = vpack.c.b16 %v2155, %v2147
    %v3108 = vpack.c.b16 %v2156, %v2148
    %v3109 = vpack.c.b16 %v2157, %v2149
    %v3110 = vpack.c.b16 %v2166, %v2158
    %v3111 = vpack.c.b16 %v2167, %v2159
    %v3112 = vpack.c.b16 %v2168, %v2160
    %v3113 = vpack.c.b16 %v2169, %v2161
    %v3114 = vpack.c.b16 %v2170, %v2162
    %v3115 = vpack.c.b16 %v2171, %v2163
    %v3116 = vpack.c.b16 %v2172, %v2164
    %v3117 = vpack.c.b16 %v2173, %v2165
    %v3118 = vpack.c.b16 %v2182, %v2174
    %v3119 = vpack.c.b16 %v2183, %v2175
    %v3120 = vpack.c.b16 %v2184, %v2176
    %v3121 = vpack.c.b16 %v2185, %v2177
    %v3122 = vpack.c.b16 %v2186, %v2178
    %v3123 = vpack.c.b16 %v2187, %v2179
    %v3124 = vpack.c.b16 %v2188, %v2180
    %v3125 = vpack.c.b16 %v2189, %v2181
    %v3126 = vpack.c.b16 %v2198, %v2190
    %v3127 = vpack.c.b16 %v2199, %v2191
    %v3128 = vpack.c.b16 %v2200, %v2192
    %v3129 = vpack.c.b16 %v2201, %v2193
    %v3130 = vpack.c.b16 %v2202, %v2194
    %v3131 = vpack.c.b16 %v2203, %v2195
    %v3132 = vpack.c.b16 %v2204, %v2196
    %v3133 = vpack.c.b16 %v2205, %v2197
    %v3134 = vpack.c.b16 %v2214, %v2206
    %v3135 = vpack.c.b16 %v2215, %v2207
    %v3136 = vpack.c.b16 %v2216, %v2208
    %v3137 = vpack.c.b16 %v2217, %v2209
    %v3138 = vpack.c.b16 %v2218, %v2210
    %v3139 = vpack.c.b16 %v2219, %v2211
    %v3140 = vpack.c.b16 %v2220, %v2212
    %v3141 = vpack.c.b16 %v2221, %v2213
    %v3142 = vpack.c.b16 %v2230, %v2222
    %v3143 = vpack.c.b16 %v2231, %v2223
    %v3144 = vpack.c.b16 %v2232, %v2224
    %v3145 = vpack.c.b16 %v2233, %v2225
    %v3146 = vpack.c.b16 %v2234, %v2226
    %v3147 = vpack.c.b16 %v2235, %v2227
    %v3148 = vpack.c.b16 %v2236, %v2228
    %v3149 = vpack.c.b16 %v2237, %v2229
    %v3150 = vpack.c.b16 %v2246, %v2238
    %v3151 = vpack.c.b16 %v2247, %v2239
    %v3152 = vpack.c.b16 %v2248, %v2240
    %v3153 = vpack.c.b16 %v2249, %v2241
    %v3154 = vpack.c.b16 %v2250, %v2242
    %v3155 = vpack.c.b16 %v2251, %v2243
    %v3156 = vpack.c.b16 %v2252, %v2244
    %v3157 = vpack.c.b16 %v2253, %v2245
    %v3158 = vpack.c.b16 %v2262, %v2254
    %v3159 = vpack.c.b16 %v2263, %v2255
    %v3160 = vpack.c.b16 %v2264, %v2256
    %v3161 = vpack.c.b16 %v2265, %v2257
    %v3162 = vpack.c.b16 %v2266, %v2258
    %v3163 = vpack.c.b16 %v2267, %v2259
    %v3164 = vpack.c.b16 %v2268, %v2260
    %v3165 = vpack.c.b16 %v2269, %v2261
    %v3166 = vpack.c.b16 %v2278, %v2270
    %v3167 = vpack.c.b16 %v2279, %v2271
    %v3168 = vpack.c.b16 %v2280, %v2272
    %v3169 = vpack.c.b16 %v2281, %v2273
    %v3170 = vpack.c.b16 %v2282, %v2274
    %v3171 = vpack.c.b16 %v2283, %v2275
    %v3172 = vpack.c.b16 %v2284, %v2276
    %v3173 = vpack.c.b16 %v2285, %v2277
    %v3174 = vpack.c.b16 %v2294, %v2286
    %v3175 = vpack.c.b16 %v2295, %v2287
    %v3176 = vpack.c.b16 %v2296, %v2288
    %v3177 = vpack.c.b16 %v2297, %v2289
    %v3178 = vpack.c.b16 %v2298, %v2290
    %v3179 = vpack.c.b16 %v2299, %v2291
    %v3180 = vpack.c.b16 %v2300, %v2292
    %v3181 = vpack.c.b16 %v2301, %v2293
    %v3182 = vpack.c.b16 %v2310, %v2302
    %v3183 = vpack.c.b16 %v2311, %v2303
    %v3184 = vpack.c.b16 %v2312, %v2304
    %v3185 = vpack.c.b16 %v2313, %v2305
    %v3186 = vpack.c.b16 %v2314, %v2306
    %v3187 = vpack.c.b16 %v2315, %v2307
    %v3188 = vpack.c.b16 %v2316, %v2308
    %v3189 = vpack.c.b16 %v2317, %v2309
    %v3190 = vpack.c.b16 %v2326, %v2318
    %v3191 = vpack.c.b16 %v2327, %v2319
    %v3192 = vpack.c.b16 %v2328, %v2320
    %v3193 = vpack.c.b16 %v2329, %v2321
    %v3194 = vpack.c.b16 %v2330, %v2322
    %v3195 = vpack.c.b16 %v2331, %v2323
    %v3196 = vpack.c.b16 %v2332, %v2324
    %v3197 = vpack.c.b16 %v2333, %v2325
    %v3198 = vpack.c.b16 %v2342, %v2334
    %v3199 = vpack.c.b16 %v2343, %v2335
    %v3200 = vpack.c.b16 %v2344, %v2336
    %v3201 = vpack.c.b16 %v2345, %v2337
    %v3202 = vpack.c.b16 %v2346, %v2338
    %v3203 = vpack.c.b16 %v2347, %v2339
    %v3204 = vpack.c.b16 %v2348, %v2340
    %v3205 = vpack.c.b16 %v2349, %v2341
    %v3206 = vpack.c.b16 %v2358, %v2350
    %v3207 = vpack.c.b16 %v2359, %v2351
    %v3208 = vpack.c.b16 %v2360, %v2352
    %v3209 = vpack.c.b16 %v2361, %v2353
    %v3210 = vpack.c.b16 %v2362, %v2354
    %v3211 = vpack.c.b16 %v2363, %v2355
    %v3212 = vpack.c.b16 %v2364, %v2356
    %v3213 = vpack.c.b16 %v2365, %v2357
    %v3214 = vpack.c.b16 %v2374, %v2366
    %v3215 = vpack.c.b16 %v2375, %v2367
    %v3216 = vpack.c.b16 %v2376, %v2368
    %v3217 = vpack.c.b16 %v2377, %v2369
    %v3218 = vpack.c.b16 %v2378, %v2370
    %v3219 = vpack.c.b16 %v2379, %v2371
    %v3220 = vpack.c.b16 %v2380, %v2372
    %v3221 = vpack.c.b16 %v2381, %v2373
    %v3222 = vpack.c.b16 %v2390, %v2382
    %v3223 = vpack.c.b16 %v2391, %v2383
    %v3224 = vpack.c.b16 %v2392, %v2384
    %v3225 = vpack.c.b16 %v2393, %v2385
    %v3226 = vpack.c.b16 %v2394, %v2386
    %v3227 = vpack.c.b16 %v2395, %v2387
    %v3228 = vpack.c.b16 %v2396, %v2388
    %v3229 = vpack.c.b16 %v2397, %v2389
    %v3230 = vpack.c.b16 %v2406, %v2398
    %v3231 = vpack.c.b16 %v2407, %v2399
    %v3232 = vpack.c.b16 %v2408, %v2400
    %v3233 = vpack.c.b16 %v2409, %v2401
    %v3234 = vpack.c.b16 %v2410, %v2402
    %v3235 = vpack.c.b16 %v2411, %v2403
    %v3236 = vpack.c.b16 %v2412, %v2404
    %v3237 = vpack.c.b16 %v2413, %v2405
    %v3238 = vpack.c.b16 %v2422, %v2414
    %v3239 = vpack.c.b16 %v2423, %v2415
    %v3240 = vpack.c.b16 %v2424, %v2416
    %v3241 = vpack.c.b16 %v2425, %v2417
    %v3242 = vpack.c.b16 %v2426, %v2418
    %v3243 = vpack.c.b16 %v2427, %v2419
    %v3244 = vpack.c.b16 %v2428, %v2420
    %v3245 = vpack.c.b16 %v2429, %v2421
    %v3246 = vpack.c.b16 %v2438, %v2430
    %v3247 = vpack.c.b16 %v2439, %v2431
    %v3248 = vpack.c.b16 %v2440, %v2432
    %v3249 = vpack.c.b16 %v2441, %v2433
    %v3250 = vpack.c.b16 %v2442, %v2434
    %v3251 = vpack.c.b16 %v2443, %v2435
    %v3252 = vpack.c.b16 %v2444, %v2436
    %v3253 = vpack.c.b16 %v2445, %v2437
    %v3254 = vpack.c.b16 %v2454, %v2446
    %v3255 = vpack.c.b16 %v2455, %v2447
    %v3256 = vpack.c.b16 %v2456, %v2448
    %v3257 = vpack.c.b16 %v2457, %v2449
    %v3258 = vpack.c.b16 %v2458, %v2450
    %v3259 = vpack.c.b16 %v2459, %v2451
    %v3260 = vpack.c.b16 %v2460, %v2452
    %v3261 = vpack.c.b16 %v2461, %v2453
    %v3262 = vpack.c.b16 %v2470, %v2462
    %v3263 = vpack.c.b16 %v2471, %v2463
    %v3264 = vpack.c.b16 %v2472, %v2464
    %v3265 = vpack.c.b16 %v2473, %v2465
    %v3266 = vpack.c.b16 %v2474, %v2466
    %v3267 = vpack.c.b16 %v2475, %v2467
    %v3268 = vpack.c.b16 %v2476, %v2468
    %v3269 = vpack.c.b16 %v2477, %v2469
    %v3270 = vpack.c.b16 %v2486, %v2478
    %v3271 = vpack.c.b16 %v2487, %v2479
    %v3272 = vpack.c.b16 %v2488, %v2480
    %v3273 = vpack.c.b16 %v2489, %v2481
    %v3274 = vpack.c.b16 %v2490, %v2482
    %v3275 = vpack.c.b16 %v2491, %v2483
    %v3276 = vpack.c.b16 %v2492, %v2484
    %v3277 = vpack.c.b16 %v2493, %v2485
    %v3278 = vpack.c.b16 %v2502, %v2494
    %v3279 = vpack.c.b16 %v2503, %v2495
    %v3280 = vpack.c.b16 %v2504, %v2496
    %v3281 = vpack.c.b16 %v2505, %v2497
    %v3282 = vpack.c.b16 %v2506, %v2498
    %v3283 = vpack.c.b16 %v2507, %v2499
    %v3284 = vpack.c.b16 %v2508, %v2500
    %v3285 = vpack.c.b16 %v2509, %v2501
    %v3286 = vpack.c.b16 %v2518, %v2510
    %v3287 = vpack.c.b16 %v2519, %v2511
    %v3288 = vpack.c.b16 %v2520, %v2512
    %v3289 = vpack.c.b16 %v2521, %v2513
    %v3290 = vpack.c.b16 %v2522, %v2514
    %v3291 = vpack.c.b16 %v2523, %v2515
    %v3292 = vpack.c.b16 %v2524, %v2516
    %v3293 = vpack.c.b16 %v2525, %v2517
    %v3294 = vpack.c.b16 %v2534, %v2526
    %v3295 = vpack.c.b16 %v2535, %v2527
    %v3296 = vpack.c.b16 %v2536, %v2528
    %v3297 = vpack.c.b16 %v2537, %v2529
    %v3298 = vpack.c.b16 %v2538, %v2530
    %v3299 = vpack.c.b16 %v2539, %v2531
    %v3300 = vpack.c.b16 %v2540, %v2532
    %v3301 = vpack.c.b16 %v2541, %v2533
    %v3302 = vpack.c.b16 %v2550, %v2542
    %v3303 = vpack.c.b16 %v2551, %v2543
    %v3304 = vpack.c.b16 %v2552, %v2544
    %v3305 = vpack.c.b16 %v2553, %v2545
    %v3306 = vpack.c.b16 %v2554, %v2546
    %v3307 = vpack.c.b16 %v2555, %v2547
    %v3308 = vpack.c.b16 %v2556, %v2548
    %v3309 = vpack.c.b16 %v2557, %v2549
    %v3310 = vpack.c.b16 %v2566, %v2558
    %v3311 = vpack.c.b16 %v2567, %v2559
    %v3312 = vpack.c.b16 %v2568, %v2560
    %v3313 = vpack.c.b16 %v2569, %v2561
    %v3314 = vpack.c.b16 %v2570, %v2562
    %v3315 = vpack.c.b16 %v2571, %v2563
    %v3316 = vpack.c.b16 %v2572, %v2564
    %v3317 = vpack.c.b16 %v2573, %v2565
    %v3318 = vpack.c.b16 %v2582, %v2574
    %v3319 = vpack.c.b16 %v2583, %v2575
    %v3320 = vpack.c.b16 %v2584, %v2576
    %v3321 = vpack.c.b16 %v2585, %v2577
    %v3322 = vpack.c.b16 %v2586, %v2578
    %v3323 = vpack.c.b16 %v2587, %v2579
    %v3324 = vpack.c.b16 %v2588, %v2580
    %v3325 = vpack.c.b16 %v2589, %v2581
    %v3326 = vpack.c.b16 %v2598, %v2590
    %v3327 = vpack.c.b16 %v2599, %v2591
    %v3328 = vpack.c.b16 %v2600, %v2592
    %v3329 = vpack.c.b16 %v2601, %v2593
    %v3330 = vpack.c.b16 %v2602, %v2594
    %v3331 = vpack.c.b16 %v2603, %v2595
    %v3332 = vpack.c.b16 %v2604, %v2596
    %v3333 = vpack.c.b16 %v2605, %v2597
    %v3334 = vpack.c.b16 %v2614, %v2606
    %v3335 = vpack.c.b16 %v2615, %v2607
    %v3336 = vpack.c.b16 %v2616, %v2608
    %v3337 = vpack.c.b16 %v2617, %v2609
    %v3338 = vpack.c.b16 %v2618, %v2610
    %v3339 = vpack.c.b16 %v2619, %v2611
    %v3340 = vpack.c.b16 %v2620, %v2612
    %v3341 = vpack.c.b16 %v2621, %v2613
    %v3342 = vpack.c.b16 %v2630, %v2622
    %v3343 = vpack.c.b16 %v2631, %v2623
    %v3344 = vpack.c.b16 %v2632, %v2624
    %v3345 = vpack.c.b16 %v2633, %v2625
    %v3346 = vpack.c.b16 %v2634, %v2626
    %v3347 = vpack.c.b16 %v2635, %v2627
    %v3348 = vpack.c.b16 %v2636, %v2628
    %v3349 = vpack.c.b16 %v2637, %v2629
    %v3350 = vpack.c.b16 %v2646, %v2638
    %v3351 = vpack.c.b16 %v2647, %v2639
    %v3352 = vpack.c.b16 %v2648, %v2640
    %v3353 = vpack.c.b16 %v2649, %v2641
    %v3354 = vpack.c.b16 %v2650, %v2642
    %v3355 = vpack.c.b16 %v2651, %v2643
    %v3356 = vpack.c.b16 %v2652, %v2644
    %v3357 = vpack.c.b16 %v2653, %v2645
    %v3358 = vpack.c.b16 %v2662, %v2654
    %v3359 = vpack.c.b16 %v2663, %v2655
    %v3360 = vpack.c.b16 %v2664, %v2656
    %v3361 = vpack.c.b16 %v2665, %v2657
    %v3362 = vpack.c.b16 %v2666, %v2658
    %v3363 = vpack.c.b16 %v2667, %v2659
    %v3364 = vpack.c.b16 %v2668, %v2660
    %v3365 = vpack.c.b16 %v2669, %v2661
    %v3366 = vpack.c.b16 %v2678, %v2670
    %v3367 = vpack.c.b16 %v2679, %v2671
    %v3368 = vpack.c.b16 %v2680, %v2672
    %v3369 = vpack.c.b16 %v2681, %v2673
    %v3370 = vpack.c.b16 %v2682, %v2674
    %v3371 = vpack.c.b16 %v2683, %v2675
    %v3372 = vpack.c.b16 %v2684, %v2676
    %v3373 = vpack.c.b16 %v2685, %v2677
    %v3374 = vpack.c.b16 %v2694, %v2686
    %v3375 = vpack.c.b16 %v2695, %v2687
    %v3376 = vpack.c.b16 %v2696, %v2688
    %v3377 = vpack.c.b16 %v2697, %v2689
    %v3378 = vpack.c.b16 %v2698, %v2690
    %v3379 = vpack.c.b16 %v2699, %v2691
    %v3380 = vpack.c.b16 %v2700, %v2692
    %v3381 = vpack.c.b16 %v2701, %v2693
    %v3382 = vpack.c.b16 %v2710, %v2702
    %v3383 = vpack.c.b16 %v2711, %v2703
    %v3384 = vpack.c.b16 %v2712, %v2704
    %v3385 = vpack.c.b16 %v2713, %v2705
    %v3386 = vpack.c.b16 %v2714, %v2706
    %v3387 = vpack.c.b16 %v2715, %v2707
    %v3388 = vpack.c.b16 %v2716, %v2708
    %v3389 = vpack.c.b16 %v2717, %v2709
    %v3390 = vpack.c.b16 %v2726, %v2718
    %v3391 = vpack.c.b16 %v2727, %v2719
    %v3392 = vpack.c.b16 %v2728, %v2720
    %v3393 = vpack.c.b16 %v2729, %v2721
    %v3394 = vpack.c.b16 %v2730, %v2722
    %v3395 = vpack.c.b16 %v2731, %v2723
    %v3396 = vpack.c.b16 %v2732, %v2724
    %v3397 = vpack.c.b16 %v2733, %v2725
    %v3398 = vpack.c.b16 %v2742, %v2734
    %v3399 = vpack.c.b16 %v2743, %v2735
    %v3400 = vpack.c.b16 %v2744, %v2736
    %v3401 = vpack.c.b16 %v2745, %v2737
    %v3402 = vpack.c.b16 %v2746, %v2738
    %v3403 = vpack.c.b16 %v2747, %v2739
    %v3404 = vpack.c.b16 %v2748, %v2740
    %v3405 = vpack.c.b16 %v2749, %v2741
    %v3406 = vpack.c.b16 %v2758, %v2750
    %v3407 = vpack.c.b16 %v2759, %v2751
    %v3408 = vpack.c.b16 %v2760, %v2752
    %v3409 = vpack.c.b16 %v2761, %v2753
    %v3410 = vpack.c.b16 %v2762, %v2754
    %v3411 = vpack.c.b16 %v2763, %v2755
    %v3412 = vpack.c.b16 %v2764, %v2756
    %v3413 = vpack.c.b16 %v2765, %v2757
    %v3414 = vpack.c.b16 %v2774, %v2766
    %v3415 = vpack.c.b16 %v2775, %v2767
    %v3416 = vpack.c.b16 %v2776, %v2768
    %v3417 = vpack.c.b16 %v2777, %v2769
    %v3418 = vpack.c.b16 %v2778, %v2770
    %v3419 = vpack.c.b16 %v2779, %v2771
    %v3420 = vpack.c.b16 %v2780, %v2772
    %v3421 = vpack.c.b16 %v2781, %v2773
    %4062 = vmatpush.bf16.msra.mxu0 %v2838
    %4063 = vmatpush.bf16.msra.mxu0 %v2830
    %4064 = vmatpush.bf16.msra.mxu0 %v2822
    %4065 = vmatpush.bf16.msra.mxu0 %v2814
    %4066 = vmatpush.bf16.msra.mxu0 %v2806
    %4067 = vmatpush.bf16.msra.mxu0 %v2798
    %4068 = vmatpush.bf16.msra.mxu0 %v2790
    %4069 = vmatpush.bf16.msra.mxu0 %v2782
    %4070 = vmatmul.bf16.gmra.mxu0 %v194
    %v4071 = vpop.f32.mrf.mxu0
    %v4072 = vadd.f32 %v846, %v4071
    %v4073 = vpop.f32.mrf.mxu0
    %4074 = vdwg.mxu0
    %4075 = vmatpush.bf16.msra.mxu0 %v2902
    %4076 = vmatpush.bf16.msra.mxu0 %v2894
    %4077 = vmatpush.bf16.msra.mxu0 %v2886
    %4078 = vmatpush.bf16.msra.mxu0 %v2878
    %4079 = vmatpush.bf16.msra.mxu0 %v2870
    %4080 = vmatpush.bf16.msra.mxu0 %v2862
    %4081 = vmatpush.bf16.msra.mxu0 %v2854
    %4082 = vmatpush.bf16.msra.mxu0 %v2846
    %4083 = vmatmul.bf16.gmra.mxu0 %v195
    %v4084 = vpop.f32.mrf.mxu0
    %v4085 = vadd.f32 %v4072, %v4084
    %v4086 = vpop.f32.mrf.mxu0
    %4087 = vdwg.mxu0
    %4088 = vmatpush.bf16.msra.mxu0 %v2966
    %4089 = vmatpush.bf16.msra.mxu0 %v2958
    %4090 = vmatpush.bf16.msra.mxu0 %v2950
    %4091 = vmatpush.bf16.msra.mxu0 %v2942
    %4092 = vmatpush.bf16.msra.mxu0 %v2934
    %4093 = vmatpush.bf16.msra.mxu0 %v2926
    %4094 = vmatpush.bf16.msra.mxu0 %v2918
    %4095 = vmatpush.bf16.msra.mxu0 %v2910
    %4096 = vmatmul.bf16.gmra.mxu0 %v196
    %v4097 = vpop.f32.mrf.mxu0
    %v4098 = vadd.f32 %v4085, %v4097
    %v4099 = vpop.f32.mrf.mxu0
    %4100 = vdwg.mxu0
    %4101 = vmatpush.bf16.msra.mxu0 %v3030
    %4102 = vmatpush.bf16.msra.mxu0 %v3022
    %4103 = vmatpush.bf16.msra.mxu0 %v3014
    %4104 = vmatpush.bf16.msra.mxu0 %v3006
    %4105 = vmatpush.bf16.msra.mxu0 %v2998
    %4106 = vmatpush.bf16.msra.mxu0 %v2990
    %4107 = vmatpush.bf16.msra.mxu0 %v2982
    %4108 = vmatpush.bf16.msra.mxu0 %v2974
    %4109 = vmatmul.bf16.gmra.mxu0 %v197
    %v4110 = vpop.f32.mrf.mxu0
    %v4111 = vadd.f32 %v4098, %v4110
    %v4112 = vpop.f32.mrf.mxu0
    %4113 = vdwg.mxu0
    %4114 = vmatpush.bf16.msra.mxu0 %v3094
    %4115 = vmatpush.bf16.msra.mxu0 %v3086
    %4116 = vmatpush.bf16.msra.mxu0 %v3078
    %4117 = vmatpush.bf16.msra.mxu0 %v3070
    %4118 = vmatpush.bf16.msra.mxu0 %v3062
    %4119 = vmatpush.bf16.msra.mxu0 %v3054
    %4120 = vmatpush.bf16.msra.mxu0 %v3046
    %4121 = vmatpush.bf16.msra.mxu0 %v3038
    %4122 = vmatmul.bf16.gmra.mxu0 %v198
    %v4123 = vpop.f32.mrf.mxu0
    %v4124 = vadd.f32 %v4111, %v4123
    %v4125 = vpop.f32.mrf.mxu0
    %4126 = vdwg.mxu0
    %4127 = vmatpush.bf16.msra.mxu0 %v3158
    %4128 = vmatpush.bf16.msra.mxu0 %v3150
    %4129 = vmatpush.bf16.msra.mxu0 %v3142
    %4130 = vmatpush.bf16.msra.mxu0 %v3134
    %4131 = vmatpush.bf16.msra.mxu0 %v3126
    %4132 = vmatpush.bf16.msra.mxu0 %v3118
    %4133 = vmatpush.bf16.msra.mxu0 %v3110
    %4134 = vmatpush.bf16.msra.mxu0 %v3102
    %4135 = vmatmul.bf16.gmra.mxu0 %v199
    %v4136 = vpop.f32.mrf.mxu0
    %v4137 = vadd.f32 %v4124, %v4136
    %v4138 = vpop.f32.mrf.mxu0
    %4139 = vdwg.mxu0
    %4140 = vmatpush.bf16.msra.mxu0 %v3222
    %4141 = vmatpush.bf16.msra.mxu0 %v3214
    %4142 = vmatpush.bf16.msra.mxu0 %v3206
    %4143 = vmatpush.bf16.msra.mxu0 %v3198
    %4144 = vmatpush.bf16.msra.mxu0 %v3190
    %4145 = vmatpush.bf16.msra.mxu0 %v3182
    %4146 = vmatpush.bf16.msra.mxu0 %v3174
    %4147 = vmatpush.bf16.msra.mxu0 %v3166
    %4148 = vmatmul.bf16.gmra.mxu0 %v200
    %v4149 = vpop.f32.mrf.mxu0
    %v4150 = vadd.f32 %v4137, %v4149
    %v4151 = vpop.f32.mrf.mxu0
    %4152 = vdwg.mxu0
    %4153 = vmatpush.bf16.msra.mxu0 %v3286
    %4154 = vmatpush.bf16.msra.mxu0 %v3278
    %4155 = vmatpush.bf16.msra.mxu0 %v3270
    %4156 = vmatpush.bf16.msra.mxu0 %v3262
    %4157 = vmatpush.bf16.msra.mxu0 %v3254
    %4158 = vmatpush.bf16.msra.mxu0 %v3246
    %4159 = vmatpush.bf16.msra.mxu0 %v3238
    %4160 = vmatpush.bf16.msra.mxu0 %v3230
    %4161 = vmatmul.bf16.gmra.mxu0 %v201
    %v4162 = vpop.f32.mrf.mxu0
    %v4163 = vadd.f32 %v4150, %v4162
    %v4164 = vpop.f32.mrf.mxu0
    %4165 = vdwg.mxu0
    %4166 = vmatpush.bf16.msra.mxu0 %v3350
    %4167 = vmatpush.bf16.msra.mxu0 %v3342
    %4168 = vmatpush.bf16.msra.mxu0 %v3334
    %4169 = vmatpush.bf16.msra.mxu0 %v3326
    %4170 = vmatpush.bf16.msra.mxu0 %v3318
    %4171 = vmatpush.bf16.msra.mxu0 %v3310
    %4172 = vmatpush.bf16.msra.mxu0 %v3302
    %4173 = vmatpush.bf16.msra.mxu0 %v3294
    %4174 = vmatmul.bf16.gmra.mxu0 %v202
    %v4175 = vpop.f32.mrf.mxu0
    %v4176 = vadd.f32 %v4163, %v4175
    %v4177 = vpop.f32.mrf.mxu0
    %4178 = vdwg.mxu0
    %4179 = vmatpush.bf16.msra.mxu0 %v3414
    %4180 = vmatpush.bf16.msra.mxu0 %v3406
    %4181 = vmatpush.bf16.msra.mxu0 %v3398
    %4182 = vmatpush.bf16.msra.mxu0 %v3390
    %4183 = vmatpush.bf16.msra.mxu0 %v3382
    %4184 = vmatpush.bf16.msra.mxu0 %v3374
    %4185 = vmatpush.bf16.msra.mxu0 %v3366
    %4186 = vmatpush.bf16.msra.mxu0 %v3358
    %4187 = vmatmul.bf16.gmra.mxu0 %v203
    %v4188 = vpop.f32.mrf.mxu0
    %v4189 = vadd.f32 %v4176, %v4188
    %v4190 = vpop.f32.mrf.mxu0
    %4191 = vdwg.mxu0
    %4192 = vmatpush.bf16.msra.mxu0 %v2839
    %4193 = vmatpush.bf16.msra.mxu0 %v2831
    %4194 = vmatpush.bf16.msra.mxu0 %v2823
    %4195 = vmatpush.bf16.msra.mxu0 %v2815
    %4196 = vmatpush.bf16.msra.mxu0 %v2807
    %4197 = vmatpush.bf16.msra.mxu0 %v2799
    %4198 = vmatpush.bf16.msra.mxu0 %v2791
    %4199 = vmatpush.bf16.msra.mxu0 %v2783
    %4200 = vmatmul.bf16.gmra.mxu0 %v194
    %v4201 = vpop.f32.mrf.mxu0
    %v4202 = vadd.f32 %v847, %v4201
    %v4203 = vpop.f32.mrf.mxu0
    %4204 = vdwg.mxu0
    %4205 = vmatpush.bf16.msra.mxu0 %v2903
    %4206 = vmatpush.bf16.msra.mxu0 %v2895
    %4207 = vmatpush.bf16.msra.mxu0 %v2887
    %4208 = vmatpush.bf16.msra.mxu0 %v2879
    %4209 = vmatpush.bf16.msra.mxu0 %v2871
    %4210 = vmatpush.bf16.msra.mxu0 %v2863
    %4211 = vmatpush.bf16.msra.mxu0 %v2855
    %4212 = vmatpush.bf16.msra.mxu0 %v2847
    %4213 = vmatmul.bf16.gmra.mxu0 %v195
    %v4214 = vpop.f32.mrf.mxu0
    %v4215 = vadd.f32 %v4202, %v4214
    %v4216 = vpop.f32.mrf.mxu0
    %4217 = vdwg.mxu0
    %4218 = vmatpush.bf16.msra.mxu0 %v2967
    %4219 = vmatpush.bf16.msra.mxu0 %v2959
    %4220 = vmatpush.bf16.msra.mxu0 %v2951
    %4221 = vmatpush.bf16.msra.mxu0 %v2943
    %4222 = vmatpush.bf16.msra.mxu0 %v2935
    %4223 = vmatpush.bf16.msra.mxu0 %v2927
    %4224 = vmatpush.bf16.msra.mxu0 %v2919
    %4225 = vmatpush.bf16.msra.mxu0 %v2911
    %4226 = vmatmul.bf16.gmra.mxu0 %v196
    %v4227 = vpop.f32.mrf.mxu0
    %v4228 = vadd.f32 %v4215, %v4227
    %v4229 = vpop.f32.mrf.mxu0
    %4230 = vdwg.mxu0
    %4231 = vmatpush.bf16.msra.mxu0 %v3031
    %4232 = vmatpush.bf16.msra.mxu0 %v3023
    %4233 = vmatpush.bf16.msra.mxu0 %v3015
    %4234 = vmatpush.bf16.msra.mxu0 %v3007
    %4235 = vmatpush.bf16.msra.mxu0 %v2999
    %4236 = vmatpush.bf16.msra.mxu0 %v2991
    %4237 = vmatpush.bf16.msra.mxu0 %v2983
    %4238 = vmatpush.bf16.msra.mxu0 %v2975
    %4239 = vmatmul.bf16.gmra.mxu0 %v197
    %v4240 = vpop.f32.mrf.mxu0
    %v4241 = vadd.f32 %v4228, %v4240
    %v4242 = vpop.f32.mrf.mxu0
    %4243 = vdwg.mxu0
    %4244 = vmatpush.bf16.msra.mxu0 %v3095
    %4245 = vmatpush.bf16.msra.mxu0 %v3087
    %4246 = vmatpush.bf16.msra.mxu0 %v3079
    %4247 = vmatpush.bf16.msra.mxu0 %v3071
    %4248 = vmatpush.bf16.msra.mxu0 %v3063
    %4249 = vmatpush.bf16.msra.mxu0 %v3055
    %4250 = vmatpush.bf16.msra.mxu0 %v3047
    %4251 = vmatpush.bf16.msra.mxu0 %v3039
    %4252 = vmatmul.bf16.gmra.mxu0 %v198
    %v4253 = vpop.f32.mrf.mxu0
    %v4254 = vadd.f32 %v4241, %v4253
    %v4255 = vpop.f32.mrf.mxu0
    %4256 = vdwg.mxu0
    %4257 = vmatpush.bf16.msra.mxu0 %v3159
    %4258 = vmatpush.bf16.msra.mxu0 %v3151
    %4259 = vmatpush.bf16.msra.mxu0 %v3143
    %4260 = vmatpush.bf16.msra.mxu0 %v3135
    %4261 = vmatpush.bf16.msra.mxu0 %v3127
    %4262 = vmatpush.bf16.msra.mxu0 %v3119
    %4263 = vmatpush.bf16.msra.mxu0 %v3111
    %4264 = vmatpush.bf16.msra.mxu0 %v3103
    %4265 = vmatmul.bf16.gmra.mxu0 %v199
    %v4266 = vpop.f32.mrf.mxu0
    %v4267 = vadd.f32 %v4254, %v4266
    %v4268 = vpop.f32.mrf.mxu0
    %4269 = vdwg.mxu0
    %4270 = vmatpush.bf16.msra.mxu0 %v3223
    %4271 = vmatpush.bf16.msra.mxu0 %v3215
    %4272 = vmatpush.bf16.msra.mxu0 %v3207
    %4273 = vmatpush.bf16.msra.mxu0 %v3199
    %4274 = vmatpush.bf16.msra.mxu0 %v3191
    %4275 = vmatpush.bf16.msra.mxu0 %v3183
    %4276 = vmatpush.bf16.msra.mxu0 %v3175
    %4277 = vmatpush.bf16.msra.mxu0 %v3167
    %4278 = vmatmul.bf16.gmra.mxu0 %v200
    %v4279 = vpop.f32.mrf.mxu0
    %v4280 = vadd.f32 %v4267, %v4279
    %v4281 = vpop.f32.mrf.mxu0
    %4282 = vdwg.mxu0
    %4283 = vmatpush.bf16.msra.mxu0 %v3287
    %4284 = vmatpush.bf16.msra.mxu0 %v3279
    %4285 = vmatpush.bf16.msra.mxu0 %v3271
    %4286 = vmatpush.bf16.msra.mxu0 %v3263
    %4287 = vmatpush.bf16.msra.mxu0 %v3255
    %4288 = vmatpush.bf16.msra.mxu0 %v3247
    %4289 = vmatpush.bf16.msra.mxu0 %v3239
    %4290 = vmatpush.bf16.msra.mxu0 %v3231
    %4291 = vmatmul.bf16.gmra.mxu0 %v201
    %v4292 = vpop.f32.mrf.mxu0
    %v4293 = vadd.f32 %v4280, %v4292
    %v4294 = vpop.f32.mrf.mxu0
    %4295 = vdwg.mxu0
    %4296 = vmatpush.bf16.msra.mxu0 %v3351
    %4297 = vmatpush.bf16.msra.mxu0 %v3343
    %4298 = vmatpush.bf16.msra.mxu0 %v3335
    %4299 = vmatpush.bf16.msra.mxu0 %v3327
    %4300 = vmatpush.bf16.msra.mxu0 %v3319
    %4301 = vmatpush.bf16.msra.mxu0 %v3311
    %4302 = vmatpush.bf16.msra.mxu0 %v3303
    %4303 = vmatpush.bf16.msra.mxu0 %v3295
    %4304 = vmatmul.bf16.gmra.mxu0 %v202
    %v4305 = vpop.f32.mrf.mxu0
    %v4306 = vadd.f32 %v4293, %v4305
    %v4307 = vpop.f32.mrf.mxu0
    %4308 = vdwg.mxu0
    %4309 = vmatpush.bf16.msra.mxu0 %v3415
    %4310 = vmatpush.bf16.msra.mxu0 %v3407
    %4311 = vmatpush.bf16.msra.mxu0 %v3399
    %4312 = vmatpush.bf16.msra.mxu0 %v3391
    %4313 = vmatpush.bf16.msra.mxu0 %v3383
    %4314 = vmatpush.bf16.msra.mxu0 %v3375
    %4315 = vmatpush.bf16.msra.mxu0 %v3367
    %4316 = vmatpush.bf16.msra.mxu0 %v3359
    %4317 = vmatmul.bf16.gmra.mxu0 %v203
    %v4318 = vpop.f32.mrf.mxu0
    %v4319 = vadd.f32 %v4306, %v4318
    %v4320 = vpop.f32.mrf.mxu0
    %4321 = vdwg.mxu0
    %4322 = vmatpush.bf16.msra.mxu0 %v2840
    %4323 = vmatpush.bf16.msra.mxu0 %v2832
    %4324 = vmatpush.bf16.msra.mxu0 %v2824
    %4325 = vmatpush.bf16.msra.mxu0 %v2816
    %4326 = vmatpush.bf16.msra.mxu0 %v2808
    %4327 = vmatpush.bf16.msra.mxu0 %v2800
    %4328 = vmatpush.bf16.msra.mxu0 %v2792
    %4329 = vmatpush.bf16.msra.mxu0 %v2784
    %4330 = vmatmul.bf16.gmra.mxu0 %v194
    %v4331 = vpop.f32.mrf.mxu0
    %v4332 = vadd.f32 %v848, %v4331
    %v4333 = vpop.f32.mrf.mxu0
    %4334 = vdwg.mxu0
    %4335 = vmatpush.bf16.msra.mxu0 %v2904
    %4336 = vmatpush.bf16.msra.mxu0 %v2896
    %4337 = vmatpush.bf16.msra.mxu0 %v2888
    %4338 = vmatpush.bf16.msra.mxu0 %v2880
    %4339 = vmatpush.bf16.msra.mxu0 %v2872
    %4340 = vmatpush.bf16.msra.mxu0 %v2864
    %4341 = vmatpush.bf16.msra.mxu0 %v2856
    %4342 = vmatpush.bf16.msra.mxu0 %v2848
    %4343 = vmatmul.bf16.gmra.mxu0 %v195
    %v4344 = vpop.f32.mrf.mxu0
    %v4345 = vadd.f32 %v4332, %v4344
    %v4346 = vpop.f32.mrf.mxu0
    %4347 = vdwg.mxu0
    %4348 = vmatpush.bf16.msra.mxu0 %v2968
    %4349 = vmatpush.bf16.msra.mxu0 %v2960
    %4350 = vmatpush.bf16.msra.mxu0 %v2952
    %4351 = vmatpush.bf16.msra.mxu0 %v2944
    %4352 = vmatpush.bf16.msra.mxu0 %v2936
    %4353 = vmatpush.bf16.msra.mxu0 %v2928
    %4354 = vmatpush.bf16.msra.mxu0 %v2920
    %4355 = vmatpush.bf16.msra.mxu0 %v2912
    %4356 = vmatmul.bf16.gmra.mxu0 %v196
    %v4357 = vpop.f32.mrf.mxu0
    %v4358 = vadd.f32 %v4345, %v4357
    %v4359 = vpop.f32.mrf.mxu0
    %4360 = vdwg.mxu0
    %4361 = vmatpush.bf16.msra.mxu0 %v3032
    %4362 = vmatpush.bf16.msra.mxu0 %v3024
    %4363 = vmatpush.bf16.msra.mxu0 %v3016
    %4364 = vmatpush.bf16.msra.mxu0 %v3008
    %4365 = vmatpush.bf16.msra.mxu0 %v3000
    %4366 = vmatpush.bf16.msra.mxu0 %v2992
    %4367 = vmatpush.bf16.msra.mxu0 %v2984
    %4368 = vmatpush.bf16.msra.mxu0 %v2976
    %4369 = vmatmul.bf16.gmra.mxu0 %v197
    %v4370 = vpop.f32.mrf.mxu0
    %v4371 = vadd.f32 %v4358, %v4370
    %v4372 = vpop.f32.mrf.mxu0
    %4373 = vdwg.mxu0
    %4374 = vmatpush.bf16.msra.mxu0 %v3096
    %4375 = vmatpush.bf16.msra.mxu0 %v3088
    %4376 = vmatpush.bf16.msra.mxu0 %v3080
    %4377 = vmatpush.bf16.msra.mxu0 %v3072
    %4378 = vmatpush.bf16.msra.mxu0 %v3064
    %4379 = vmatpush.bf16.msra.mxu0 %v3056
    %4380 = vmatpush.bf16.msra.mxu0 %v3048
    %4381 = vmatpush.bf16.msra.mxu0 %v3040
    %4382 = vmatmul.bf16.gmra.mxu0 %v198
    %v4383 = vpop.f32.mrf.mxu0
    %v4384 = vadd.f32 %v4371, %v4383
    %v4385 = vpop.f32.mrf.mxu0
    %4386 = vdwg.mxu0
    %4387 = vmatpush.bf16.msra.mxu0 %v3160
    %4388 = vmatpush.bf16.msra.mxu0 %v3152
    %4389 = vmatpush.bf16.msra.mxu0 %v3144
    %4390 = vmatpush.bf16.msra.mxu0 %v3136
    %4391 = vmatpush.bf16.msra.mxu0 %v3128
    %4392 = vmatpush.bf16.msra.mxu0 %v3120
    %4393 = vmatpush.bf16.msra.mxu0 %v3112
    %4394 = vmatpush.bf16.msra.mxu0 %v3104
    %4395 = vmatmul.bf16.gmra.mxu0 %v199
    %v4396 = vpop.f32.mrf.mxu0
    %v4397 = vadd.f32 %v4384, %v4396
    %v4398 = vpop.f32.mrf.mxu0
    %4399 = vdwg.mxu0
    %4400 = vmatpush.bf16.msra.mxu0 %v3224
    %4401 = vmatpush.bf16.msra.mxu0 %v3216
    %4402 = vmatpush.bf16.msra.mxu0 %v3208
    %4403 = vmatpush.bf16.msra.mxu0 %v3200
    %4404 = vmatpush.bf16.msra.mxu0 %v3192
    %4405 = vmatpush.bf16.msra.mxu0 %v3184
    %4406 = vmatpush.bf16.msra.mxu0 %v3176
    %4407 = vmatpush.bf16.msra.mxu0 %v3168
    %4408 = vmatmul.bf16.gmra.mxu0 %v200
    %v4409 = vpop.f32.mrf.mxu0
    %v4410 = vadd.f32 %v4397, %v4409
    %v4411 = vpop.f32.mrf.mxu0
    %4412 = vdwg.mxu0
    %4413 = vmatpush.bf16.msra.mxu0 %v3288
    %4414 = vmatpush.bf16.msra.mxu0 %v3280
    %4415 = vmatpush.bf16.msra.mxu0 %v3272
    %4416 = vmatpush.bf16.msra.mxu0 %v3264
    %4417 = vmatpush.bf16.msra.mxu0 %v3256
    %4418 = vmatpush.bf16.msra.mxu0 %v3248
    %4419 = vmatpush.bf16.msra.mxu0 %v3240
    %4420 = vmatpush.bf16.msra.mxu0 %v3232
    %4421 = vmatmul.bf16.gmra.mxu0 %v201
    %v4422 = vpop.f32.mrf.mxu0
    %v4423 = vadd.f32 %v4410, %v4422
    %v4424 = vpop.f32.mrf.mxu0
    %4425 = vdwg.mxu0
    %4426 = vmatpush.bf16.msra.mxu0 %v3352
    %4427 = vmatpush.bf16.msra.mxu0 %v3344
    %4428 = vmatpush.bf16.msra.mxu0 %v3336
    %4429 = vmatpush.bf16.msra.mxu0 %v3328
    %4430 = vmatpush.bf16.msra.mxu0 %v3320
    %4431 = vmatpush.bf16.msra.mxu0 %v3312
    %4432 = vmatpush.bf16.msra.mxu0 %v3304
    %4433 = vmatpush.bf16.msra.mxu0 %v3296
    %4434 = vmatmul.bf16.gmra.mxu0 %v202
    %v4435 = vpop.f32.mrf.mxu0
    %v4436 = vadd.f32 %v4423, %v4435
    %v4437 = vpop.f32.mrf.mxu0
    %4438 = vdwg.mxu0
    %4439 = vmatpush.bf16.msra.mxu0 %v3416
    %4440 = vmatpush.bf16.msra.mxu0 %v3408
    %4441 = vmatpush.bf16.msra.mxu0 %v3400
    %4442 = vmatpush.bf16.msra.mxu0 %v3392
    %4443 = vmatpush.bf16.msra.mxu0 %v3384
    %4444 = vmatpush.bf16.msra.mxu0 %v3376
    %4445 = vmatpush.bf16.msra.mxu0 %v3368
    %4446 = vmatpush.bf16.msra.mxu0 %v3360
    %4447 = vmatmul.bf16.gmra.mxu0 %v203
    %v4448 = vpop.f32.mrf.mxu0
    %v4449 = vadd.f32 %v4436, %v4448
    %v4450 = vpop.f32.mrf.mxu0
    %4451 = vdwg.mxu0
    %4452 = vmatpush.bf16.msra.mxu0 %v2841
    %4453 = vmatpush.bf16.msra.mxu0 %v2833
    %4454 = vmatpush.bf16.msra.mxu0 %v2825
    %4455 = vmatpush.bf16.msra.mxu0 %v2817
    %4456 = vmatpush.bf16.msra.mxu0 %v2809
    %4457 = vmatpush.bf16.msra.mxu0 %v2801
    %4458 = vmatpush.bf16.msra.mxu0 %v2793
    %4459 = vmatpush.bf16.msra.mxu0 %v2785
    %4460 = vmatmul.bf16.gmra.mxu0 %v194
    %v4461 = vpop.f32.mrf.mxu0
    %v4462 = vadd.f32 %v849, %v4461
    %v4463 = vpop.f32.mrf.mxu0
    %4464 = vdwg.mxu0
    %4465 = vmatpush.bf16.msra.mxu0 %v2905
    %4466 = vmatpush.bf16.msra.mxu0 %v2897
    %4467 = vmatpush.bf16.msra.mxu0 %v2889
    %4468 = vmatpush.bf16.msra.mxu0 %v2881
    %4469 = vmatpush.bf16.msra.mxu0 %v2873
    %4470 = vmatpush.bf16.msra.mxu0 %v2865
    %4471 = vmatpush.bf16.msra.mxu0 %v2857
    %4472 = vmatpush.bf16.msra.mxu0 %v2849
    %4473 = vmatmul.bf16.gmra.mxu0 %v195
    %v4474 = vpop.f32.mrf.mxu0
    %v4475 = vadd.f32 %v4462, %v4474
    %v4476 = vpop.f32.mrf.mxu0
    %4477 = vdwg.mxu0
    %4478 = vmatpush.bf16.msra.mxu0 %v2969
    %4479 = vmatpush.bf16.msra.mxu0 %v2961
    %4480 = vmatpush.bf16.msra.mxu0 %v2953
    %4481 = vmatpush.bf16.msra.mxu0 %v2945
    %4482 = vmatpush.bf16.msra.mxu0 %v2937
    %4483 = vmatpush.bf16.msra.mxu0 %v2929
    %4484 = vmatpush.bf16.msra.mxu0 %v2921
    %4485 = vmatpush.bf16.msra.mxu0 %v2913
    %4486 = vmatmul.bf16.gmra.mxu0 %v196
    %v4487 = vpop.f32.mrf.mxu0
    %v4488 = vadd.f32 %v4475, %v4487
    %v4489 = vpop.f32.mrf.mxu0
    %4490 = vdwg.mxu0
    %4491 = vmatpush.bf16.msra.mxu0 %v3033
    %4492 = vmatpush.bf16.msra.mxu0 %v3025
    %4493 = vmatpush.bf16.msra.mxu0 %v3017
    %4494 = vmatpush.bf16.msra.mxu0 %v3009
    %4495 = vmatpush.bf16.msra.mxu0 %v3001
    %4496 = vmatpush.bf16.msra.mxu0 %v2993
    %4497 = vmatpush.bf16.msra.mxu0 %v2985
    %4498 = vmatpush.bf16.msra.mxu0 %v2977
    %4499 = vmatmul.bf16.gmra.mxu0 %v197
    %v4500 = vpop.f32.mrf.mxu0
    %v4501 = vadd.f32 %v4488, %v4500
    %v4502 = vpop.f32.mrf.mxu0
    %4503 = vdwg.mxu0
    %4504 = vmatpush.bf16.msra.mxu0 %v3097
    %4505 = vmatpush.bf16.msra.mxu0 %v3089
    %4506 = vmatpush.bf16.msra.mxu0 %v3081
    %4507 = vmatpush.bf16.msra.mxu0 %v3073
    %4508 = vmatpush.bf16.msra.mxu0 %v3065
    %4509 = vmatpush.bf16.msra.mxu0 %v3057
    %4510 = vmatpush.bf16.msra.mxu0 %v3049
    %4511 = vmatpush.bf16.msra.mxu0 %v3041
    %4512 = vmatmul.bf16.gmra.mxu0 %v198
    %v4513 = vpop.f32.mrf.mxu0
    %v4514 = vadd.f32 %v4501, %v4513
    %v4515 = vpop.f32.mrf.mxu0
    %4516 = vdwg.mxu0
    %4517 = vmatpush.bf16.msra.mxu0 %v3161
    %4518 = vmatpush.bf16.msra.mxu0 %v3153
    %4519 = vmatpush.bf16.msra.mxu0 %v3145
    %4520 = vmatpush.bf16.msra.mxu0 %v3137
    %4521 = vmatpush.bf16.msra.mxu0 %v3129
    %4522 = vmatpush.bf16.msra.mxu0 %v3121
    %4523 = vmatpush.bf16.msra.mxu0 %v3113
    %4524 = vmatpush.bf16.msra.mxu0 %v3105
    %4525 = vmatmul.bf16.gmra.mxu0 %v199
    %v4526 = vpop.f32.mrf.mxu0
    %v4527 = vadd.f32 %v4514, %v4526
    %v4528 = vpop.f32.mrf.mxu0
    %4529 = vdwg.mxu0
    %4530 = vmatpush.bf16.msra.mxu0 %v3225
    %4531 = vmatpush.bf16.msra.mxu0 %v3217
    %4532 = vmatpush.bf16.msra.mxu0 %v3209
    %4533 = vmatpush.bf16.msra.mxu0 %v3201
    %4534 = vmatpush.bf16.msra.mxu0 %v3193
    %4535 = vmatpush.bf16.msra.mxu0 %v3185
    %4536 = vmatpush.bf16.msra.mxu0 %v3177
    %4537 = vmatpush.bf16.msra.mxu0 %v3169
    %4538 = vmatmul.bf16.gmra.mxu0 %v200
    %v4539 = vpop.f32.mrf.mxu0
    %v4540 = vadd.f32 %v4527, %v4539
    %v4541 = vpop.f32.mrf.mxu0
    %4542 = vdwg.mxu0
    %4543 = vmatpush.bf16.msra.mxu0 %v3289
    %4544 = vmatpush.bf16.msra.mxu0 %v3281
    %4545 = vmatpush.bf16.msra.mxu0 %v3273
    %4546 = vmatpush.bf16.msra.mxu0 %v3265
    %4547 = vmatpush.bf16.msra.mxu0 %v3257
    %4548 = vmatpush.bf16.msra.mxu0 %v3249
    %4549 = vmatpush.bf16.msra.mxu0 %v3241
    %4550 = vmatpush.bf16.msra.mxu0 %v3233
    %4551 = vmatmul.bf16.gmra.mxu0 %v201
    %v4552 = vpop.f32.mrf.mxu0
    %v4553 = vadd.f32 %v4540, %v4552
    %v4554 = vpop.f32.mrf.mxu0
    %4555 = vdwg.mxu0
    %4556 = vmatpush.bf16.msra.mxu0 %v3353
    %4557 = vmatpush.bf16.msra.mxu0 %v3345
    %4558 = vmatpush.bf16.msra.mxu0 %v3337
    %4559 = vmatpush.bf16.msra.mxu0 %v3329
    %4560 = vmatpush.bf16.msra.mxu0 %v3321
    %4561 = vmatpush.bf16.msra.mxu0 %v3313
    %4562 = vmatpush.bf16.msra.mxu0 %v3305
    %4563 = vmatpush.bf16.msra.mxu0 %v3297
    %4564 = vmatmul.bf16.gmra.mxu0 %v202
    %v4565 = vpop.f32.mrf.mxu0
    %v4566 = vadd.f32 %v4553, %v4565
    %v4567 = vpop.f32.mrf.mxu0
    %4568 = vdwg.mxu0
    %4569 = vmatpush.bf16.msra.mxu0 %v3417
    %4570 = vmatpush.bf16.msra.mxu0 %v3409
    %4571 = vmatpush.bf16.msra.mxu0 %v3401
    %4572 = vmatpush.bf16.msra.mxu0 %v3393
    %4573 = vmatpush.bf16.msra.mxu0 %v3385
    %4574 = vmatpush.bf16.msra.mxu0 %v3377
    %4575 = vmatpush.bf16.msra.mxu0 %v3369
    %4576 = vmatpush.bf16.msra.mxu0 %v3361
    %4577 = vmatmul.bf16.gmra.mxu0 %v203
    %v4578 = vpop.f32.mrf.mxu0
    %v4579 = vadd.f32 %v4566, %v4578
    %v4580 = vpop.f32.mrf.mxu0
    %4581 = vdwg.mxu0
    %4582 = vmatpush.bf16.msra.mxu0 %v2842
    %4583 = vmatpush.bf16.msra.mxu0 %v2834
    %4584 = vmatpush.bf16.msra.mxu0 %v2826
    %4585 = vmatpush.bf16.msra.mxu0 %v2818
    %4586 = vmatpush.bf16.msra.mxu0 %v2810
    %4587 = vmatpush.bf16.msra.mxu0 %v2802
    %4588 = vmatpush.bf16.msra.mxu0 %v2794
    %4589 = vmatpush.bf16.msra.mxu0 %v2786
    %4590 = vmatmul.bf16.gmra.mxu0 %v194
    %v4591 = vpop.f32.mrf.mxu0
    %v4592 = vadd.f32 %v850, %v4591
    %v4593 = vpop.f32.mrf.mxu0
    %4594 = vdwg.mxu0
    %4595 = vmatpush.bf16.msra.mxu0 %v2906
    %4596 = vmatpush.bf16.msra.mxu0 %v2898
    %4597 = vmatpush.bf16.msra.mxu0 %v2890
    %4598 = vmatpush.bf16.msra.mxu0 %v2882
    %4599 = vmatpush.bf16.msra.mxu0 %v2874
    %4600 = vmatpush.bf16.msra.mxu0 %v2866
    %4601 = vmatpush.bf16.msra.mxu0 %v2858
    %4602 = vmatpush.bf16.msra.mxu0 %v2850
    %4603 = vmatmul.bf16.gmra.mxu0 %v195
    %v4604 = vpop.f32.mrf.mxu0
    %v4605 = vadd.f32 %v4592, %v4604
    %v4606 = vpop.f32.mrf.mxu0
    %4607 = vdwg.mxu0
    %4608 = vmatpush.bf16.msra.mxu0 %v2970
    %4609 = vmatpush.bf16.msra.mxu0 %v2962
    %4610 = vmatpush.bf16.msra.mxu0 %v2954
    %4611 = vmatpush.bf16.msra.mxu0 %v2946
    %4612 = vmatpush.bf16.msra.mxu0 %v2938
    %4613 = vmatpush.bf16.msra.mxu0 %v2930
    %4614 = vmatpush.bf16.msra.mxu0 %v2922
    %4615 = vmatpush.bf16.msra.mxu0 %v2914
    %4616 = vmatmul.bf16.gmra.mxu0 %v196
    %v4617 = vpop.f32.mrf.mxu0
    %v4618 = vadd.f32 %v4605, %v4617
    %v4619 = vpop.f32.mrf.mxu0
    %4620 = vdwg.mxu0
    %4621 = vmatpush.bf16.msra.mxu0 %v3034
    %4622 = vmatpush.bf16.msra.mxu0 %v3026
    %4623 = vmatpush.bf16.msra.mxu0 %v3018
    %4624 = vmatpush.bf16.msra.mxu0 %v3010
    %4625 = vmatpush.bf16.msra.mxu0 %v3002
    %4626 = vmatpush.bf16.msra.mxu0 %v2994
    %4627 = vmatpush.bf16.msra.mxu0 %v2986
    %4628 = vmatpush.bf16.msra.mxu0 %v2978
    %4629 = vmatmul.bf16.gmra.mxu0 %v197
    %v4630 = vpop.f32.mrf.mxu0
    %v4631 = vadd.f32 %v4618, %v4630
    %v4632 = vpop.f32.mrf.mxu0
    %4633 = vdwg.mxu0
    %4634 = vmatpush.bf16.msra.mxu0 %v3098
    %4635 = vmatpush.bf16.msra.mxu0 %v3090
    %4636 = vmatpush.bf16.msra.mxu0 %v3082
    %4637 = vmatpush.bf16.msra.mxu0 %v3074
    %4638 = vmatpush.bf16.msra.mxu0 %v3066
    %4639 = vmatpush.bf16.msra.mxu0 %v3058
    %4640 = vmatpush.bf16.msra.mxu0 %v3050
    %4641 = vmatpush.bf16.msra.mxu0 %v3042
    %4642 = vmatmul.bf16.gmra.mxu0 %v198
    %v4643 = vpop.f32.mrf.mxu0
    %v4644 = vadd.f32 %v4631, %v4643
    %v4645 = vpop.f32.mrf.mxu0
    %4646 = vdwg.mxu0
    %4647 = vmatpush.bf16.msra.mxu0 %v3162
    %4648 = vmatpush.bf16.msra.mxu0 %v3154
    %4649 = vmatpush.bf16.msra.mxu0 %v3146
    %4650 = vmatpush.bf16.msra.mxu0 %v3138
    %4651 = vmatpush.bf16.msra.mxu0 %v3130
    %4652 = vmatpush.bf16.msra.mxu0 %v3122
    %4653 = vmatpush.bf16.msra.mxu0 %v3114
    %4654 = vmatpush.bf16.msra.mxu0 %v3106
    %4655 = vmatmul.bf16.gmra.mxu0 %v199
    %v4656 = vpop.f32.mrf.mxu0
    %v4657 = vadd.f32 %v4644, %v4656
    %v4658 = vpop.f32.mrf.mxu0
    %4659 = vdwg.mxu0
    %4660 = vmatpush.bf16.msra.mxu0 %v3226
    %4661 = vmatpush.bf16.msra.mxu0 %v3218
    %4662 = vmatpush.bf16.msra.mxu0 %v3210
    %4663 = vmatpush.bf16.msra.mxu0 %v3202
    %4664 = vmatpush.bf16.msra.mxu0 %v3194
    %4665 = vmatpush.bf16.msra.mxu0 %v3186
    %4666 = vmatpush.bf16.msra.mxu0 %v3178
    %4667 = vmatpush.bf16.msra.mxu0 %v3170
    %4668 = vmatmul.bf16.gmra.mxu0 %v200
    %v4669 = vpop.f32.mrf.mxu0
    %v4670 = vadd.f32 %v4657, %v4669
    %v4671 = vpop.f32.mrf.mxu0
    %4672 = vdwg.mxu0
    %4673 = vmatpush.bf16.msra.mxu0 %v3290
    %4674 = vmatpush.bf16.msra.mxu0 %v3282
    %4675 = vmatpush.bf16.msra.mxu0 %v3274
    %4676 = vmatpush.bf16.msra.mxu0 %v3266
    %4677 = vmatpush.bf16.msra.mxu0 %v3258
    %4678 = vmatpush.bf16.msra.mxu0 %v3250
    %4679 = vmatpush.bf16.msra.mxu0 %v3242
    %4680 = vmatpush.bf16.msra.mxu0 %v3234
    %4681 = vmatmul.bf16.gmra.mxu0 %v201
    %v4682 = vpop.f32.mrf.mxu0
    %v4683 = vadd.f32 %v4670, %v4682
    %v4684 = vpop.f32.mrf.mxu0
    %4685 = vdwg.mxu0
    %4686 = vmatpush.bf16.msra.mxu0 %v3354
    %4687 = vmatpush.bf16.msra.mxu0 %v3346
    %4688 = vmatpush.bf16.msra.mxu0 %v3338
    %4689 = vmatpush.bf16.msra.mxu0 %v3330
    %4690 = vmatpush.bf16.msra.mxu0 %v3322
    %4691 = vmatpush.bf16.msra.mxu0 %v3314
    %4692 = vmatpush.bf16.msra.mxu0 %v3306
    %4693 = vmatpush.bf16.msra.mxu0 %v3298
    %4694 = vmatmul.bf16.gmra.mxu0 %v202
    %v4695 = vpop.f32.mrf.mxu0
    %v4696 = vadd.f32 %v4683, %v4695
    %v4697 = vpop.f32.mrf.mxu0
    %4698 = vdwg.mxu0
    %4699 = vmatpush.bf16.msra.mxu0 %v3418
    %4700 = vmatpush.bf16.msra.mxu0 %v3410
    %4701 = vmatpush.bf16.msra.mxu0 %v3402
    %4702 = vmatpush.bf16.msra.mxu0 %v3394
    %4703 = vmatpush.bf16.msra.mxu0 %v3386
    %4704 = vmatpush.bf16.msra.mxu0 %v3378
    %4705 = vmatpush.bf16.msra.mxu0 %v3370
    %4706 = vmatpush.bf16.msra.mxu0 %v3362
    %4707 = vmatmul.bf16.gmra.mxu0 %v203
    %v4708 = vpop.f32.mrf.mxu0
    %v4709 = vadd.f32 %v4696, %v4708
    %v4710 = vpop.f32.mrf.mxu0
    %4711 = vdwg.mxu0
    %4712 = vmatpush.bf16.msra.mxu0 %v2843
    %4713 = vmatpush.bf16.msra.mxu0 %v2835
    %4714 = vmatpush.bf16.msra.mxu0 %v2827
    %4715 = vmatpush.bf16.msra.mxu0 %v2819
    %4716 = vmatpush.bf16.msra.mxu0 %v2811
    %4717 = vmatpush.bf16.msra.mxu0 %v2803
    %4718 = vmatpush.bf16.msra.mxu0 %v2795
    %4719 = vmatpush.bf16.msra.mxu0 %v2787
    %4720 = vmatmul.bf16.gmra.mxu0 %v194
    %v4721 = vpop.f32.mrf.mxu0
    %v4722 = vadd.f32 %v851, %v4721
    %v4723 = vpop.f32.mrf.mxu0
    %4724 = vdwg.mxu0
    %4725 = vmatpush.bf16.msra.mxu0 %v2907
    %4726 = vmatpush.bf16.msra.mxu0 %v2899
    %4727 = vmatpush.bf16.msra.mxu0 %v2891
    %4728 = vmatpush.bf16.msra.mxu0 %v2883
    %4729 = vmatpush.bf16.msra.mxu0 %v2875
    %4730 = vmatpush.bf16.msra.mxu0 %v2867
    %4731 = vmatpush.bf16.msra.mxu0 %v2859
    %4732 = vmatpush.bf16.msra.mxu0 %v2851
    %4733 = vmatmul.bf16.gmra.mxu0 %v195
    %v4734 = vpop.f32.mrf.mxu0
    %v4735 = vadd.f32 %v4722, %v4734
    %v4736 = vpop.f32.mrf.mxu0
    %4737 = vdwg.mxu0
    %4738 = vmatpush.bf16.msra.mxu0 %v2971
    %4739 = vmatpush.bf16.msra.mxu0 %v2963
    %4740 = vmatpush.bf16.msra.mxu0 %v2955
    %4741 = vmatpush.bf16.msra.mxu0 %v2947
    %4742 = vmatpush.bf16.msra.mxu0 %v2939
    %4743 = vmatpush.bf16.msra.mxu0 %v2931
    %4744 = vmatpush.bf16.msra.mxu0 %v2923
    %4745 = vmatpush.bf16.msra.mxu0 %v2915
    %4746 = vmatmul.bf16.gmra.mxu0 %v196
    %v4747 = vpop.f32.mrf.mxu0
    %v4748 = vadd.f32 %v4735, %v4747
    %v4749 = vpop.f32.mrf.mxu0
    %4750 = vdwg.mxu0
    %4751 = vmatpush.bf16.msra.mxu0 %v3035
    %4752 = vmatpush.bf16.msra.mxu0 %v3027
    %4753 = vmatpush.bf16.msra.mxu0 %v3019
    %4754 = vmatpush.bf16.msra.mxu0 %v3011
    %4755 = vmatpush.bf16.msra.mxu0 %v3003
    %4756 = vmatpush.bf16.msra.mxu0 %v2995
    %4757 = vmatpush.bf16.msra.mxu0 %v2987
    %4758 = vmatpush.bf16.msra.mxu0 %v2979
    %4759 = vmatmul.bf16.gmra.mxu0 %v197
    %v4760 = vpop.f32.mrf.mxu0
    %v4761 = vadd.f32 %v4748, %v4760
    %v4762 = vpop.f32.mrf.mxu0
    %4763 = vdwg.mxu0
    %4764 = vmatpush.bf16.msra.mxu0 %v3099
    %4765 = vmatpush.bf16.msra.mxu0 %v3091
    %4766 = vmatpush.bf16.msra.mxu0 %v3083
    %4767 = vmatpush.bf16.msra.mxu0 %v3075
    %4768 = vmatpush.bf16.msra.mxu0 %v3067
    %4769 = vmatpush.bf16.msra.mxu0 %v3059
    %4770 = vmatpush.bf16.msra.mxu0 %v3051
    %4771 = vmatpush.bf16.msra.mxu0 %v3043
    %4772 = vmatmul.bf16.gmra.mxu0 %v198
    %v4773 = vpop.f32.mrf.mxu0
    %v4774 = vadd.f32 %v4761, %v4773
    %v4775 = vpop.f32.mrf.mxu0
    %4776 = vdwg.mxu0
    %4777 = vmatpush.bf16.msra.mxu0 %v3163
    %4778 = vmatpush.bf16.msra.mxu0 %v3155
    %4779 = vmatpush.bf16.msra.mxu0 %v3147
    %4780 = vmatpush.bf16.msra.mxu0 %v3139
    %4781 = vmatpush.bf16.msra.mxu0 %v3131
    %4782 = vmatpush.bf16.msra.mxu0 %v3123
    %4783 = vmatpush.bf16.msra.mxu0 %v3115
    %4784 = vmatpush.bf16.msra.mxu0 %v3107
    %4785 = vmatmul.bf16.gmra.mxu0 %v199
    %v4786 = vpop.f32.mrf.mxu0
    %v4787 = vadd.f32 %v4774, %v4786
    %v4788 = vpop.f32.mrf.mxu0
    %4789 = vdwg.mxu0
    %4790 = vmatpush.bf16.msra.mxu0 %v3227
    %4791 = vmatpush.bf16.msra.mxu0 %v3219
    %4792 = vmatpush.bf16.msra.mxu0 %v3211
    %4793 = vmatpush.bf16.msra.mxu0 %v3203
    %4794 = vmatpush.bf16.msra.mxu0 %v3195
    %4795 = vmatpush.bf16.msra.mxu0 %v3187
    %4796 = vmatpush.bf16.msra.mxu0 %v3179
    %4797 = vmatpush.bf16.msra.mxu0 %v3171
    %4798 = vmatmul.bf16.gmra.mxu0 %v200
    %v4799 = vpop.f32.mrf.mxu0
    %v4800 = vadd.f32 %v4787, %v4799
    %v4801 = vpop.f32.mrf.mxu0
    %4802 = vdwg.mxu0
    %4803 = vmatpush.bf16.msra.mxu0 %v3291
    %4804 = vmatpush.bf16.msra.mxu0 %v3283
    %4805 = vmatpush.bf16.msra.mxu0 %v3275
    %4806 = vmatpush.bf16.msra.mxu0 %v3267
    %4807 = vmatpush.bf16.msra.mxu0 %v3259
    %4808 = vmatpush.bf16.msra.mxu0 %v3251
    %4809 = vmatpush.bf16.msra.mxu0 %v3243
    %4810 = vmatpush.bf16.msra.mxu0 %v3235
    %4811 = vmatmul.bf16.gmra.mxu0 %v201
    %v4812 = vpop.f32.mrf.mxu0
    %v4813 = vadd.f32 %v4800, %v4812
    %v4814 = vpop.f32.mrf.mxu0
    %4815 = vdwg.mxu0
    %4816 = vmatpush.bf16.msra.mxu0 %v3355
    %4817 = vmatpush.bf16.msra.mxu0 %v3347
    %4818 = vmatpush.bf16.msra.mxu0 %v3339
    %4819 = vmatpush.bf16.msra.mxu0 %v3331
    %4820 = vmatpush.bf16.msra.mxu0 %v3323
    %4821 = vmatpush.bf16.msra.mxu0 %v3315
    %4822 = vmatpush.bf16.msra.mxu0 %v3307
    %4823 = vmatpush.bf16.msra.mxu0 %v3299
    %4824 = vmatmul.bf16.gmra.mxu0 %v202
    %v4825 = vpop.f32.mrf.mxu0
    %v4826 = vadd.f32 %v4813, %v4825
    %v4827 = vpop.f32.mrf.mxu0
    %4828 = vdwg.mxu0
    %4829 = vmatpush.bf16.msra.mxu0 %v3419
    %4830 = vmatpush.bf16.msra.mxu0 %v3411
    %4831 = vmatpush.bf16.msra.mxu0 %v3403
    %4832 = vmatpush.bf16.msra.mxu0 %v3395
    %4833 = vmatpush.bf16.msra.mxu0 %v3387
    %4834 = vmatpush.bf16.msra.mxu0 %v3379
    %4835 = vmatpush.bf16.msra.mxu0 %v3371
    %4836 = vmatpush.bf16.msra.mxu0 %v3363
    %4837 = vmatmul.bf16.gmra.mxu0 %v203
    %v4838 = vpop.f32.mrf.mxu0
    %v4839 = vadd.f32 %v4826, %v4838
    %v4840 = vpop.f32.mrf.mxu0
    %4841 = vdwg.mxu0
    %4842 = vmatpush.bf16.msra.mxu0 %v2844
    %4843 = vmatpush.bf16.msra.mxu0 %v2836
    %4844 = vmatpush.bf16.msra.mxu0 %v2828
    %4845 = vmatpush.bf16.msra.mxu0 %v2820
    %4846 = vmatpush.bf16.msra.mxu0 %v2812
    %4847 = vmatpush.bf16.msra.mxu0 %v2804
    %4848 = vmatpush.bf16.msra.mxu0 %v2796
    %4849 = vmatpush.bf16.msra.mxu0 %v2788
    %4850 = vmatmul.bf16.gmra.mxu0 %v194
    %v4851 = vpop.f32.mrf.mxu0
    %v4852 = vadd.f32 %v852, %v4851
    %v4853 = vpop.f32.mrf.mxu0
    %4854 = vdwg.mxu0
    %4855 = vmatpush.bf16.msra.mxu0 %v2908
    %4856 = vmatpush.bf16.msra.mxu0 %v2900
    %4857 = vmatpush.bf16.msra.mxu0 %v2892
    %4858 = vmatpush.bf16.msra.mxu0 %v2884
    %4859 = vmatpush.bf16.msra.mxu0 %v2876
    %4860 = vmatpush.bf16.msra.mxu0 %v2868
    %4861 = vmatpush.bf16.msra.mxu0 %v2860
    %4862 = vmatpush.bf16.msra.mxu0 %v2852
    %4863 = vmatmul.bf16.gmra.mxu0 %v195
    %v4864 = vpop.f32.mrf.mxu0
    %v4865 = vadd.f32 %v4852, %v4864
    %v4866 = vpop.f32.mrf.mxu0
    %4867 = vdwg.mxu0
    %4868 = vmatpush.bf16.msra.mxu0 %v2972
    %4869 = vmatpush.bf16.msra.mxu0 %v2964
    %4870 = vmatpush.bf16.msra.mxu0 %v2956
    %4871 = vmatpush.bf16.msra.mxu0 %v2948
    %4872 = vmatpush.bf16.msra.mxu0 %v2940
    %4873 = vmatpush.bf16.msra.mxu0 %v2932
    %4874 = vmatpush.bf16.msra.mxu0 %v2924
    %4875 = vmatpush.bf16.msra.mxu0 %v2916
    %4876 = vmatmul.bf16.gmra.mxu0 %v196
    %v4877 = vpop.f32.mrf.mxu0
    %v4878 = vadd.f32 %v4865, %v4877
    %v4879 = vpop.f32.mrf.mxu0
    %4880 = vdwg.mxu0
    %4881 = vmatpush.bf16.msra.mxu0 %v3036
    %4882 = vmatpush.bf16.msra.mxu0 %v3028
    %4883 = vmatpush.bf16.msra.mxu0 %v3020
    %4884 = vmatpush.bf16.msra.mxu0 %v3012
    %4885 = vmatpush.bf16.msra.mxu0 %v3004
    %4886 = vmatpush.bf16.msra.mxu0 %v2996
    %4887 = vmatpush.bf16.msra.mxu0 %v2988
    %4888 = vmatpush.bf16.msra.mxu0 %v2980
    %4889 = vmatmul.bf16.gmra.mxu0 %v197
    %v4890 = vpop.f32.mrf.mxu0
    %v4891 = vadd.f32 %v4878, %v4890
    %v4892 = vpop.f32.mrf.mxu0
    %4893 = vdwg.mxu0
    %4894 = vmatpush.bf16.msra.mxu0 %v3100
    %4895 = vmatpush.bf16.msra.mxu0 %v3092
    %4896 = vmatpush.bf16.msra.mxu0 %v3084
    %4897 = vmatpush.bf16.msra.mxu0 %v3076
    %4898 = vmatpush.bf16.msra.mxu0 %v3068
    %4899 = vmatpush.bf16.msra.mxu0 %v3060
    %4900 = vmatpush.bf16.msra.mxu0 %v3052
    %4901 = vmatpush.bf16.msra.mxu0 %v3044
    %4902 = vmatmul.bf16.gmra.mxu0 %v198
    %v4903 = vpop.f32.mrf.mxu0
    %v4904 = vadd.f32 %v4891, %v4903
    %v4905 = vpop.f32.mrf.mxu0
    %4906 = vdwg.mxu0
    %4907 = vmatpush.bf16.msra.mxu0 %v3164
    %4908 = vmatpush.bf16.msra.mxu0 %v3156
    %4909 = vmatpush.bf16.msra.mxu0 %v3148
    %4910 = vmatpush.bf16.msra.mxu0 %v3140
    %4911 = vmatpush.bf16.msra.mxu0 %v3132
    %4912 = vmatpush.bf16.msra.mxu0 %v3124
    %4913 = vmatpush.bf16.msra.mxu0 %v3116
    %4914 = vmatpush.bf16.msra.mxu0 %v3108
    %4915 = vmatmul.bf16.gmra.mxu0 %v199
    %v4916 = vpop.f32.mrf.mxu0
    %v4917 = vadd.f32 %v4904, %v4916
    %v4918 = vpop.f32.mrf.mxu0
    %4919 = vdwg.mxu0
    %4920 = vmatpush.bf16.msra.mxu0 %v3228
    %4921 = vmatpush.bf16.msra.mxu0 %v3220
    %4922 = vmatpush.bf16.msra.mxu0 %v3212
    %4923 = vmatpush.bf16.msra.mxu0 %v3204
    %4924 = vmatpush.bf16.msra.mxu0 %v3196
    %4925 = vmatpush.bf16.msra.mxu0 %v3188
    %4926 = vmatpush.bf16.msra.mxu0 %v3180
    %4927 = vmatpush.bf16.msra.mxu0 %v3172
    %4928 = vmatmul.bf16.gmra.mxu0 %v200
    %v4929 = vpop.f32.mrf.mxu0
    %v4930 = vadd.f32 %v4917, %v4929
    %v4931 = vpop.f32.mrf.mxu0
    %4932 = vdwg.mxu0
    %4933 = vmatpush.bf16.msra.mxu0 %v3292
    %4934 = vmatpush.bf16.msra.mxu0 %v3284
    %4935 = vmatpush.bf16.msra.mxu0 %v3276
    %4936 = vmatpush.bf16.msra.mxu0 %v3268
    %4937 = vmatpush.bf16.msra.mxu0 %v3260
    %4938 = vmatpush.bf16.msra.mxu0 %v3252
    %4939 = vmatpush.bf16.msra.mxu0 %v3244
    %4940 = vmatpush.bf16.msra.mxu0 %v3236
    %4941 = vmatmul.bf16.gmra.mxu0 %v201
    %v4942 = vpop.f32.mrf.mxu0
    %v4943 = vadd.f32 %v4930, %v4942
    %v4944 = vpop.f32.mrf.mxu0
    %4945 = vdwg.mxu0
    %4946 = vmatpush.bf16.msra.mxu0 %v3356
    %4947 = vmatpush.bf16.msra.mxu0 %v3348
    %4948 = vmatpush.bf16.msra.mxu0 %v3340
    %4949 = vmatpush.bf16.msra.mxu0 %v3332
    %4950 = vmatpush.bf16.msra.mxu0 %v3324
    %4951 = vmatpush.bf16.msra.mxu0 %v3316
    %4952 = vmatpush.bf16.msra.mxu0 %v3308
    %4953 = vmatpush.bf16.msra.mxu0 %v3300
    %4954 = vmatmul.bf16.gmra.mxu0 %v202
    %v4955 = vpop.f32.mrf.mxu0
    %v4956 = vadd.f32 %v4943, %v4955
    %v4957 = vpop.f32.mrf.mxu0
    %4958 = vdwg.mxu0
    %4959 = vmatpush.bf16.msra.mxu0 %v3420
    %4960 = vmatpush.bf16.msra.mxu0 %v3412
    %4961 = vmatpush.bf16.msra.mxu0 %v3404
    %4962 = vmatpush.bf16.msra.mxu0 %v3396
    %4963 = vmatpush.bf16.msra.mxu0 %v3388
    %4964 = vmatpush.bf16.msra.mxu0 %v3380
    %4965 = vmatpush.bf16.msra.mxu0 %v3372
    %4966 = vmatpush.bf16.msra.mxu0 %v3364
    %4967 = vmatmul.bf16.gmra.mxu0 %v203
    %v4968 = vpop.f32.mrf.mxu0
    %v4969 = vadd.f32 %v4956, %v4968
    %v4970 = vpop.f32.mrf.mxu0
    %4971 = vdwg.mxu0
    %4972 = vmatpush.bf16.msra.mxu0 %v2845
    %4973 = vmatpush.bf16.msra.mxu0 %v2837
    %4974 = vmatpush.bf16.msra.mxu0 %v2829
    %4975 = vmatpush.bf16.msra.mxu0 %v2821
    %4976 = vmatpush.bf16.msra.mxu0 %v2813
    %4977 = vmatpush.bf16.msra.mxu0 %v2805
    %4978 = vmatpush.bf16.msra.mxu0 %v2797
    %4979 = vmatpush.bf16.msra.mxu0 %v2789
    %4980 = vmatmul.bf16.gmra.mxu0 %v194
    %v4981 = vpop.f32.mrf.mxu0
    %v4982 = vadd.f32 %v853, %v4981
    %v4983 = vpop.f32.mrf.mxu0
    %4984 = vdwg.mxu0
    %4985 = vmatpush.bf16.msra.mxu0 %v2909
    %4986 = vmatpush.bf16.msra.mxu0 %v2901
    %4987 = vmatpush.bf16.msra.mxu0 %v2893
    %4988 = vmatpush.bf16.msra.mxu0 %v2885
    %4989 = vmatpush.bf16.msra.mxu0 %v2877
    %4990 = vmatpush.bf16.msra.mxu0 %v2869
    %4991 = vmatpush.bf16.msra.mxu0 %v2861
    %4992 = vmatpush.bf16.msra.mxu0 %v2853
    %4993 = vmatmul.bf16.gmra.mxu0 %v195
    %v4994 = vpop.f32.mrf.mxu0
    %v4995 = vadd.f32 %v4982, %v4994
    %v4996 = vpop.f32.mrf.mxu0
    %4997 = vdwg.mxu0
    %4998 = vmatpush.bf16.msra.mxu0 %v2973
    %4999 = vmatpush.bf16.msra.mxu0 %v2965
    %5000 = vmatpush.bf16.msra.mxu0 %v2957
    %5001 = vmatpush.bf16.msra.mxu0 %v2949
    %5002 = vmatpush.bf16.msra.mxu0 %v2941
    %5003 = vmatpush.bf16.msra.mxu0 %v2933
    %5004 = vmatpush.bf16.msra.mxu0 %v2925
    %5005 = vmatpush.bf16.msra.mxu0 %v2917
    %5006 = vmatmul.bf16.gmra.mxu0 %v196
    %v5007 = vpop.f32.mrf.mxu0
    %v5008 = vadd.f32 %v4995, %v5007
    %v5009 = vpop.f32.mrf.mxu0
    %5010 = vdwg.mxu0
    %5011 = vmatpush.bf16.msra.mxu0 %v3037
    %5012 = vmatpush.bf16.msra.mxu0 %v3029
    %5013 = vmatpush.bf16.msra.mxu0 %v3021
    %5014 = vmatpush.bf16.msra.mxu0 %v3013
    %5015 = vmatpush.bf16.msra.mxu0 %v3005
    %5016 = vmatpush.bf16.msra.mxu0 %v2997
    %5017 = vmatpush.bf16.msra.mxu0 %v2989
    %5018 = vmatpush.bf16.msra.mxu0 %v2981
    %5019 = vmatmul.bf16.gmra.mxu0 %v197
    %v5020 = vpop.f32.mrf.mxu0
    %v5021 = vadd.f32 %v5008, %v5020
    %v5022 = vpop.f32.mrf.mxu0
    %5023 = vdwg.mxu0
    %5024 = vmatpush.bf16.msra.mxu0 %v3101
    %5025 = vmatpush.bf16.msra.mxu0 %v3093
    %5026 = vmatpush.bf16.msra.mxu0 %v3085
    %5027 = vmatpush.bf16.msra.mxu0 %v3077
    %5028 = vmatpush.bf16.msra.mxu0 %v3069
    %5029 = vmatpush.bf16.msra.mxu0 %v3061
    %5030 = vmatpush.bf16.msra.mxu0 %v3053
    %5031 = vmatpush.bf16.msra.mxu0 %v3045
    %5032 = vmatmul.bf16.gmra.mxu0 %v198
    %v5033 = vpop.f32.mrf.mxu0
    %v5034 = vadd.f32 %v5021, %v5033
    %v5035 = vpop.f32.mrf.mxu0
    %5036 = vdwg.mxu0
    %5037 = vmatpush.bf16.msra.mxu0 %v3165
    %5038 = vmatpush.bf16.msra.mxu0 %v3157
    %5039 = vmatpush.bf16.msra.mxu0 %v3149
    %5040 = vmatpush.bf16.msra.mxu0 %v3141
    %5041 = vmatpush.bf16.msra.mxu0 %v3133
    %5042 = vmatpush.bf16.msra.mxu0 %v3125
    %5043 = vmatpush.bf16.msra.mxu0 %v3117
    %5044 = vmatpush.bf16.msra.mxu0 %v3109
    %5045 = vmatmul.bf16.gmra.mxu0 %v199
    %v5046 = vpop.f32.mrf.mxu0
    %v5047 = vadd.f32 %v5034, %v5046
    %v5048 = vpop.f32.mrf.mxu0
    %5049 = vdwg.mxu0
    %5050 = vmatpush.bf16.msra.mxu0 %v3229
    %5051 = vmatpush.bf16.msra.mxu0 %v3221
    %5052 = vmatpush.bf16.msra.mxu0 %v3213
    %5053 = vmatpush.bf16.msra.mxu0 %v3205
    %5054 = vmatpush.bf16.msra.mxu0 %v3197
    %5055 = vmatpush.bf16.msra.mxu0 %v3189
    %5056 = vmatpush.bf16.msra.mxu0 %v3181
    %5057 = vmatpush.bf16.msra.mxu0 %v3173
    %5058 = vmatmul.bf16.gmra.mxu0 %v200
    %v5059 = vpop.f32.mrf.mxu0
    %v5060 = vadd.f32 %v5047, %v5059
    %v5061 = vpop.f32.mrf.mxu0
    %5062 = vdwg.mxu0
    %5063 = vmatpush.bf16.msra.mxu0 %v3293
    %5064 = vmatpush.bf16.msra.mxu0 %v3285
    %5065 = vmatpush.bf16.msra.mxu0 %v3277
    %5066 = vmatpush.bf16.msra.mxu0 %v3269
    %5067 = vmatpush.bf16.msra.mxu0 %v3261
    %5068 = vmatpush.bf16.msra.mxu0 %v3253
    %5069 = vmatpush.bf16.msra.mxu0 %v3245
    %5070 = vmatpush.bf16.msra.mxu0 %v3237
    %5071 = vmatmul.bf16.gmra.mxu0 %v201
    %v5072 = vpop.f32.mrf.mxu0
    %v5073 = vadd.f32 %v5060, %v5072
    %v5074 = vpop.f32.mrf.mxu0
    %5075 = vdwg.mxu0
    %5076 = vmatpush.bf16.msra.mxu0 %v3357
    %5077 = vmatpush.bf16.msra.mxu0 %v3349
    %5078 = vmatpush.bf16.msra.mxu0 %v3341
    %5079 = vmatpush.bf16.msra.mxu0 %v3333
    %5080 = vmatpush.bf16.msra.mxu0 %v3325
    %5081 = vmatpush.bf16.msra.mxu0 %v3317
    %5082 = vmatpush.bf16.msra.mxu0 %v3309
    %5083 = vmatpush.bf16.msra.mxu0 %v3301
    %5084 = vmatmul.bf16.gmra.mxu0 %v202
    %v5085 = vpop.f32.mrf.mxu0
    %v5086 = vadd.f32 %v5073, %v5085
    %v5087 = vpop.f32.mrf.mxu0
    %5088 = vdwg.mxu0
    %5089 = vmatpush.bf16.msra.mxu0 %v3421
    %5090 = vmatpush.bf16.msra.mxu0 %v3413
    %5091 = vmatpush.bf16.msra.mxu0 %v3405
    %5092 = vmatpush.bf16.msra.mxu0 %v3397
    %5093 = vmatpush.bf16.msra.mxu0 %v3389
    %5094 = vmatpush.bf16.msra.mxu0 %v3381
    %5095 = vmatpush.bf16.msra.mxu0 %v3373
    %5096 = vmatpush.bf16.msra.mxu0 %v3365
    %5097 = vmatmul.bf16.gmra.mxu0 %v203
    %v5098 = vpop.f32.mrf.mxu0
    %v5099 = vadd.f32 %v5086, %v5098
    %v5100 = vpop.f32.mrf.mxu0
    %5101 = vdwg.mxu0
    %v5110 = vrot.slane %v4319, 6
    %v5111 = vrot.slane %v4449, 4
    %v5112 = vrot.slane %v4579, 2
    %v5113 = vrot.slane %v4839, 6
    %v5114 = vrot.slane %v4969, 4
    %v5115 = vrot.slane %v5099, 2
    %vm5116 = vcmask 1041408
    %v5117 = vsel %vm5116, %v4189, %v5110
    %vm5118 = vcmask 1045508
    %v5119 = vsel %vm5118, %v5111, %v5112
    %vm5120 = vcmask 1043456
    %v5121 = vsel %vm5120, %v5117, %v5119
    %v5122 = vsel %vm5116, %v4709, %v5113
    %v5123 = vsel %vm5118, %v5114, %v5115
    %v5124 = vsel %vm5120, %v5122, %v5123
    %5127 = vst [vmem:[#allocation17 + $0xe] sm:$0xff] %v5121
    %5128 = vst [vmem:[#allocation17 + $0x16] sm:$0xff] %v5124
    %v5129 = vld [vmem:[#allocation2] sm:$0x3]
    %v5130 = vpack.c.bf16 %v5129, %v5129
    %v5131 = vld [vmem:[#allocation10] sm:$0xf]
    %v5132 = vld [vmem:[#allocation10 + $0x4] sm:$0xf]
    %v5133 = vld [vmem:[#allocation10 + $0x8] sm:$0xf]
    %v5134 = vld [vmem:[#allocation16] sm:$0x1]
    %v5136 = vperm.slane %v5134, 0
    %v5141 = vunpack.c.l.b16 %v5131
    %v5142 = vunpack.c.l.b16 %v5132
    %v5143 = vunpack.c.l.b16 %v5133
    %v5144 = vpack.c.b16 %v5142, %v5141
    %v5145 = vpack.c.b16 %v5143, %v5143
    %vm5147 = vcmask 195584
    %v5149 = vsel %vm5147, %v5130, 0
    %v5152 = vsel %vm5120, %v5145, 0
    %5154 = vmatpush.bf16.msra.mxu0 0
    %5155 = vmatpush.bf16.msra.mxu0 0
    %5156 = vmatpush.bf16.msra.mxu0 0
    %5157 = vmatpush.bf16.msra.mxu0 0
    %5158 = vmatpush.bf16.msra.mxu0 0
    %5159 = vmatpush.bf16.msra.mxu0 0
    %5160 = vmatpush.bf16.msra.mxu0 %v5152
    %5161 = vmatpush.bf16.msra.mxu0 %v5144
    %5162 = vmatmul.bf16.gmra.mxu0 %v5149
    %v5163 = vpop.f32.mrf.mxu0
    %v5164 = vadd.f32 %v5136, %v5163
    %v5165 = vpop.f32.mrf.mxu0
    %5166 = vdwg.mxu0
    %5167 = vst [vmem:[#allocation17] sm:$0x3] %v5164
    %v5168 = vld [vmem:[#allocation5] sm:$0x3]
    %v5169 = vpack.c.bf16 %v5168, %v5168
    %v5170 = vld [vmem:[#allocation11] sm:$0xff]
    %v5171 = vld [vmem:[#allocation11 + $0x8] sm:$0xff]
    %v5172 = vld [vmem:[#allocation11 + $0x10] sm:$0xff]
    %v5173 = vld [vmem:[#allocation11 + $0x18] sm:$0xff]
    %v5174 = vld [vmem:[#allocation16 + $0x1] sm:$0x3]
    %v5176 = vperm.slane %v5174, 0
    %v5177 = vperm.slane %v5174, 1
    %v5184 = vunpack.c.l.b16 %v5170
    %v5185 = vunpack.c.h.b16 %v5170
    %v5186 = vunpack.c.l.b16 %v5171
    %v5187 = vunpack.c.h.b16 %v5171
    %v5188 = vunpack.c.l.b16 %v5172
    %v5189 = vunpack.c.h.b16 %v5172
    %v5190 = vunpack.c.l.b16 %v5173
    %v5191 = vunpack.c.h.b16 %v5173
    %v5192 = vpack.c.b16 %v5186, %v5184
    %v5193 = vpack.c.b16 %v5187, %v5185
    %v5194 = vpack.c.b16 %v5190, %v5188
    %v5195 = vpack.c.b16 %v5191, %v5189
    %vm5200 = vcmask 261120
    %v5202 = vsel %vm5200, %v5169, 0
    %5204 = vmatpush.bf16.msra.mxu0 0
    %5205 = vmatpush.bf16.msra.mxu0 0
    %5206 = vmatpush.bf16.msra.mxu0 0
    %5207 = vmatpush.bf16.msra.mxu0 0
    %5208 = vmatpush.bf16.msra.mxu0 0
    %5209 = vmatpush.bf16.msra.mxu0 0
    %5210 = vmatpush.bf16.msra.mxu0 %v5194
    %5211 = vmatpush.bf16.msra.mxu0 %v5192
    %5212 = vmatmul.bf16.gmra.mxu0 %v5202
    %v5213 = vpop.f32.mrf.mxu0
    %v5214 = vadd.f32 %v5176, %v5213
    %v5215 = vpop.f32.mrf.mxu0
    %5216 = vdwg.mxu0
    %5217 = vmatpush.bf16.msra.mxu0 0
    %5218 = vmatpush.bf16.msra.mxu0 0
    %5219 = vmatpush.bf16.msra.mxu0 0
    %5220 = vmatpush.bf16.msra.mxu0 0
    %5221 = vmatpush.bf16.msra.mxu0 0
    %5222 = vmatpush.bf16.msra.mxu0 0
    %5223 = vmatpush.bf16.msra.mxu0 %v5195
    %5224 = vmatpush.bf16.msra.mxu0 %v5193
    %5225 = vmatmul.bf16.gmra.mxu0 %v5202
    %v5226 = vpop.f32.mrf.mxu0
    %v5227 = vadd.f32 %v5177, %v5226
    %v5228 = vpop.f32.mrf.mxu0
    %5229 = vdwg.mxu0
    %v5232 = vrot.slane %v5227, 6
    %v5233 = vsel %vm5116, %v5214, %v5232
    %5235 = vst [vmem:[#allocation17 + $0x2] sm:$0xf] %v5233
    %v5236 = vld [vmem:[#allocation7] sm:$0x3]
    %v5237 = vpack.c.bf16 %v5236, %v5236
    %v5238 = vld [vmem:[#allocation13] sm:$0xff]
    %v5239 = vld [vmem:[#allocation13 + $0x8] sm:$0xff]
    %v5240 = vld [vmem:[#allocation13 + $0x10] sm:$0xff]
    %v5241 = vld [vmem:[#allocation13 + $0x18] sm:$0xff]
    %v5242 = vld [vmem:[#allocation13 + $0x20] sm:$0xff]
    %v5243 = vld [vmem:[#allocation13 + $0x28] sm:$0xff]
    %v5244 = vld [vmem:[#allocation13 + $0x30] sm:$0xff]
    %v5245 = vld [vmem:[#allocation13 + $0x38] sm:$0xff]
    %v5246 = vld [vmem:[#allocation13 + $0x40] sm:$0xff]
    %v5247 = vld [vmem:[#allocation13 + $0x48] sm:$0xff]
    %v5248 = vld [vmem:[#allocation13 + $0x50] sm:$0xff]
    %v5249 = vld [vmem:[#allocation13 + $0x58] sm:$0xff]
    %v5250 = vld [vmem:[#allocation13 + $0x60] sm:$0xff]
    %v5251 = vld [vmem:[#allocation13 + $0x68] sm:$0xff]
    %v5252 = vld [vmem:[#allocation13 + $0x70] sm:$0xff]
    %v5253 = vld [vmem:[#allocation13 + $0x78] sm:$0xff]
    %v5254 = vld [vmem:[#allocation13 + $0x80] sm:$0xff]
    %v5255 = vld [vmem:[#allocation13 + $0x88] sm:$0xff]
    %v5256 = vld [vmem:[#allocation13 + $0x90] sm:$0xff]
    %v5257 = vld [vmem:[#allocation13 + $0x98] sm:$0xff]
    %v5258 = vld [vmem:[#allocation13 + $0xa0] sm:$0xff]
    %v5259 = vld [vmem:[#allocation13 + $0xa8] sm:$0xff]
    %v5260 = vld [vmem:[#allocation13 + $0xb0] sm:$0xff]
    %v5261 = vld [vmem:[#allocation13 + $0xb8] sm:$0xff]
    %v5262 = vld [vmem:[#allocation16 + $0x3] sm:$0xf]
    %v5264 = vperm.slane %v5262, 0
    %v5265 = vperm.slane %v5262, 1
    %v5266 = vperm.slane %v5262, 2
    %v5267 = vperm.slane %v5262, 3
    %v5296 = vunpack.c.l.b16 %v5238
    %v5297 = vunpack.c.h.b16 %v5238
    %v5298 = vunpack.c.l.b16 %v5239
    %v5299 = vunpack.c.h.b16 %v5239
    %v5300 = vunpack.c.l.b16 %v5240
    %v5301 = vunpack.c.h.b16 %v5240
    %v5302 = vunpack.c.l.b16 %v5241
    %v5303 = vunpack.c.h.b16 %v5241
    %v5304 = vunpack.c.l.b16 %v5242
    %v5305 = vunpack.c.h.b16 %v5242
    %v5306 = vunpack.c.l.b16 %v5243
    %v5307 = vunpack.c.h.b16 %v5243
    %v5308 = vunpack.c.l.b16 %v5244
    %v5309 = vunpack.c.h.b16 %v5244
    %v5310 = vunpack.c.l.b16 %v5245
    %v5311 = vunpack.c.h.b16 %v5245
    %v5312 = vunpack.c.l.b16 %v5246
    %v5313 = vunpack.c.h.b16 %v5246
    %v5314 = vunpack.c.l.b16 %v5247
    %v5315 = vunpack.c.h.b16 %v5247
    %v5316 = vunpack.c.l.b16 %v5248
    %v5317 = vunpack.c.h.b16 %v5248
    %v5318 = vunpack.c.l.b16 %v5249
    %v5319 = vunpack.c.h.b16 %v5249
    %v5320 = vunpack.c.l.b16 %v5250
    %v5321 = vunpack.c.h.b16 %v5250
    %v5322 = vunpack.c.l.b16 %v5251
    %v5323 = vunpack.c.h.b16 %v5251
    %v5324 = vunpack.c.l.b16 %v5252
    %v5325 = vunpack.c.h.b16 %v5252
    %v5326 = vunpack.c.l.b16 %v5253
    %v5327 = vunpack.c.h.b16 %v5253
    %v5328 = vunpack.c.l.b16 %v5254
    %v5329 = vunpack.c.h.b16 %v5254
    %v5330 = vunpack.c.l.b16 %v5255
    %v5331 = vunpack.c.h.b16 %v5255
    %v5332 = vunpack.c.l.b16 %v5256
    %v5333 = vunpack.c.h.b16 %v5256
    %v5334 = vunpack.c.l.b16 %v5257
    %v5335 = vunpack.c.h.b16 %v5257
    %v5336 = vunpack.c.l.b16 %v5258
    %v5337 = vunpack.c.h.b16 %v5258
    %v5338 = vunpack.c.l.b16 %v5259
    %v5339 = vunpack.c.h.b16 %v5259
    %v5340 = vunpack.c.l.b16 %v5260
    %v5341 = vunpack.c.h.b16 %v5260
    %v5342 = vunpack.c.l.b16 %v5261
    %v5343 = vunpack.c.h.b16 %v5261
    %v5344 = vpack.c.b16 %v5300, %v5296
    %v5345 = vpack.c.b16 %v5301, %v5297
    %v5346 = vpack.c.b16 %v5302, %v5298
    %v5347 = vpack.c.b16 %v5303, %v5299
    %v5348 = vpack.c.b16 %v5308, %v5304
    %v5349 = vpack.c.b16 %v5309, %v5305
    %v5350 = vpack.c.b16 %v5310, %v5306
    %v5351 = vpack.c.b16 %v5311, %v5307
    %v5352 = vpack.c.b16 %v5316, %v5312
    %v5353 = vpack.c.b16 %v5317, %v5313
    %v5354 = vpack.c.b16 %v5318, %v5314
    %v5355 = vpack.c.b16 %v5319, %v5315
    %v5356 = vpack.c.b16 %v5324, %v5320
    %v5357 = vpack.c.b16 %v5325, %v5321
    %v5358 = vpack.c.b16 %v5326, %v5322
    %v5359 = vpack.c.b16 %v5327, %v5323
    %v5360 = vpack.c.b16 %v5332, %v5328
    %v5361 = vpack.c.b16 %v5333, %v5329
    %v5362 = vpack.c.b16 %v5334, %v5330
    %v5363 = vpack.c.b16 %v5335, %v5331
    %v5364 = vpack.c.b16 %v5340, %v5336
    %v5365 = vpack.c.b16 %v5341, %v5337
    %v5366 = vpack.c.b16 %v5342, %v5338
    %v5367 = vpack.c.b16 %v5343, %v5339
    %vm5392 = vcmask 785408
    %v5394 = vsel %vm5392, %v5237, 0
    %5396 = vmatpush.bf16.msra.mxu0 0
    %5397 = vmatpush.bf16.msra.mxu0 0
    %5398 = vmatpush.bf16.msra.mxu0 %v5364
    %5399 = vmatpush.bf16.msra.mxu0 %v5360
    %5400 = vmatpush.bf16.msra.mxu0 %v5356
    %5401 = vmatpush.bf16.msra.mxu0 %v5352
    %5402 = vmatpush.bf16.msra.mxu0 %v5348
    %5403 = vmatpush.bf16.msra.mxu0 %v5344
    %5404 = vmatmul.bf16.gmra.mxu0 %v5394
    %v5405 = vpop.f32.mrf.mxu0
    %v5406 = vadd.f32 %v5264, %v5405
    %v5407 = vpop.f32.mrf.mxu0
    %5408 = vdwg.mxu0
    %5409 = vmatpush.bf16.msra.mxu0 0
    %5410 = vmatpush.bf16.msra.mxu0 0
    %5411 = vmatpush.bf16.msra.mxu0 %v5365
    %5412 = vmatpush.bf16.msra.mxu0 %v5361
    %5413 = vmatpush.bf16.msra.mxu0 %v5357
    %5414 = vmatpush.bf16.msra.mxu0 %v5353
    %5415 = vmatpush.bf16.msra.mxu0 %v5349
    %5416 = vmatpush.bf16.msra.mxu0 %v5345
    %5417 = vmatmul.bf16.gmra.mxu0 %v5394
    %v5418 = vpop.f32.mrf.mxu0
    %v5419 = vadd.f32 %v5265, %v5418
    %v5420 = vpop.f32.mrf.mxu0
    %5421 = vdwg.mxu0
    %5422 = vmatpush.bf16.msra.mxu0 0
    %5423 = vmatpush.bf16.msra.mxu0 0
    %5424 = vmatpush.bf16.msra.mxu0 %v5366
    %5425 = vmatpush.bf16.msra.mxu0 %v5362
    %5426 = vmatpush.bf16.msra.mxu0 %v5358
    %5427 = vmatpush.bf16.msra.mxu0 %v5354
    %5428 = vmatpush.bf16.msra.mxu0 %v5350
    %5429 = vmatpush.bf16.msra.mxu0 %v5346
    %5430 = vmatmul.bf16.gmra.mxu0 %v5394
    %v5431 = vpop.f32.mrf.mxu0
    %v5432 = vadd.f32 %v5266, %v5431
    %v5433 = vpop.f32.mrf.mxu0
    %5434 = vdwg.mxu0
    %5435 = vmatpush.bf16.msra.mxu0 0
    %5436 = vmatpush.bf16.msra.mxu0 0
    %5437 = vmatpush.bf16.msra.mxu0 %v5367
    %5438 = vmatpush.bf16.msra.mxu0 %v5363
    %5439 = vmatpush.bf16.msra.mxu0 %v5359
    %5440 = vmatpush.bf16.msra.mxu0 %v5355
    %5441 = vmatpush.bf16.msra.mxu0 %v5351
    %5442 = vmatpush.bf16.msra.mxu0 %v5347
    %5443 = vmatmul.bf16.gmra.mxu0 %v5394
    %v5444 = vpop.f32.mrf.mxu0
    %v5445 = vadd.f32 %v5267, %v5444
    %v5446 = vpop.f32.mrf.mxu0
    %5447 = vdwg.mxu0
    %v5452 = vrot.slane %v5419, 6
    %v5453 = vrot.slane %v5432, 4
    %v5454 = vrot.slane %v5445, 2
    %v5455 = vsel %vm5116, %v5406, %v5452
    %v5456 = vsel %vm5118, %v5453, %v5454
    %v5457 = vsel %vm5120, %v5455, %v5456
    %5459 = vst [vmem:[#allocation17 + $0x6] sm:$0xff] %v5457
    // Predicated region
    $region74: #{tpu_custom_call.1} parent=1 // pred_check
      _
    $region75: #{tpu_custom_call.1} parent=1 // pred_check_branch
      %5461 = sbr.rel (0) target = $region77
    $region76: #{tpu_custom_call.1} parent=1 // pred_region
      %5463 = vsyncadd [#allocation4], 0
      %s5465 = sshll.u32 [#allocation17], 4
      %s5466 = int_to_ptr.vmem [resolvable:$true] %s5465
      %s5467 = sshll.u32 %s9, 4
      %s5468 = int_to_ptr.hbm [resolvable:$true] %s5467
      %5470 = dma.vmem_to_hbm [thread:$0]  %s5466, 480, %s5468, [#allocation4]
    $region77: #{tpu_custom_call.1} parent=1 // pred_fallthru
      _
    // Predicated region
    $region78: #{tpu_custom_call.1} parent=1 // pred_check
      _
    $region79: #{tpu_custom_call.1} parent=1 // pred_check_branch
      %5472 = sbr.rel (0) target = $region81
    $region80: #{tpu_custom_call.1} parent=1 // pred_region
      %5474 = dma.done [#allocation4], 480
    $region81: #{tpu_custom_call.1} parent=1 // pred_fallthru
      _
    %5475 = vsyncpa [#allocation3], 1
    %5476 = vsyncpa [#allocation6], 1
    %5477 = vsyncpa [#allocation9], 1
    %5478 = vsyncpa [#allocation12], 1
    %5479 = vsyncpa [#allocation15], 1
    %5480 = vsyncpa [#allocation4], 1

</llo_original>
